<compile_context>
chip_gen: v7x
topology: tpu7x:2x2x1
jax: 0.10.0
libtpu: 0.0.40
codegen_flags: <defaults>
</compile_context>

<pallas_src>
import numpy as np

import jax
import jax.numpy as jnp
from jax import lax
from jax.experimental import pallas as pl
from jax.experimental.pallas import tpu as pltpu


# ------------------- host-side constant builders (packed once) -------------------- #

def _one_hot(cols, num_cols):
    """M[r, c] = 1.0 iff c == cols[r]  (exact row-gather as a matmul)."""
    cols = np.asarray(cols)
    return (np.arange(num_cols)[None, :] == cols[:, None]).astype(np.float32)


def _col_pool(wout, ch):
    """(2, 2*wout*ch, wout*ch) 0/1 matrices selecting even/odd columns of an
    (ow, c)-flattened axis, keeping the channel: out col = pw*ch + c."""
    i = np.arange(2 * wout * ch)
    j = np.arange(wout * ch)
    ow, ci = i // ch, i % ch
    pw, cj = j // ch, j % ch
    return np.stack([((ci[:, None] == cj[None, :]) &
                      (ow[:, None] == 2 * pw[None, :] + r)).astype(np.float32)
                     for r in range(2)])


_C1_POOL = _col_pool(14, 6)    # (2, 168, 84)  conv1 width pooling
_C2_POOL = _col_pool(5, 16)    # (2, 160, 80)  conv2 width pooling


def _batch_constants(bn):
    """Row-gather / row-pool 0/1 matrices for a batch block of `bn` images."""
    n = np.arange(bn)
    # conv1 tap-row gather: rows (n, oh) <- x row n*32 + oh + ky
    oh28, n28 = np.tile(np.arange(28), bn), np.repeat(n, 28)
    X1 = np.stack([_one_hot(n28 * 32 + oh28 + ky, bn * 32) for ky in range(5)])
    # conv1 height pooling: rows (n, ph) <- conv row n*28 + 2*ph + r
    ph14, n14 = np.tile(np.arange(14), bn), np.repeat(n, 14)
    R1 = np.stack([_one_hot(n14 * 28 + 2 * ph14 + r, bn * 28) for r in range(2)])
    # conv2 tap-row gather: rows (n, oh) <- s2 row n*14 + oh + ky
    oh10, n10 = np.tile(np.arange(10), bn), np.repeat(n, 10)
    X2 = np.stack([_one_hot(n10 * 14 + oh10 + ky, bn * 14) for ky in range(5)])
    # conv2 height pooling: rows (n, ph) <- conv row n*10 + 2*ph + r
    ph5, n5 = np.tile(np.arange(5), bn), np.repeat(n, 5)
    R2 = np.stack([_one_hot(n5 * 10 + 2 * ph5 + r, bn * 10) for r in range(2)])
    # fc1 flatten fold: G[ph][n, n*5 + ph] = 1
    G = np.stack([_one_hot(n * 5 + ph, bn * 5) for ph in range(5)])
    return X1, R1, X2, R2, G


def _conv1_band(w1):
    """Band matrices B1 (5, 32, 168): B1[ky, ow+kx, ow*6+co] = w1[co,0,ky,kx]."""
    wk = w1[:, 0].transpose(1, 2, 0)                      # (ky, kx, co)
    i = jnp.arange(32)[:, None]
    ow = jnp.arange(28)[None, :]
    kx = i - ow                                           # (32, 28)
    valid = (kx >= 0) & (kx <= 4)
    g = wk[:, jnp.clip(kx, 0, 4), :]                      # (5, 32, 28, 6)
    g = jnp.where(valid[None, :, :, None], g, 0.0)
    return g.reshape(5, 32, 168)


def _conv2_band(w2):
    """Band matrices B2 (5, 84, 160): B2[ky, (ow+kx)*6+ci, ow*16+co] = w2[co,ci,ky,kx]."""
    wk = w2.transpose(2, 3, 1, 0)                         # (ky, kx, ci, co)
    wi = jnp.arange(14)[:, None]
    ow = jnp.arange(10)[None, :]
    kx = wi - ow                                          # (14, 10)
    valid = (kx >= 0) & (kx <= 4)
    g = wk[:, jnp.clip(kx, 0, 4), :, :]                   # (5, 14, 10, 6, 16)
    g = jnp.where(valid[None, :, :, None, None], g, 0.0)
    g = g.transpose(0, 1, 3, 2, 4)                        # (5, 14, 6, 10, 16)
    return g.reshape(5, 84, 160)


def prepare_params(p):
    """Pack PyTorch-layout params into kernel layout ONCE."""
    return {
        "w1b": _conv1_band(p["w1"]),                                   # (5, 32, 168)
        "b1t": jnp.tile(p["b1"], 14).reshape(1, 84),                   # per (pw, co)
        "w2b": _conv2_band(p["w2"]),                                   # (5, 84, 160)
        "b2t": jnp.tile(p["b2"], 5).reshape(1, 80),                    # per (pw, co)
        # fc1 columns re-ordered from PyTorch (c,h,w) flatten to (h, w, c) and
        # split per-h so the flatten is folded into 5 row-gather matmuls.
        "wf1": p["wf1"].reshape(120, 16, 5, 5).transpose(2, 3, 1, 0).reshape(5, 80, 120),
        "bf1": p["bf1"].reshape(1, 120),
        "wf2": p["wf2"].T,                                             # (120, 84)
        "bf2": p["bf2"].reshape(1, 84),
        "wf3": p["wf3"].T,                                             # (84, 10)
        "bf3": p["bf3"].reshape(1, 10),
    }


# --------------------------------- fused kernel ------------------------------------ #

def _lenet_kernel(x_ref, x1g_ref, w1b_ref, r1_ref, c1p_ref, b1_ref,
                  x2g_ref, w2b_ref, r2_ref, c2p_ref, b2_ref,
                  gf_ref, wf1_ref, bf1_ref, wf2_ref, bf2_ref, wf3_ref, bf3_ref,
                  o_ref):
    dot = lambda a, b: jnp.dot(a, b, preferred_element_type=jnp.float32)

    x = x_ref[...]                                         # (bn*32, 32), rows = (n, h)

    # conv1 (5x5, 1 -> 6): rows = (n, oh), cols = (ow*6 + co)
    c1 = dot(dot(x1g_ref[0], x), w1b_ref[0])
    for ky in range(1, 5):
        c1 = c1 + dot(dot(x1g_ref[ky], x), w1b_ref[ky])    # (bn*28, 168)

    # 2x2 / 2 maxpool via exact 0/1 selection matmuls; bias + relu after pool
    # (both commute with max).
    rmax = jnp.maximum(dot(r1_ref[0], c1), dot(r1_ref[1], c1))        # (bn*14, 168)
    s2 = jnp.maximum(dot(rmax, c1p_ref[0]), dot(rmax, c1p_ref[1]))    # (bn*14, 84)
    s2 = jnp.maximum(s2 + b1_ref[...], 0.0)

    # conv2 (5x5, 6 -> 16): rows = (n, oh), cols = (ow*16 + co)
    c3 = dot(dot(x2g_ref[0], s2), w2b_ref[0])
    for ky in range(1, 5):
        c3 = c3 + dot(dot(x2g_ref[ky], s2), w2b_ref[ky])   # (bn*10, 160)

    rmax2 = jnp.maximum(dot(r2_ref[0], c3), dot(r2_ref[1], c3))       # (bn*5, 160)
    s4 = jnp.maximum(dot(rmax2, c2p_ref[0]), dot(rmax2, c2p_ref[1]))  # (bn*5, 80)
    s4 = jnp.maximum(s4 + b2_ref[...], 0.0)

    # fc1 with the NHWC flatten folded into 5 row-gather matmuls:
    # f5 = sum_h (G_h @ s4) @ Wf1_h
    f5 = dot(dot(gf_ref[0], s4), wf1_ref[0])
    for ph in range(1, 5):
        f5 = f5 + dot(dot(gf_ref[ph], s4), wf1_ref[ph])    # (bn, 120)
    f5 = jnp.maximum(f5 + bf1_ref[...], 0.0)

    f6 = jnp.maximum(dot(f5, wf2_ref[...]) + bf2_ref[...], 0.0)        # (bn, 84)
    o_ref[...] = dot(f6, wf3_ref[...]) + bf3_ref[...]                  # (bn, 10)


# ----------------------------------- wrapper --------------------------------------- #

def net_forward(kp, x, *, block_n=None):
    """x: (N, 1, 32, 32) NCHW f32 -> (N, 10) logits. Single fused pallas_call."""
    N = x.shape[0]
    bn = N if block_n is None else block_n
    assert N % bn == 0 and (bn == N or bn % 8 == 0), "block_n must tile the batch"

    X1, R1, X2, R2, G = _batch_constants(bn)               # 0/1 gather / pool constants

    x2d = x.reshape(N * 32, 32)                            # free bitcast reshape

    def cst(a):                                            # constant operand, fetched once
        nd = a.ndim
        return pl.BlockSpec(tuple(a.shape), lambda n: (0,) * nd)

    operands = [x2d,
                X1, kp["w1b"], R1, _C1_POOL, kp["b1t"],
                X2, kp["w2b"], R2, _C2_POOL, kp["b2t"],
                G, kp["wf1"], kp["bf1"], kp["wf2"], kp["bf2"], kp["wf3"], kp["bf3"]]
    in_specs = [pl.BlockSpec((bn * 32, 32), lambda n: (n, 0))] + \
               [cst(a) for a in operands[1:]]

    return pl.pallas_call(
        _lenet_kernel,
        out_shape=jax.ShapeDtypeStruct((N, 10), jnp.float32),
        grid=(N // bn,),
        in_specs=in_specs,
        out_specs=pl.BlockSpec((bn, 10), lambda n: (n, 0)),
        compiler_params=pltpu.CompilerParams(dimension_semantics=("parallel",)),
    )(*operands)


# ----------------------------- deterministic params -------------------------------- #

def init_params(key):
    """PyTorch-style default init: U(-1/sqrt(fan_in), 1/sqrt(fan_in))."""
    def unif(k, shape, fan_in):
        bound = 1.0 / jnp.sqrt(jnp.float32(fan_in))
        return jax.random.uniform(k, shape, jnp.float32, -bound, bound)

    ks = jax.random.split(key, 10)
    return {
        "w1": unif(ks[0], (6, 1, 5, 5), 1 * 5 * 5),   "b1": unif(ks[1], (6,), 1 * 5 * 5),
        "w2": unif(ks[2], (16, 6, 5, 5), 6 * 5 * 5),  "b2": unif(ks[3], (16,), 6 * 5 * 5),
        "wf1": unif(ks[4], (120, 400), 400),          "bf1": unif(ks[5], (120,), 400),
        "wf2": unif(ks[6], (84, 120), 120),           "bf2": unif(ks[7], (84,), 120),
        "wf3": unif(ks[8], (10, 84), 84),             "bf3": unif(ks[9], (10,), 84),
    }


# ------------------------------- pure-JAX reference --------------------------------- #

def ref_forward(params, x):
    def conv(x, w, b):
        y = lax.conv_general_dilated(
            x, w, (1, 1), "VALID",
            dimension_numbers=("NCHW", "OIHW", "NCHW"),
            precision=lax.Precision.HIGHEST)
        return jax.nn.relu(y + b[None, :, None, None])

    def pool(x):
        return lax.reduce_window(x, -jnp.inf, lax.max, (1, 1, 2, 2), (1, 1, 2, 2), "VALID")

    def mm(a, b):
        return jnp.matmul(a, b, precision=lax.Precision.HIGHEST)

    c1 = conv(x, params["w1"], params["b1"])
    s2 = pool(c1)
    c3 = conv(s2, params["w2"], params["b2"])
    s4 = pool(c3)
    flat = s4.reshape(x.shape[0], -1)
    f5 = jax.nn.relu(mm(flat, params["wf1"].T) + params["bf1"])
    f6 = jax.nn.relu(mm(f5, params["wf2"].T) + params["bf2"])
    return mm(f6, params["wf3"].T) + params["bf3"]


# -------------------------------------- main ----------------------------------------- #

if __name__ == "__main__":
    key = jax.random.PRNGKey(0)
    k_params, k_x = jax.random.split(key)
    params = init_params(k_params)
    kparams = prepare_params(params)          # one-time weight packing

    # LeNet forward implies a 1x32x32 input (16*5*5 features after the conv/pool stack).
    x = jax.random.normal(k_x, (2, 1, 32, 32), dtype=jnp.float32)

    fwd = jax.jit(net_forward)
    out = jax.block_until_ready(fwd(kparams, x))
    assert out.shape == (2, 10), out.shape

    ref = jax.block_until_ready(ref_forward(params, x))
    assert jnp.allclose(out, ref, atol=1e-3, rtol=1e-3), (
        float(jnp.max(jnp.abs(out - ref))))

    print("KERNEL_OK")
</pallas_src>

<mosaic_0001>
module attributes {stable_mosaic.version = 11 : i64} {
  func.func @_lenet_kernel(%arg0: i32, %arg1: memref<64x32xf32, #tpu.memory_space<vmem>>, %arg2: memref<5x56x64xf32, #tpu.memory_space<vmem>>, %arg3: memref<5x32x168xf32, #tpu.memory_space<vmem>>, %arg4: memref<2x28x56xf32, #tpu.memory_space<vmem>>, %arg5: memref<2x168x84xf32, #tpu.memory_space<vmem>>, %arg6: memref<1x84xf32, #tpu.memory_space<vmem>>, %arg7: memref<5x20x28xf32, #tpu.memory_space<vmem>>, %arg8: memref<5x84x160xf32, #tpu.memory_space<vmem>>, %arg9: memref<2x10x20xf32, #tpu.memory_space<vmem>>, %arg10: memref<2x160x80xf32, #tpu.memory_space<vmem>>, %arg11: memref<1x80xf32, #tpu.memory_space<vmem>>, %arg12: memref<5x2x10xf32, #tpu.memory_space<vmem>>, %arg13: memref<5x80x120xf32, #tpu.memory_space<vmem>>, %arg14: memref<1x120xf32, #tpu.memory_space<vmem>>, %arg15: memref<120x84xf32, #tpu.memory_space<vmem>>, %arg16: memref<1x84xf32, #tpu.memory_space<vmem>>, %arg17: memref<84x10xf32, #tpu.memory_space<vmem>>, %arg18: memref<1x10xf32, #tpu.memory_space<vmem>>, %arg19: memref<2x10xf32, #tpu.memory_space<vmem>>) attributes {dimension_semantics = [#tpu.dimension_semantics<parallel>], iteration_bounds = array<i64: 1>, scalar_prefetch = 0 : i64, scratch_operands = 0 : i64, tpu.core_type = #tpu.core_type<tc>, window_params = [{transform_indices = @transform_0, window_bounds = array<i64: 64, 32>}, {pipeline_mode = #tpu.pipeline_mode<synchronous>, transform_indices = @transform_1, window_bounds = array<i64: 5, 56, 64>}, {pipeline_mode = #tpu.pipeline_mode<synchronous>, transform_indices = @transform_2, window_bounds = array<i64: 5, 32, 168>}, {pipeline_mode = #tpu.pipeline_mode<synchronous>, transform_indices = @transform_3, window_bounds = array<i64: 2, 28, 56>}, {pipeline_mode = #tpu.pipeline_mode<synchronous>, transform_indices = @transform_4, window_bounds = array<i64: 2, 168, 84>}, {pipeline_mode = #tpu.pipeline_mode<synchronous>, transform_indices = @transform_5, window_bounds = array<i64: 1, 84>}, {pipeline_mode = #tpu.pipeline_mode<synchronous>, transform_indices = @transform_6, window_bounds = array<i64: 5, 20, 28>}, {pipeline_mode = #tpu.pipeline_mode<synchronous>, transform_indices = @transform_7, window_bounds = array<i64: 5, 84, 160>}, {pipeline_mode = #tpu.pipeline_mode<synchronous>, transform_indices = @transform_8, window_bounds = array<i64: 2, 10, 20>}, {pipeline_mode = #tpu.pipeline_mode<synchronous>, transform_indices = @transform_9, window_bounds = array<i64: 2, 160, 80>}, {pipeline_mode = #tpu.pipeline_mode<synchronous>, transform_indices = @transform_10, window_bounds = array<i64: 1, 80>}, {pipeline_mode = #tpu.pipeline_mode<synchronous>, transform_indices = @transform_11, window_bounds = array<i64: 5, 2, 10>}, {pipeline_mode = #tpu.pipeline_mode<synchronous>, transform_indices = @transform_12, window_bounds = array<i64: 5, 80, 120>}, {pipeline_mode = #tpu.pipeline_mode<synchronous>, transform_indices = @transform_13, window_bounds = array<i64: 1, 120>}, {pipeline_mode = #tpu.pipeline_mode<synchronous>, transform_indices = @transform_14, window_bounds = array<i64: 120, 84>}, {pipeline_mode = #tpu.pipeline_mode<synchronous>, transform_indices = @transform_15, window_bounds = array<i64: 1, 84>}, {pipeline_mode = #tpu.pipeline_mode<synchronous>, transform_indices = @transform_16, window_bounds = array<i64: 84, 10>}, {pipeline_mode = #tpu.pipeline_mode<synchronous>, transform_indices = @transform_17, window_bounds = array<i64: 1, 10>}, {transform_indices = @transform_18, window_bounds = array<i64: 2, 10>}]} {
    %c0 = arith.constant 0 : index
    %c0_0 = arith.constant 0 : index
    %0 = vector.load %arg1[%c0, %c0_0] : memref<64x32xf32, #tpu.memory_space<vmem>>, vector<64x32xf32>
    %c0_1 = arith.constant 0 : index
    %c0_2 = arith.constant 0 : index
    %c0_3 = arith.constant 0 : index
    %1 = vector.load %arg2[%c0_1, %c0_2, %c0_3] : memref<5x56x64xf32, #tpu.memory_space<vmem>>, vector<1x56x64xf32>
    %2 = vector.shape_cast %1 : vector<1x56x64xf32> to vector<56x64xf32>
    %cst = arith.constant dense<0.000000e+00> : vector<56x32xf32>
    %3 = tpu.matmul %2, %0, %cst {dimension_numbers = #tpu.dot_dimension_numbers<[1], [0], [0], [1], [0, 0, 1, 1], [], []>} : vector<56x64xf32>, vector<64x32xf32>, vector<56x32xf32> -> vector<56x32xf32>
    %c0_4 = arith.constant 0 : index
    %c0_5 = arith.constant 0 : index
    %c0_6 = arith.constant 0 : index
    %4 = vector.load %arg3[%c0_4, %c0_5, %c0_6] : memref<5x32x168xf32, #tpu.memory_space<vmem>>, vector<1x32x168xf32>
    %5 = vector.shape_cast %4 : vector<1x32x168xf32> to vector<32x168xf32>
    %cst_7 = arith.constant dense<0.000000e+00> : vector<56x168xf32>
    %6 = tpu.matmul %3, %5, %cst_7 {dimension_numbers = #tpu.dot_dimension_numbers<[1], [0], [0], [1], [0, 0, 1, 1], [], []>} : vector<56x32xf32>, vector<32x168xf32>, vector<56x168xf32> -> vector<56x168xf32>
    %c1 = arith.constant 1 : index
    %c0_8 = arith.constant 0 : index
    %c0_9 = arith.constant 0 : index
    %7 = vector.load %arg2[%c1, %c0_8, %c0_9] : memref<5x56x64xf32, #tpu.memory_space<vmem>>, vector<1x56x64xf32>
    %8 = vector.shape_cast %7 : vector<1x56x64xf32> to vector<56x64xf32>
    %cst_10 = arith.constant dense<0.000000e+00> : vector<56x32xf32>
    %9 = tpu.matmul %8, %0, %cst_10 {dimension_numbers = #tpu.dot_dimension_numbers<[1], [0], [0], [1], [0, 0, 1, 1], [], []>} : vector<56x64xf32>, vector<64x32xf32>, vector<56x32xf32> -> vector<56x32xf32>
    %c1_11 = arith.constant 1 : index
    %c0_12 = arith.constant 0 : index
    %c0_13 = arith.constant 0 : index
    %10 = vector.load %arg3[%c1_11, %c0_12, %c0_13] : memref<5x32x168xf32, #tpu.memory_space<vmem>>, vector<1x32x168xf32>
    %11 = vector.shape_cast %10 : vector<1x32x168xf32> to vector<32x168xf32>
    %cst_14 = arith.constant dense<0.000000e+00> : vector<56x168xf32>
    %12 = tpu.matmul %9, %11, %cst_14 {dimension_numbers = #tpu.dot_dimension_numbers<[1], [0], [0], [1], [0, 0, 1, 1], [], []>} : vector<56x32xf32>, vector<32x168xf32>, vector<56x168xf32> -> vector<56x168xf32>
    %13 = arith.addf %6, %12 : vector<56x168xf32>
    %c2 = arith.constant 2 : index
    %c0_15 = arith.constant 0 : index
    %c0_16 = arith.constant 0 : index
    %14 = vector.load %arg2[%c2, %c0_15, %c0_16] : memref<5x56x64xf32, #tpu.memory_space<vmem>>, vector<1x56x64xf32>
    %15 = vector.shape_cast %14 : vector<1x56x64xf32> to vector<56x64xf32>
    %cst_17 = arith.constant dense<0.000000e+00> : vector<56x32xf32>
    %16 = tpu.matmul %15, %0, %cst_17 {dimension_numbers = #tpu.dot_dimension_numbers<[1], [0], [0], [1], [0, 0, 1, 1], [], []>} : vector<56x64xf32>, vector<64x32xf32>, vector<56x32xf32> -> vector<56x32xf32>
    %c2_18 = arith.constant 2 : index
    %c0_19 = arith.constant 0 : index
    %c0_20 = arith.constant 0 : index
    %17 = vector.load %arg3[%c2_18, %c0_19, %c0_20] : memref<5x32x168xf32, #tpu.memory_space<vmem>>, vector<1x32x168xf32>
    %18 = vector.shape_cast %17 : vector<1x32x168xf32> to vector<32x168xf32>
    %cst_21 = arith.constant dense<0.000000e+00> : vector<56x168xf32>
    %19 = tpu.matmul %16, %18, %cst_21 {dimension_numbers = #tpu.dot_dimension_numbers<[1], [0], [0], [1], [0, 0, 1, 1], [], []>} : vector<56x32xf32>, vector<32x168xf32>, vector<56x168xf32> -> vector<56x168xf32>
    %20 = arith.addf %13, %19 : vector<56x168xf32>
    %c3 = arith.constant 3 : index
    %c0_22 = arith.constant 0 : index
    %c0_23 = arith.constant 0 : index
    %21 = vector.load %arg2[%c3, %c0_22, %c0_23] : memref<5x56x64xf32, #tpu.memory_space<vmem>>, vector<1x56x64xf32>
    %22 = vector.shape_cast %21 : vector<1x56x64xf32> to vector<56x64xf32>
    %cst_24 = arith.constant dense<0.000000e+00> : vector<56x32xf32>
    %23 = tpu.matmul %22, %0, %cst_24 {dimension_numbers = #tpu.dot_dimension_numbers<[1], [0], [0], [1], [0, 0, 1, 1], [], []>} : vector<56x64xf32>, vector<64x32xf32>, vector<56x32xf32> -> vector<56x32xf32>
    %c3_25 = arith.constant 3 : index
    %c0_26 = arith.constant 0 : index
    %c0_27 = arith.constant 0 : index
    %24 = vector.load %arg3[%c3_25, %c0_26, %c0_27] : memref<5x32x168xf32, #tpu.memory_space<vmem>>, vector<1x32x168xf32>
    %25 = vector.shape_cast %24 : vector<1x32x168xf32> to vector<32x168xf32>
    %cst_28 = arith.constant dense<0.000000e+00> : vector<56x168xf32>
    %26 = tpu.matmul %23, %25, %cst_28 {dimension_numbers = #tpu.dot_dimension_numbers<[1], [0], [0], [1], [0, 0, 1, 1], [], []>} : vector<56x32xf32>, vector<32x168xf32>, vector<56x168xf32> -> vector<56x168xf32>
    %27 = arith.addf %20, %26 : vector<56x168xf32>
    %c4 = arith.constant 4 : index
    %c0_29 = arith.constant 0 : index
    %c0_30 = arith.constant 0 : index
    %28 = vector.load %arg2[%c4, %c0_29, %c0_30] : memref<5x56x64xf32, #tpu.memory_space<vmem>>, vector<1x56x64xf32>
    %29 = vector.shape_cast %28 : vector<1x56x64xf32> to vector<56x64xf32>
    %cst_31 = arith.constant dense<0.000000e+00> : vector<56x32xf32>
    %30 = tpu.matmul %29, %0, %cst_31 {dimension_numbers = #tpu.dot_dimension_numbers<[1], [0], [0], [1], [0, 0, 1, 1], [], []>} : vector<56x64xf32>, vector<64x32xf32>, vector<56x32xf32> -> vector<56x32xf32>
    %c4_32 = arith.constant 4 : index
    %c0_33 = arith.constant 0 : index
    %c0_34 = arith.constant 0 : index
    %31 = vector.load %arg3[%c4_32, %c0_33, %c0_34] : memref<5x32x168xf32, #tpu.memory_space<vmem>>, vector<1x32x168xf32>
    %32 = vector.shape_cast %31 : vector<1x32x168xf32> to vector<32x168xf32>
    %cst_35 = arith.constant dense<0.000000e+00> : vector<56x168xf32>
    %33 = tpu.matmul %30, %32, %cst_35 {dimension_numbers = #tpu.dot_dimension_numbers<[1], [0], [0], [1], [0, 0, 1, 1], [], []>} : vector<56x32xf32>, vector<32x168xf32>, vector<56x168xf32> -> vector<56x168xf32>
    %34 = arith.addf %27, %33 : vector<56x168xf32>
    %c0_36 = arith.constant 0 : index
    %c0_37 = arith.constant 0 : index
    %c0_38 = arith.constant 0 : index
    %35 = vector.load %arg4[%c0_36, %c0_37, %c0_38] : memref<2x28x56xf32, #tpu.memory_space<vmem>>, vector<1x28x56xf32>
    %36 = vector.shape_cast %35 : vector<1x28x56xf32> to vector<28x56xf32>
    %cst_39 = arith.constant dense<0.000000e+00> : vector<28x168xf32>
    %37 = tpu.matmul %36, %34, %cst_39 {dimension_numbers = #tpu.dot_dimension_numbers<[1], [0], [0], [1], [0, 0, 1, 1], [], []>} : vector<28x56xf32>, vector<56x168xf32>, vector<28x168xf32> -> vector<28x168xf32>
    %c1_40 = arith.constant 1 : index
    %c0_41 = arith.constant 0 : index
    %c0_42 = arith.constant 0 : index
    %38 = vector.load %arg4[%c1_40, %c0_41, %c0_42] : memref<2x28x56xf32, #tpu.memory_space<vmem>>, vector<1x28x56xf32>
    %39 = vector.shape_cast %38 : vector<1x28x56xf32> to vector<28x56xf32>
    %cst_43 = arith.constant dense<0.000000e+00> : vector<28x168xf32>
    %40 = tpu.matmul %39, %34, %cst_43 {dimension_numbers = #tpu.dot_dimension_numbers<[1], [0], [0], [1], [0, 0, 1, 1], [], []>} : vector<28x56xf32>, vector<56x168xf32>, vector<28x168xf32> -> vector<28x168xf32>
    %41 = arith.maximumf %37, %40 : vector<28x168xf32>
    %c0_44 = arith.constant 0 : index
    %c0_45 = arith.constant 0 : index
    %c0_46 = arith.constant 0 : index
    %42 = vector.load %arg5[%c0_44, %c0_45, %c0_46] : memref<2x168x84xf32, #tpu.memory_space<vmem>>, vector<1x168x84xf32>
    %43 = vector.shape_cast %42 : vector<1x168x84xf32> to vector<168x84xf32>
    %cst_47 = arith.constant dense<0.000000e+00> : vector<28x84xf32>
    %44 = tpu.matmul %41, %43, %cst_47 {dimension_numbers = #tpu.dot_dimension_numbers<[1], [0], [0], [1], [0, 0, 1, 1], [], []>} : vector<28x168xf32>, vector<168x84xf32>, vector<28x84xf32> -> vector<28x84xf32>
    %c1_48 = arith.constant 1 : index
    %c0_49 = arith.constant 0 : index
    %c0_50 = arith.constant 0 : index
    %45 = vector.load %arg5[%c1_48, %c0_49, %c0_50] : memref<2x168x84xf32, #tpu.memory_space<vmem>>, vector<1x168x84xf32>
    %46 = vector.shape_cast %45 : vector<1x168x84xf32> to vector<168x84xf32>
    %cst_51 = arith.constant dense<0.000000e+00> : vector<28x84xf32>
    %47 = tpu.matmul %41, %46, %cst_51 {dimension_numbers = #tpu.dot_dimension_numbers<[1], [0], [0], [1], [0, 0, 1, 1], [], []>} : vector<28x168xf32>, vector<168x84xf32>, vector<28x84xf32> -> vector<28x84xf32>
    %48 = arith.maximumf %44, %47 : vector<28x84xf32>
    %c0_52 = arith.constant 0 : index
    %c0_53 = arith.constant 0 : index
    %49 = vector.load %arg6[%c0_52, %c0_53] : memref<1x84xf32, #tpu.memory_space<vmem>>, vector<1x84xf32>
    %50 = vector.broadcast %49 : vector<1x84xf32> to vector<28x84xf32>
    %51 = arith.addf %48, %50 : vector<28x84xf32>
    %cst_54 = arith.constant 0.000000e+00 : f32
    %52 = vector.broadcast %cst_54 : f32 to vector<28x84xf32>
    %53 = arith.maximumf %51, %52 : vector<28x84xf32>
    %c0_55 = arith.constant 0 : index
    %c0_56 = arith.constant 0 : index
    %c0_57 = arith.constant 0 : index
    %54 = vector.load %arg7[%c0_55, %c0_56, %c0_57] : memref<5x20x28xf32, #tpu.memory_space<vmem>>, vector<1x20x28xf32>
    %55 = vector.shape_cast %54 : vector<1x20x28xf32> to vector<20x28xf32>
    %cst_58 = arith.constant dense<0.000000e+00> : vector<20x84xf32>
    %56 = tpu.matmul %55, %53, %cst_58 {dimension_numbers = #tpu.dot_dimension_numbers<[1], [0], [0], [1], [0, 0, 1, 1], [], []>} : vector<20x28xf32>, vector<28x84xf32>, vector<20x84xf32> -> vector<20x84xf32>
    %c0_59 = arith.constant 0 : index
    %c0_60 = arith.constant 0 : index
    %c0_61 = arith.constant 0 : index
    %57 = vector.load %arg8[%c0_59, %c0_60, %c0_61] : memref<5x84x160xf32, #tpu.memory_space<vmem>>, vector<1x84x160xf32>
    %58 = vector.shape_cast %57 : vector<1x84x160xf32> to vector<84x160xf32>
    %cst_62 = arith.constant dense<0.000000e+00> : vector<20x160xf32>
    %59 = tpu.matmul %56, %58, %cst_62 {dimension_numbers = #tpu.dot_dimension_numbers<[1], [0], [0], [1], [0, 0, 1, 1], [], []>} : vector<20x84xf32>, vector<84x160xf32>, vector<20x160xf32> -> vector<20x160xf32>
    %c1_63 = arith.constant 1 : index
    %c0_64 = arith.constant 0 : index
    %c0_65 = arith.constant 0 : index
    %60 = vector.load %arg7[%c1_63, %c0_64, %c0_65] : memref<5x20x28xf32, #tpu.memory_space<vmem>>, vector<1x20x28xf32>
    %61 = vector.shape_cast %60 : vector<1x20x28xf32> to vector<20x28xf32>
    %cst_66 = arith.constant dense<0.000000e+00> : vector<20x84xf32>
    %62 = tpu.matmul %61, %53, %cst_66 {dimension_numbers = #tpu.dot_dimension_numbers<[1], [0], [0], [1], [0, 0, 1, 1], [], []>} : vector<20x28xf32>, vector<28x84xf32>, vector<20x84xf32> -> vector<20x84xf32>
    %c1_67 = arith.constant 1 : index
    %c0_68 = arith.constant 0 : index
    %c0_69 = arith.constant 0 : index
    %63 = vector.load %arg8[%c1_67, %c0_68, %c0_69] : memref<5x84x160xf32, #tpu.memory_space<vmem>>, vector<1x84x160xf32>
    %64 = vector.shape_cast %63 : vector<1x84x160xf32> to vector<84x160xf32>
    %cst_70 = arith.constant dense<0.000000e+00> : vector<20x160xf32>
    %65 = tpu.matmul %62, %64, %cst_70 {dimension_numbers = #tpu.dot_dimension_numbers<[1], [0], [0], [1], [0, 0, 1, 1], [], []>} : vector<20x84xf32>, vector<84x160xf32>, vector<20x160xf32> -> vector<20x160xf32>
    %66 = arith.addf %59, %65 : vector<20x160xf32>
    %c2_71 = arith.constant 2 : index
    %c0_72 = arith.constant 0 : index
    %c0_73 = arith.constant 0 : index
    %67 = vector.load %arg7[%c2_71, %c0_72, %c0_73] : memref<5x20x28xf32, #tpu.memory_space<vmem>>, vector<1x20x28xf32>
    %68 = vector.shape_cast %67 : vector<1x20x28xf32> to vector<20x28xf32>
    %cst_74 = arith.constant dense<0.000000e+00> : vector<20x84xf32>
    %69 = tpu.matmul %68, %53, %cst_74 {dimension_numbers = #tpu.dot_dimension_numbers<[1], [0], [0], [1], [0, 0, 1, 1], [], []>} : vector<20x28xf32>, vector<28x84xf32>, vector<20x84xf32> -> vector<20x84xf32>
    %c2_75 = arith.constant 2 : index
    %c0_76 = arith.constant 0 : index
    %c0_77 = arith.constant 0 : index
    %70 = vector.load %arg8[%c2_75, %c0_76, %c0_77] : memref<5x84x160xf32, #tpu.memory_space<vmem>>, vector<1x84x160xf32>
    %71 = vector.shape_cast %70 : vector<1x84x160xf32> to vector<84x160xf32>
    %cst_78 = arith.constant dense<0.000000e+00> : vector<20x160xf32>
    %72 = tpu.matmul %69, %71, %cst_78 {dimension_numbers = #tpu.dot_dimension_numbers<[1], [0], [0], [1], [0, 0, 1, 1], [], []>} : vector<20x84xf32>, vector<84x160xf32>, vector<20x160xf32> -> vector<20x160xf32>
    %73 = arith.addf %66, %72 : vector<20x160xf32>
    %c3_79 = arith.constant 3 : index
    %c0_80 = arith.constant 0 : index
    %c0_81 = arith.constant 0 : index
    %74 = vector.load %arg7[%c3_79, %c0_80, %c0_81] : memref<5x20x28xf32, #tpu.memory_space<vmem>>, vector<1x20x28xf32>
    %75 = vector.shape_cast %74 : vector<1x20x28xf32> to vector<20x28xf32>
    %cst_82 = arith.constant dense<0.000000e+00> : vector<20x84xf32>
    %76 = tpu.matmul %75, %53, %cst_82 {dimension_numbers = #tpu.dot_dimension_numbers<[1], [0], [0], [1], [0, 0, 1, 1], [], []>} : vector<20x28xf32>, vector<28x84xf32>, vector<20x84xf32> -> vector<20x84xf32>
    %c3_83 = arith.constant 3 : index
    %c0_84 = arith.constant 0 : index
    %c0_85 = arith.constant 0 : index
    %77 = vector.load %arg8[%c3_83, %c0_84, %c0_85] : memref<5x84x160xf32, #tpu.memory_space<vmem>>, vector<1x84x160xf32>
    %78 = vector.shape_cast %77 : vector<1x84x160xf32> to vector<84x160xf32>
    %cst_86 = arith.constant dense<0.000000e+00> : vector<20x160xf32>
    %79 = tpu.matmul %76, %78, %cst_86 {dimension_numbers = #tpu.dot_dimension_numbers<[1], [0], [0], [1], [0, 0, 1, 1], [], []>} : vector<20x84xf32>, vector<84x160xf32>, vector<20x160xf32> -> vector<20x160xf32>
    %80 = arith.addf %73, %79 : vector<20x160xf32>
    %c4_87 = arith.constant 4 : index
    %c0_88 = arith.constant 0 : index
    %c0_89 = arith.constant 0 : index
    %81 = vector.load %arg7[%c4_87, %c0_88, %c0_89] : memref<5x20x28xf32, #tpu.memory_space<vmem>>, vector<1x20x28xf32>
    %82 = vector.shape_cast %81 : vector<1x20x28xf32> to vector<20x28xf32>
    %cst_90 = arith.constant dense<0.000000e+00> : vector<20x84xf32>
    %83 = tpu.matmul %82, %53, %cst_90 {dimension_numbers = #tpu.dot_dimension_numbers<[1], [0], [0], [1], [0, 0, 1, 1], [], []>} : vector<20x28xf32>, vector<28x84xf32>, vector<20x84xf32> -> vector<20x84xf32>
    %c4_91 = arith.constant 4 : index
    %c0_92 = arith.constant 0 : index
    %c0_93 = arith.constant 0 : index
    %84 = vector.load %arg8[%c4_91, %c0_92, %c0_93] : memref<5x84x160xf32, #tpu.memory_space<vmem>>, vector<1x84x160xf32>
    %85 = vector.shape_cast %84 : vector<1x84x160xf32> to vector<84x160xf32>
    %cst_94 = arith.constant dense<0.000000e+00> : vector<20x160xf32>
    %86 = tpu.matmul %83, %85, %cst_94 {dimension_numbers = #tpu.dot_dimension_numbers<[1], [0], [0], [1], [0, 0, 1, 1], [], []>} : vector<20x84xf32>, vector<84x160xf32>, vector<20x160xf32> -> vector<20x160xf32>
    %87 = arith.addf %80, %86 : vector<20x160xf32>
    %c0_95 = arith.constant 0 : index
    %c0_96 = arith.constant 0 : index
    %c0_97 = arith.constant 0 : index
    %88 = vector.load %arg9[%c0_95, %c0_96, %c0_97] : memref<2x10x20xf32, #tpu.memory_space<vmem>>, vector<1x10x20xf32>
    %89 = vector.shape_cast %88 : vector<1x10x20xf32> to vector<10x20xf32>
    %cst_98 = arith.constant dense<0.000000e+00> : vector<10x160xf32>
    %90 = tpu.matmul %89, %87, %cst_98 {dimension_numbers = #tpu.dot_dimension_numbers<[1], [0], [0], [1], [0, 0, 1, 1], [], []>} : vector<10x20xf32>, vector<20x160xf32>, vector<10x160xf32> -> vector<10x160xf32>
    %c1_99 = arith.constant 1 : index
    %c0_100 = arith.constant 0 : index
    %c0_101 = arith.constant 0 : index
    %91 = vector.load %arg9[%c1_99, %c0_100, %c0_101] : memref<2x10x20xf32, #tpu.memory_space<vmem>>, vector<1x10x20xf32>
    %92 = vector.shape_cast %91 : vector<1x10x20xf32> to vector<10x20xf32>
    %cst_102 = arith.constant dense<0.000000e+00> : vector<10x160xf32>
    %93 = tpu.matmul %92, %87, %cst_102 {dimension_numbers = #tpu.dot_dimension_numbers<[1], [0], [0], [1], [0, 0, 1, 1], [], []>} : vector<10x20xf32>, vector<20x160xf32>, vector<10x160xf32> -> vector<10x160xf32>
    %94 = arith.maximumf %90, %93 : vector<10x160xf32>
    %c0_103 = arith.constant 0 : index
    %c0_104 = arith.constant 0 : index
    %c0_105 = arith.constant 0 : index
    %95 = vector.load %arg10[%c0_103, %c0_104, %c0_105] : memref<2x160x80xf32, #tpu.memory_space<vmem>>, vector<1x160x80xf32>
    %96 = vector.shape_cast %95 : vector<1x160x80xf32> to vector<160x80xf32>
    %cst_106 = arith.constant dense<0.000000e+00> : vector<10x80xf32>
    %97 = tpu.matmul %94, %96, %cst_106 {dimension_numbers = #tpu.dot_dimension_numbers<[1], [0], [0], [1], [0, 0, 1, 1], [], []>} : vector<10x160xf32>, vector<160x80xf32>, vector<10x80xf32> -> vector<10x80xf32>
    %c1_107 = arith.constant 1 : index
    %c0_108 = arith.constant 0 : index
    %c0_109 = arith.constant 0 : index
    %98 = vector.load %arg10[%c1_107, %c0_108, %c0_109] : memref<2x160x80xf32, #tpu.memory_space<vmem>>, vector<1x160x80xf32>
    %99 = vector.shape_cast %98 : vector<1x160x80xf32> to vector<160x80xf32>
    %cst_110 = arith.constant dense<0.000000e+00> : vector<10x80xf32>
    %100 = tpu.matmul %94, %99, %cst_110 {dimension_numbers = #tpu.dot_dimension_numbers<[1], [0], [0], [1], [0, 0, 1, 1], [], []>} : vector<10x160xf32>, vector<160x80xf32>, vector<10x80xf32> -> vector<10x80xf32>
    %101 = arith.maximumf %97, %100 : vector<10x80xf32>
    %c0_111 = arith.constant 0 : index
    %c0_112 = arith.constant 0 : index
    %102 = vector.load %arg11[%c0_111, %c0_112] : memref<1x80xf32, #tpu.memory_space<vmem>>, vector<1x80xf32>
    %103 = vector.broadcast %102 : vector<1x80xf32> to vector<10x80xf32>
    %104 = arith.addf %101, %103 : vector<10x80xf32>
    %cst_113 = arith.constant 0.000000e+00 : f32
    %105 = vector.broadcast %cst_113 : f32 to vector<10x80xf32>
    %106 = arith.maximumf %104, %105 : vector<10x80xf32>
    %c0_114 = arith.constant 0 : index
    %c0_115 = arith.constant 0 : index
    %c0_116 = arith.constant 0 : index
    %107 = vector.load %arg12[%c0_114, %c0_115, %c0_116] : memref<5x2x10xf32, #tpu.memory_space<vmem>>, vector<1x2x10xf32>
    %108 = vector.shape_cast %107 : vector<1x2x10xf32> to vector<2x10xf32>
    %cst_117 = arith.constant dense<0.000000e+00> : vector<2x80xf32>
    %109 = tpu.matmul %108, %106, %cst_117 {dimension_numbers = #tpu.dot_dimension_numbers<[1], [0], [0], [1], [0, 0, 1, 1], [], []>} : vector<2x10xf32>, vector<10x80xf32>, vector<2x80xf32> -> vector<2x80xf32>
    %c0_118 = arith.constant 0 : index
    %c0_119 = arith.constant 0 : index
    %c0_120 = arith.constant 0 : index
    %110 = vector.load %arg13[%c0_118, %c0_119, %c0_120] : memref<5x80x120xf32, #tpu.memory_space<vmem>>, vector<1x80x120xf32>
    %111 = vector.shape_cast %110 : vector<1x80x120xf32> to vector<80x120xf32>
    %cst_121 = arith.constant dense<0.000000e+00> : vector<2x120xf32>
    %112 = tpu.matmul %109, %111, %cst_121 {dimension_numbers = #tpu.dot_dimension_numbers<[1], [0], [0], [1], [0, 0, 1, 1], [], []>} : vector<2x80xf32>, vector<80x120xf32>, vector<2x120xf32> -> vector<2x120xf32>
    %c1_122 = arith.constant 1 : index
    %c0_123 = arith.constant 0 : index
    %c0_124 = arith.constant 0 : index
    %113 = vector.load %arg12[%c1_122, %c0_123, %c0_124] : memref<5x2x10xf32, #tpu.memory_space<vmem>>, vector<1x2x10xf32>
    %114 = vector.shape_cast %113 : vector<1x2x10xf32> to vector<2x10xf32>
    %cst_125 = arith.constant dense<0.000000e+00> : vector<2x80xf32>
    %115 = tpu.matmul %114, %106, %cst_125 {dimension_numbers = #tpu.dot_dimension_numbers<[1], [0], [0], [1], [0, 0, 1, 1], [], []>} : vector<2x10xf32>, vector<10x80xf32>, vector<2x80xf32> -> vector<2x80xf32>
    %c1_126 = arith.constant 1 : index
    %c0_127 = arith.constant 0 : index
    %c0_128 = arith.constant 0 : index
    %116 = vector.load %arg13[%c1_126, %c0_127, %c0_128] : memref<5x80x120xf32, #tpu.memory_space<vmem>>, vector<1x80x120xf32>
    %117 = vector.shape_cast %116 : vector<1x80x120xf32> to vector<80x120xf32>
    %cst_129 = arith.constant dense<0.000000e+00> : vector<2x120xf32>
    %118 = tpu.matmul %115, %117, %cst_129 {dimension_numbers = #tpu.dot_dimension_numbers<[1], [0], [0], [1], [0, 0, 1, 1], [], []>} : vector<2x80xf32>, vector<80x120xf32>, vector<2x120xf32> -> vector<2x120xf32>
    %119 = arith.addf %112, %118 : vector<2x120xf32>
    %c2_130 = arith.constant 2 : index
    %c0_131 = arith.constant 0 : index
    %c0_132 = arith.constant 0 : index
    %120 = vector.load %arg12[%c2_130, %c0_131, %c0_132] : memref<5x2x10xf32, #tpu.memory_space<vmem>>, vector<1x2x10xf32>
    %121 = vector.shape_cast %120 : vector<1x2x10xf32> to vector<2x10xf32>
    %cst_133 = arith.constant dense<0.000000e+00> : vector<2x80xf32>
    %122 = tpu.matmul %121, %106, %cst_133 {dimension_numbers = #tpu.dot_dimension_numbers<[1], [0], [0], [1], [0, 0, 1, 1], [], []>} : vector<2x10xf32>, vector<10x80xf32>, vector<2x80xf32> -> vector<2x80xf32>
    %c2_134 = arith.constant 2 : index
    %c0_135 = arith.constant 0 : index
    %c0_136 = arith.constant 0 : index
    %123 = vector.load %arg13[%c2_134, %c0_135, %c0_136] : memref<5x80x120xf32, #tpu.memory_space<vmem>>, vector<1x80x120xf32>
    %124 = vector.shape_cast %123 : vector<1x80x120xf32> to vector<80x120xf32>
    %cst_137 = arith.constant dense<0.000000e+00> : vector<2x120xf32>
    %125 = tpu.matmul %122, %124, %cst_137 {dimension_numbers = #tpu.dot_dimension_numbers<[1], [0], [0], [1], [0, 0, 1, 1], [], []>} : vector<2x80xf32>, vector<80x120xf32>, vector<2x120xf32> -> vector<2x120xf32>
    %126 = arith.addf %119, %125 : vector<2x120xf32>
    %c3_138 = arith.constant 3 : index
    %c0_139 = arith.constant 0 : index
    %c0_140 = arith.constant 0 : index
    %127 = vector.load %arg12[%c3_138, %c0_139, %c0_140] : memref<5x2x10xf32, #tpu.memory_space<vmem>>, vector<1x2x10xf32>
    %128 = vector.shape_cast %127 : vector<1x2x10xf32> to vector<2x10xf32>
    %cst_141 = arith.constant dense<0.000000e+00> : vector<2x80xf32>
    %129 = tpu.matmul %128, %106, %cst_141 {dimension_numbers = #tpu.dot_dimension_numbers<[1], [0], [0], [1], [0, 0, 1, 1], [], []>} : vector<2x10xf32>, vector<10x80xf32>, vector<2x80xf32> -> vector<2x80xf32>
    %c3_142 = arith.constant 3 : index
    %c0_143 = arith.constant 0 : index
    %c0_144 = arith.constant 0 : index
    %130 = vector.load %arg13[%c3_142, %c0_143, %c0_144] : memref<5x80x120xf32, #tpu.memory_space<vmem>>, vector<1x80x120xf32>
    %131 = vector.shape_cast %130 : vector<1x80x120xf32> to vector<80x120xf32>
    %cst_145 = arith.constant dense<0.000000e+00> : vector<2x120xf32>
    %132 = tpu.matmul %129, %131, %cst_145 {dimension_numbers = #tpu.dot_dimension_numbers<[1], [0], [0], [1], [0, 0, 1, 1], [], []>} : vector<2x80xf32>, vector<80x120xf32>, vector<2x120xf32> -> vector<2x120xf32>
    %133 = arith.addf %126, %132 : vector<2x120xf32>
    %c4_146 = arith.constant 4 : index
    %c0_147 = arith.constant 0 : index
    %c0_148 = arith.constant 0 : index
    %134 = vector.load %arg12[%c4_146, %c0_147, %c0_148] : memref<5x2x10xf32, #tpu.memory_space<vmem>>, vector<1x2x10xf32>
    %135 = vector.shape_cast %134 : vector<1x2x10xf32> to vector<2x10xf32>
    %cst_149 = arith.constant dense<0.000000e+00> : vector<2x80xf32>
    %136 = tpu.matmul %135, %106, %cst_149 {dimension_numbers = #tpu.dot_dimension_numbers<[1], [0], [0], [1], [0, 0, 1, 1], [], []>} : vector<2x10xf32>, vector<10x80xf32>, vector<2x80xf32> -> vector<2x80xf32>
    %c4_150 = arith.constant 4 : index
    %c0_151 = arith.constant 0 : index
    %c0_152 = arith.constant 0 : index
    %137 = vector.load %arg13[%c4_150, %c0_151, %c0_152] : memref<5x80x120xf32, #tpu.memory_space<vmem>>, vector<1x80x120xf32>
    %138 = vector.shape_cast %137 : vector<1x80x120xf32> to vector<80x120xf32>
    %cst_153 = arith.constant dense<0.000000e+00> : vector<2x120xf32>
    %139 = tpu.matmul %136, %138, %cst_153 {dimension_numbers = #tpu.dot_dimension_numbers<[1], [0], [0], [1], [0, 0, 1, 1], [], []>} : vector<2x80xf32>, vector<80x120xf32>, vector<2x120xf32> -> vector<2x120xf32>
    %140 = arith.addf %133, %139 : vector<2x120xf32>
    %c0_154 = arith.constant 0 : index
    %c0_155 = arith.constant 0 : index
    %141 = vector.load %arg14[%c0_154, %c0_155] : memref<1x120xf32, #tpu.memory_space<vmem>>, vector<1x120xf32>
    %142 = vector.broadcast %141 : vector<1x120xf32> to vector<2x120xf32>
    %143 = arith.addf %140, %142 : vector<2x120xf32>
    %cst_156 = arith.constant 0.000000e+00 : f32
    %144 = vector.broadcast %cst_156 : f32 to vector<2x120xf32>
    %145 = arith.maximumf %143, %144 : vector<2x120xf32>
    %c0_157 = arith.constant 0 : index
    %c0_158 = arith.constant 0 : index
    %146 = vector.load %arg15[%c0_157, %c0_158] : memref<120x84xf32, #tpu.memory_space<vmem>>, vector<120x84xf32>
    %cst_159 = arith.constant dense<0.000000e+00> : vector<2x84xf32>
    %147 = tpu.matmul %145, %146, %cst_159 {dimension_numbers = #tpu.dot_dimension_numbers<[1], [0], [0], [1], [0, 0, 1, 1], [], []>} : vector<2x120xf32>, vector<120x84xf32>, vector<2x84xf32> -> vector<2x84xf32>
    %c0_160 = arith.constant 0 : index
    %c0_161 = arith.constant 0 : index
    %148 = vector.load %arg16[%c0_160, %c0_161] : memref<1x84xf32, #tpu.memory_space<vmem>>, vector<1x84xf32>
    %149 = vector.broadcast %148 : vector<1x84xf32> to vector<2x84xf32>
    %150 = arith.addf %147, %149 : vector<2x84xf32>
    %cst_162 = arith.constant 0.000000e+00 : f32
    %151 = vector.broadcast %cst_162 : f32 to vector<2x84xf32>
    %152 = arith.maximumf %150, %151 : vector<2x84xf32>
    %c0_163 = arith.constant 0 : index
    %c0_164 = arith.constant 0 : index
    %153 = vector.load %arg17[%c0_163, %c0_164] : memref<84x10xf32, #tpu.memory_space<vmem>>, vector<84x10xf32>
    %cst_165 = arith.constant dense<0.000000e+00> : vector<2x10xf32>
    %154 = tpu.matmul %152, %153, %cst_165 {dimension_numbers = #tpu.dot_dimension_numbers<[1], [0], [0], [1], [0, 0, 1, 1], [], []>} : vector<2x84xf32>, vector<84x10xf32>, vector<2x10xf32> -> vector<2x10xf32>
    %c0_166 = arith.constant 0 : index
    %c0_167 = arith.constant 0 : index
    %155 = vector.load %arg18[%c0_166, %c0_167] : memref<1x10xf32, #tpu.memory_space<vmem>>, vector<1x10xf32>
    %156 = vector.broadcast %155 : vector<1x10xf32> to vector<2x10xf32>
    %157 = arith.addf %154, %156 : vector<2x10xf32>
    %c0_168 = arith.constant 0 : index
    %c0_169 = arith.constant 0 : index
    %158 = vector.load %arg19[%c0_168, %c0_169] : memref<2x10xf32, #tpu.memory_space<vmem>>, vector<2x10xf32>
    tpu.vector_store %arg19[%c0_168, %c0_169], %157 {strides = array<i32>} : memref<2x10xf32, #tpu.memory_space<vmem>>, vector<2x10xf32>,
    return
  }
  func.func @transform_0(%arg0: i32) -> (i32, i32) {
    %c0_i32 = arith.constant 0 : i32
    %c0_i32_0 = arith.constant 0 : i32
    return %arg0, %c0_i32 : i32, i32
  }
  func.func @transform_1(%arg0: i32) -> (i32, i32, i32) {
    %c0_i32 = arith.constant 0 : i32
    %c0_i32_0 = arith.constant 0 : i32
    %c0_i32_1 = arith.constant 0 : i32
    %c0_i32_2 = arith.constant 0 : i32
    return %c0_i32, %c0_i32_0, %c0_i32_1 : i32, i32, i32
  }
  func.func @transform_2(%arg0: i32) -> (i32, i32, i32) {
    %c0_i32 = arith.constant 0 : i32
    %c0_i32_0 = arith.constant 0 : i32
    %c0_i32_1 = arith.constant 0 : i32
    %c0_i32_2 = arith.constant 0 : i32
    return %c0_i32, %c0_i32_0, %c0_i32_1 : i32, i32, i32
  }
  func.func @transform_3(%arg0: i32) -> (i32, i32, i32) {
    %c0_i32 = arith.constant 0 : i32
    %c0_i32_0 = arith.constant 0 : i32
    %c0_i32_1 = arith.constant 0 : i32
    %c0_i32_2 = arith.constant 0 : i32
    return %c0_i32, %c0_i32_0, %c0_i32_1 : i32, i32, i32
  }
  func.func @transform_4(%arg0: i32) -> (i32, i32, i32) {
    %c0_i32 = arith.constant 0 : i32
    %c0_i32_0 = arith.constant 0 : i32
    %c0_i32_1 = arith.constant 0 : i32
    %c0_i32_2 = arith.constant 0 : i32
    return %c0_i32, %c0_i32_0, %c0_i32_1 : i32, i32, i32
  }
  func.func @transform_5(%arg0: i32) -> (i32, i32) {
    %c0_i32 = arith.constant 0 : i32
    %c0_i32_0 = arith.constant 0 : i32
    %c0_i32_1 = arith.constant 0 : i32
    return %c0_i32, %c0_i32_0 : i32, i32
  }
  func.func @transform_6(%arg0: i32) -> (i32, i32, i32) {
    %c0_i32 = arith.constant 0 : i32
    %c0_i32_0 = arith.constant 0 : i32
    %c0_i32_1 = arith.constant 0 : i32
    %c0_i32_2 = arith.constant 0 : i32
    return %c0_i32, %c0_i32_0, %c0_i32_1 : i32, i32, i32
  }
  func.func @transform_7(%arg0: i32) -> (i32, i32, i32) {
    %c0_i32 = arith.constant 0 : i32
    %c0_i32_0 = arith.constant 0 : i32
    %c0_i32_1 = arith.constant 0 : i32
    %c0_i32_2 = arith.constant 0 : i32
    return %c0_i32, %c0_i32_0, %c0_i32_1 : i32, i32, i32
  }
  func.func @transform_8(%arg0: i32) -> (i32, i32, i32) {
    %c0_i32 = arith.constant 0 : i32
    %c0_i32_0 = arith.constant 0 : i32
    %c0_i32_1 = arith.constant 0 : i32
    %c0_i32_2 = arith.constant 0 : i32
    return %c0_i32, %c0_i32_0, %c0_i32_1 : i32, i32, i32
  }
  func.func @transform_9(%arg0: i32) -> (i32, i32, i32) {
    %c0_i32 = arith.constant 0 : i32
    %c0_i32_0 = arith.constant 0 : i32
    %c0_i32_1 = arith.constant 0 : i32
    %c0_i32_2 = arith.constant 0 : i32
    return %c0_i32, %c0_i32_0, %c0_i32_1 : i32, i32, i32
  }
  func.func @transform_10(%arg0: i32) -> (i32, i32) {
    %c0_i32 = arith.constant 0 : i32
    %c0_i32_0 = arith.constant 0 : i32
    %c0_i32_1 = arith.constant 0 : i32
    return %c0_i32, %c0_i32_0 : i32, i32
  }
  func.func @transform_11(%arg0: i32) -> (i32, i32, i32) {
    %c0_i32 = arith.constant 0 : i32
    %c0_i32_0 = arith.constant 0 : i32
    %c0_i32_1 = arith.constant 0 : i32
    %c0_i32_2 = arith.constant 0 : i32
    return %c0_i32, %c0_i32_0, %c0_i32_1 : i32, i32, i32
  }
  func.func @transform_12(%arg0: i32) -> (i32, i32, i32) {
    %c0_i32 = arith.constant 0 : i32
    %c0_i32_0 = arith.constant 0 : i32
    %c0_i32_1 = arith.constant 0 : i32
    %c0_i32_2 = arith.constant 0 : i32
    return %c0_i32, %c0_i32_0, %c0_i32_1 : i32, i32, i32
  }
  func.func @transform_13(%arg0: i32) -> (i32, i32) {
    %c0_i32 = arith.constant 0 : i32
    %c0_i32_0 = arith.constant 0 : i32
    %c0_i32_1 = arith.constant 0 : i32
    return %c0_i32, %c0_i32_0 : i32, i32
  }
  func.func @transform_14(%arg0: i32) -> (i32, i32) {
    %c0_i32 = arith.constant 0 : i32
    %c0_i32_0 = arith.constant 0 : i32
    %c0_i32_1 = arith.constant 0 : i32
    return %c0_i32, %c0_i32_0 : i32, i32
  }
  func.func @transform_15(%arg0: i32) -> (i32, i32) {
    %c0_i32 = arith.constant 0 : i32
    %c0_i32_0 = arith.constant 0 : i32
    %c0_i32_1 = arith.constant 0 : i32
    return %c0_i32, %c0_i32_0 : i32, i32
  }
  func.func @transform_16(%arg0: i32) -> (i32, i32) {
    %c0_i32 = arith.constant 0 : i32
    %c0_i32_0 = arith.constant 0 : i32
    %c0_i32_1 = arith.constant 0 : i32
    return %c0_i32, %c0_i32_0 : i32, i32
  }
  func.func @transform_17(%arg0: i32) -> (i32, i32) {
    %c0_i32 = arith.constant 0 : i32
    %c0_i32_0 = arith.constant 0 : i32
    %c0_i32_1 = arith.constant 0 : i32
    return %c0_i32, %c0_i32_0 : i32, i32
  }
  func.func @transform_18(%arg0: i32) -> (i32, i32) {
    %c0_i32 = arith.constant 0 : i32
    %c0_i32_0 = arith.constant 0 : i32
    return %arg0, %c0_i32 : i32, i32
  }
}

</mosaic_0001>

<llo_original>
// kernel: net_forward.1
$region0: #{net_forward.1}
  #allocation0 [shape = 'u32[]', space=smem, size = 0x4, offset = 0x4, fixed_abs, tag = 'smem constant byte address 0x4 - core index']
  #allocation1 [shape = 'u32[144,128]{1,0:T(1,128)}', space=vmem, size = 0x12000, scoped, tag = 'internal scratch']
  %s0 = inlined_call_operand.vmem [shape: f32[64,32], index: 0, kind: input, shape index: {}]
  %s1 = inlined_call_operand.vmem [shape: f32[5,56,64], index: 1, kind: input, shape index: {}]
  %s2 = inlined_call_operand.vmem [shape: f32[5,32,168], index: 2, kind: input, shape index: {}]
  %s3 = inlined_call_operand.vmem [shape: f32[2,28,56], index: 3, kind: input, shape index: {}]
  %s4 = inlined_call_operand.vmem [shape: f32[2,168,84], index: 4, kind: input, shape index: {}]
  %s5 = inlined_call_operand.vmem [shape: f32[1,84], index: 5, kind: input, shape index: {}]
  %s6 = inlined_call_operand.vmem [shape: f32[5,20,28], index: 6, kind: input, shape index: {}]
  %s7 = inlined_call_operand.vmem [shape: f32[5,84,160], index: 7, kind: input, shape index: {}]
  %s8 = inlined_call_operand.vmem [shape: f32[2,10,20], index: 8, kind: input, shape index: {}]
  %s9 = inlined_call_operand.vmem [shape: f32[2,160,80], index: 9, kind: input, shape index: {}]
  %s10 = inlined_call_operand.vmem [shape: f32[1,80], index: 10, kind: input, shape index: {}]
  %s11 = inlined_call_operand.vmem [shape: f32[5,2,10], index: 11, kind: input, shape index: {}]
  %s12 = inlined_call_operand.vmem [shape: f32[5,80,120], index: 12, kind: input, shape index: {}]
  %s13 = inlined_call_operand.hbm [shape: f32[1,120], index: 13, kind: input, shape index: {}]
  %s14 = inlined_call_operand.vmem [shape: f32[120,84], index: 14, kind: input, shape index: {}]
  %s15 = inlined_call_operand.hbm [shape: f32[1,84], index: 15, kind: input, shape index: {}]
  %s16 = inlined_call_operand.vmem [shape: f32[84,10], index: 16, kind: input, shape index: {}]
  %s17 = inlined_call_operand.hbm [shape: f32[1,10], index: 17, kind: input, shape index: {}]
  %s18 = inlined_call_operand.hbm [shape: f32[2,10], index: 18, kind: output, shape index: {}]
  %s19 = sld [smem:[#allocation0]]
  $region94: #{net_forward.1} parent=0
    _
  %s21 = ssub.s32 1, %s19
  %s22 = scalar_select 0, %s21, %s19
  $region1: #{net_forward.1} parent=0
    #allocation2 [shape = 'u8[512]{0}', space=vmem, size = 0x400, scoped, tag = 'input window, operand 13, single buffered']
    #allocation3 [shape = 's32[1]{0}', space=sflag, size = 0x4, scoped, tag = 'scoped memory for net_forward.1']
    #allocation4 [shape = 's32[1]{0}', space=sflag, size = 0x4, scoped, tag = 'scoped memory for net_forward.1']
    #allocation5 [shape = 'u8[512]{0}', space=vmem, size = 0x400, scoped, tag = 'input window, operand 15, single buffered']
    #allocation6 [shape = 's32[1]{0}', space=sflag, size = 0x4, scoped, tag = 'scoped memory for net_forward.1']
    #allocation7 [shape = 'u8[512]{0}', space=vmem, size = 0x400, scoped, tag = 'input window, operand 17, single buffered']
    #allocation8 [shape = 'u8[1024]{0}', space=vmem, size = 0x400, scoped, tag = 'output window, operand 0, single buffered']
    %23 = vsyncpa [#allocation3], 0
    %24 = vsyncpa [#allocation6], 0
    %25 = vsyncpa [#allocation4], 0
    // Predicated region
    $region2: #{net_forward.1} parent=1 // pred_check
      _
    $region3: #{net_forward.1} parent=1 // pred_check_branch
      %27 = sbr.rel (0) target = $region5
    $region4: #{net_forward.1} parent=1 // pred_region
      _
    $region5: #{net_forward.1} parent=1 // pred_fallthru
      _
    // Predicated region
    $region6: #{net_forward.1} parent=1 // pred_check
      _
    $region7: #{net_forward.1} parent=1 // pred_check_branch
      %29 = sbr.rel (0) target = $region9
    $region8: #{net_forward.1} parent=1 // pred_region
      _
    $region9: #{net_forward.1} parent=1 // pred_fallthru
      _
    // Predicated region
    $region10: #{net_forward.1} parent=1 // pred_check
      _
    $region11: #{net_forward.1} parent=1 // pred_check_branch
      %31 = sbr.rel (0) target = $region13
    $region12: #{net_forward.1} parent=1 // pred_region
      _
    $region13: #{net_forward.1} parent=1 // pred_fallthru
      _
    // Predicated region
    $region14: #{net_forward.1} parent=1 // pred_check
      _
    $region15: #{net_forward.1} parent=1 // pred_check_branch
      %33 = sbr.rel (0) target = $region17
    $region16: #{net_forward.1} parent=1 // pred_region
      _
    $region17: #{net_forward.1} parent=1 // pred_fallthru
      _
    // Predicated region
    $region18: #{net_forward.1} parent=1 // pred_check
      _
    $region19: #{net_forward.1} parent=1 // pred_check_branch
      %35 = sbr.rel (0) target = $region21
    $region20: #{net_forward.1} parent=1 // pred_region
      _
    $region21: #{net_forward.1} parent=1 // pred_fallthru
      _
    // Predicated region
    $region22: #{net_forward.1} parent=1 // pred_check
      _
    $region23: #{net_forward.1} parent=1 // pred_check_branch
      %37 = sbr.rel (0) target = $region25
    $region24: #{net_forward.1} parent=1 // pred_region
      _
    $region25: #{net_forward.1} parent=1 // pred_fallthru
      _
    // Predicated region
    $region26: #{net_forward.1} parent=1 // pred_check
      _
    $region27: #{net_forward.1} parent=1 // pred_check_branch
      %39 = sbr.rel (0) target = $region29
    $region28: #{net_forward.1} parent=1 // pred_region
      _
    $region29: #{net_forward.1} parent=1 // pred_fallthru
      _
    // Predicated region
    $region30: #{net_forward.1} parent=1 // pred_check
      _
    $region31: #{net_forward.1} parent=1 // pred_check_branch
      %41 = sbr.rel (0) target = $region33
    $region32: #{net_forward.1} parent=1 // pred_region
      _
    $region33: #{net_forward.1} parent=1 // pred_fallthru
      _
    // Predicated region
    $region34: #{net_forward.1} parent=1 // pred_check
      _
    $region35: #{net_forward.1} parent=1 // pred_check_branch
      %43 = sbr.rel (0) target = $region37
    $region36: #{net_forward.1} parent=1 // pred_region
      _
    $region37: #{net_forward.1} parent=1 // pred_fallthru
      _
    // Predicated region
    $region38: #{net_forward.1} parent=1 // pred_check
      _
    $region39: #{net_forward.1} parent=1 // pred_check_branch
      %45 = sbr.rel (0) target = $region41
    $region40: #{net_forward.1} parent=1 // pred_region
      _
    $region41: #{net_forward.1} parent=1 // pred_fallthru
      _
    // Predicated region
    $region42: #{net_forward.1} parent=1 // pred_check
      _
    $region43: #{net_forward.1} parent=1 // pred_check_branch
      %47 = sbr.rel (0) target = $region45
    $region44: #{net_forward.1} parent=1 // pred_region
      _
    $region45: #{net_forward.1} parent=1 // pred_fallthru
      _
    // Predicated region
    $region46: #{net_forward.1} parent=1 // pred_check
      _
    $region47: #{net_forward.1} parent=1 // pred_check_branch
      %49 = sbr.rel (0) target = $region49
    $region48: #{net_forward.1} parent=1 // pred_region
      _
    $region49: #{net_forward.1} parent=1 // pred_fallthru
      _
    // Predicated region
    $region50: #{net_forward.1} parent=1 // pred_check
      _
    $region51: #{net_forward.1} parent=1 // pred_check_branch
      %51 = sbr.rel (0) target = $region53
    $region52: #{net_forward.1} parent=1 // pred_region
      _
    $region53: #{net_forward.1} parent=1 // pred_fallthru
      _
    // Predicated region
    $region54: #{net_forward.1} parent=1 // pred_check
      _
    $region55: #{net_forward.1} parent=1 // pred_check_branch
      %53 = sbr.rel (0) target = $region57
    $region56: #{net_forward.1} parent=1 // pred_region
      %s55 = ssub.s32 16, 16
      %56 = vsyncadd [#allocation3], %s55
      %s58 = sshll.u32 [#allocation2], 4
      %s59 = int_to_ptr.vmem [resolvable:$true] %s58
      %61 = dma.hbm_to_vmem [thread:$0]  %s13, 16, %s59, [#allocation3]
    $region57: #{net_forward.1} parent=1 // pred_fallthru
      _
    // Predicated region
    $region58: #{net_forward.1} parent=1 // pred_check
      _
    $region59: #{net_forward.1} parent=1 // pred_check_branch
      %63 = sbr.rel (0) target = $region61
    $region60: #{net_forward.1} parent=1 // pred_region
      _
    $region61: #{net_forward.1} parent=1 // pred_fallthru
      _
    // Predicated region
    $region62: #{net_forward.1} parent=1 // pred_check
      _
    $region63: #{net_forward.1} parent=1 // pred_check_branch
      %65 = sbr.rel (0) target = $region65
    $region64: #{net_forward.1} parent=1 // pred_region
      %s67 = ssub.s32 16, 16
      %68 = vsyncadd [#allocation6], %s67
      %s70 = sshll.u32 [#allocation5], 4
      %s71 = int_to_ptr.vmem [resolvable:$true] %s70
      %73 = dma.hbm_to_vmem [thread:$0]  %s15, 16, %s71, [#allocation6]
    $region65: #{net_forward.1} parent=1 // pred_fallthru
      _
    // Predicated region
    $region66: #{net_forward.1} parent=1 // pred_check
      _
    $region67: #{net_forward.1} parent=1 // pred_check_branch
      %75 = sbr.rel (0) target = $region69
    $region68: #{net_forward.1} parent=1 // pred_region
      _
    $region69: #{net_forward.1} parent=1 // pred_fallthru
      _
    // Predicated region
    $region70: #{net_forward.1} parent=1 // pred_check
      _
    $region71: #{net_forward.1} parent=1 // pred_check_branch
      %77 = sbr.rel (0) target = $region73
    $region72: #{net_forward.1} parent=1 // pred_region
      %s79 = ssub.s32 16, 16
      %80 = vsyncadd [#allocation6], %s79
      %s82 = sshll.u32 [#allocation7], 4
      %s83 = int_to_ptr.vmem [resolvable:$true] %s82
      %85 = dma.hbm_to_vmem [thread:$0]  %s17, 16, %s83, [#allocation6]
    $region73: #{net_forward.1} parent=1 // pred_fallthru
      _
    // Predicated region
    $region74: #{net_forward.1} parent=1 // pred_check
      _
    $region75: #{net_forward.1} parent=1 // pred_check_branch
      %87 = sbr.rel (0) target = $region77
    $region76: #{net_forward.1} parent=1 // pred_region
      %88 = dma.done [#allocation3], 16
    $region77: #{net_forward.1} parent=1 // pred_fallthru
      _
    // Predicated region
    $region78: #{net_forward.1} parent=1 // pred_check
      _
    $region79: #{net_forward.1} parent=1 // pred_check_branch
      %90 = sbr.rel (0) target = $region81
    $region80: #{net_forward.1} parent=1 // pred_region
      %91 = dma.done [#allocation6], 16
    $region81: #{net_forward.1} parent=1 // pred_fallthru
      _
    // Predicated region
    $region82: #{net_forward.1} parent=1 // pred_check
      _
    $region83: #{net_forward.1} parent=1 // pred_check_branch
      %93 = sbr.rel (0) target = $region85
    $region84: #{net_forward.1} parent=1 // pred_region
      %94 = dma.done [#allocation6], 16
    $region85: #{net_forward.1} parent=1 // pred_fallthru
      _
    %v95 = vld [vmem:[%s0] sm:$0xff]
    %v96 = vld [vmem:[%s0 + $0x8] sm:$0xff]
    %v97 = vld [vmem:[%s0 + $0x10] sm:$0xff]
    %v98 = vld [vmem:[%s0 + $0x18] sm:$0xff]
    %v99 = vld [vmem:[%s0 + $0x20] sm:$0xff]
    %v100 = vld [vmem:[%s0 + $0x28] sm:$0xff]
    %v101 = vld [vmem:[%s0 + $0x30] sm:$0xff]
    %v102 = vld [vmem:[%s0 + $0x38] sm:$0xff]
    %v103 = vld [vmem:[%s1] sm:$0xff]
    %v104 = vld [vmem:[%s1 + $0x8] sm:$0xff]
    %v105 = vld [vmem:[%s1 + $0x10] sm:$0xff]
    %v106 = vld [vmem:[%s1 + $0x18] sm:$0xff]
    %v107 = vld [vmem:[%s1 + $0x20] sm:$0xff]
    %v108 = vld [vmem:[%s1 + $0x28] sm:$0xff]
    %v109 = vld [vmem:[%s1 + $0x30] sm:$0xff]
    %vm110 = vcmask 523264
    %v112 = vsel %vm110, %v103, 0
    %v115 = vsel %vm110, %v104, 0
    %v118 = vsel %vm110, %v105, 0
    %v121 = vsel %vm110, %v106, 0
    %v124 = vsel %vm110, %v107, 0
    %v127 = vsel %vm110, %v108, 0
    %v130 = vsel %vm110, %v109, 0
    %132 = vmatprep.subr.mxu0 0.0
    %133 = vmatpush1.msra.mxu0 %v95
    %134 = vmatprep.subr.mxu0 0.0
    %135 = vmatpush1.msra.mxu0 %v96
    %136 = vmatprep.subr.mxu0 0.0
    %137 = vmatpush1.msra.mxu0 %v97
    %138 = vmatprep.subr.mxu0 0.0
    %139 = vmatpush1.msra.mxu0 %v98
    %140 = vmatprep.subr.mxu0 0.0
    %141 = vmatpush1.msra.mxu0 %v99
    %142 = vmatprep.subr.mxu0 0.0
    %143 = vmatpush1.msra.mxu0 %v100
    %144 = vmatprep.subr.mxu0 0.0
    %145 = vmatpush1.msra.mxu0 %v101
    %146 = vmatprep.subr.mxu0 0.0
    %147 = vmatpush1.msra.mxu0 %v102
    %148 = vmatprep.subr.mxu0 0.0
    %149 = vmatpush1.msra.mxu0 0.0
    %150 = vmatprep.subr.mxu0 0.0
    %151 = vmatpush1.msra.mxu0 0.0
    %152 = vmatprep.subr.mxu0 0.0
    %153 = vmatpush1.msra.mxu0 0.0
    %154 = vmatprep.subr.mxu0 0.0
    %155 = vmatpush1.msra.mxu0 0.0
    %156 = vmatprep.subr.mxu0 0.0
    %157 = vmatpush1.msra.mxu0 0.0
    %158 = vmatprep.subr.mxu0 0.0
    %159 = vmatpush1.msra.mxu0 0.0
    %160 = vmatprep.subr.mxu0 0.0
    %161 = vmatpush1.msra.mxu0 0.0
    %162 = vmatprep.subr.mxu0 0.0
    %163 = vmatpush1.msra.mxu0 0.0
    %164 = vmatprep.subr.mxu0 0.0
    %165 = vmatpush1.msra.mxu0 0.0
    %166 = vmatprep.subr.mxu0 0.0
    %167 = vmatpush1.msra.mxu0 0.0
    %168 = vmatprep.subr.mxu0 0.0
    %169 = vmatpush1.msra.mxu0 0.0
    %170 = vmatprep.subr.mxu0 0.0
    %171 = vmatpush1.msra.mxu0 0.0
    %172 = vmatprep.subr.mxu0 0.0
    %173 = vmatpush1.msra.mxu0 0.0
    %174 = vmatprep.subr.mxu0 0.0
    %175 = vmatpush1.msra.mxu0 0.0
    %176 = vmatprep.subr.mxu0 0.0
    %177 = vmatpush1.msra.mxu0 0.0
    %178 = vmatprep.subr.mxu0 0.0
    %179 = vmatpush1.msra.mxu0 0.0
    %180 = vmatprep.subr.mxu0 0.0
    %181 = vmatpush1.msra.mxu0 0.0
    %182 = vmatprep.subr.mxu0 0.0
    %183 = vmatpush1.msra.mxu0 0.0
    %184 = vmatprep.subr.mxu0 0.0
    %185 = vmatpush1.msra.mxu0 0.0
    %186 = vmatprep.subr.mxu0 0.0
    %187 = vmatpush1.msra.mxu0 0.0
    %188 = vmatprep.subr.mxu0 0.0
    %189 = vmatpush1.msra.mxu0 0.0
    %190 = vmatprep.subr.mxu0 0.0
    %191 = vmatpush1.msra.mxu0 0.0
    %192 = vmatprep.subr.mxu0 0.0
    %193 = vmatpush1.msra.mxu0 0.0
    %194 = vmatprep.subr.mxu0 0.0
    %195 = vmatpush1.msra.mxu0 0.0
    %196 = vmatprep.mubr.f32.mxu0 0.0
    %197 = vmatmul.mubr.f32.gmra.mrb[0].mxu0 %v112
    %v198 = vpop.f32.mrb[0].mxu0
    %v199 = vadd.f32 0.0, %v198
    %v200 = vpop.f32.mrb[0].mxu0
    %201 = vmatprep.mubr.f32.mxu0 0.0
    %202 = vmatmul.mubr.f32.gmra.mrb[0].mxu0 %v115
    %v203 = vpop.f32.mrb[0].mxu0
    %v204 = vadd.f32 0.0, %v203
    %v205 = vpop.f32.mrb[0].mxu0
    %206 = vmatprep.mubr.f32.mxu0 0.0
    %207 = vmatmul.mubr.f32.gmra.mrb[0].mxu0 %v118
    %v208 = vpop.f32.mrb[0].mxu0
    %v209 = vadd.f32 0.0, %v208
    %v210 = vpop.f32.mrb[0].mxu0
    %211 = vmatprep.mubr.f32.mxu0 0.0
    %212 = vmatmul.mubr.f32.gmra.mrb[0].mxu0 %v121
    %v213 = vpop.f32.mrb[0].mxu0
    %v214 = vadd.f32 0.0, %v213
    %v215 = vpop.f32.mrb[0].mxu0
    %216 = vmatprep.mubr.f32.mxu0 0.0
    %217 = vmatmul.mubr.f32.gmra.mrb[0].mxu0 %v124
    %v218 = vpop.f32.mrb[0].mxu0
    %v219 = vadd.f32 0.0, %v218
    %v220 = vpop.f32.mrb[0].mxu0
    %221 = vmatprep.mubr.f32.mxu0 0.0
    %222 = vmatmul.mubr.f32.gmra.mrb[0].mxu0 %v127
    %v223 = vpop.f32.mrb[0].mxu0
    %v224 = vadd.f32 0.0, %v223
    %v225 = vpop.f32.mrb[0].mxu0
    %226 = vmatprep.mubr.f32.mxu0 0.0
    %227 = vmatmul.mubr.f32.gmra.mrb[0].mxu0 %v130
    %v228 = vpop.f32.mrb[0].mxu0
    %v229 = vadd.f32 0.0, %v228
    %v230 = vpop.f32.mrb[0].mxu0
    %231 = vdwg.mxu0
    %v232 = vld [vmem:[%s2] sm:$0xff]
    %v233 = vld [vmem:[%s2 + $0x8] sm:$0xff]
    %v234 = vld [vmem:[%s2 + $0x10] sm:$0xff]
    %v235 = vld [vmem:[%s2 + $0x18] sm:$0xff]
    %v236 = vld [vmem:[%s2 + $0x20] sm:$0xff]
    %v237 = vld [vmem:[%s2 + $0x28] sm:$0xff]
    %v238 = vld [vmem:[%s2 + $0x30] sm:$0xff]
    %v239 = vld [vmem:[%s2 + $0x38] sm:$0xff]
    %s240 = scalar_lea.vmem %s1, 56
    %v241 = vld [vmem:[%s240] sm:$0xff]
    %v242 = vld [vmem:[%s240 + $0x8] sm:$0xff]
    %v243 = vld [vmem:[%s240 + $0x10] sm:$0xff]
    %v244 = vld [vmem:[%s240 + $0x18] sm:$0xff]
    %v245 = vld [vmem:[%s240 + $0x20] sm:$0xff]
    %v246 = vld [vmem:[%s240 + $0x28] sm:$0xff]
    %v247 = vld [vmem:[%s240 + $0x30] sm:$0xff]
    %v249 = vsel %vm110, %v241, 0
    %v252 = vsel %vm110, %v242, 0
    %v255 = vsel %vm110, %v243, 0
    %v258 = vsel %vm110, %v244, 0
    %v261 = vsel %vm110, %v245, 0
    %v264 = vsel %vm110, %v246, 0
    %v267 = vsel %vm110, %v247, 0
    %269 = vmatprep.subr.mxu0 0.0
    %270 = vmatpush1.msra.mxu0 %v95
    %271 = vmatprep.subr.mxu0 0.0
    %272 = vmatpush1.msra.mxu0 %v96
    %273 = vmatprep.subr.mxu0 0.0
    %274 = vmatpush1.msra.mxu0 %v97
    %275 = vmatprep.subr.mxu0 0.0
    %276 = vmatpush1.msra.mxu0 %v98
    %277 = vmatprep.subr.mxu0 0.0
    %278 = vmatpush1.msra.mxu0 %v99
    %279 = vmatprep.subr.mxu0 0.0
    %280 = vmatpush1.msra.mxu0 %v100
    %281 = vmatprep.subr.mxu0 0.0
    %282 = vmatpush1.msra.mxu0 %v101
    %283 = vmatprep.subr.mxu0 0.0
    %284 = vmatpush1.msra.mxu0 %v102
    %285 = vmatprep.subr.mxu0 0.0
    %286 = vmatpush1.msra.mxu0 0.0
    %287 = vmatprep.subr.mxu0 0.0
    %288 = vmatpush1.msra.mxu0 0.0
    %289 = vmatprep.subr.mxu0 0.0
    %290 = vmatpush1.msra.mxu0 0.0
    %291 = vmatprep.subr.mxu0 0.0
    %292 = vmatpush1.msra.mxu0 0.0
    %293 = vmatprep.subr.mxu0 0.0
    %294 = vmatpush1.msra.mxu0 0.0
    %295 = vmatprep.subr.mxu0 0.0
    %296 = vmatpush1.msra.mxu0 0.0
    %297 = vmatprep.subr.mxu0 0.0
    %298 = vmatpush1.msra.mxu0 0.0
    %299 = vmatprep.subr.mxu0 0.0
    %300 = vmatpush1.msra.mxu0 0.0
    %301 = vmatprep.subr.mxu0 0.0
    %302 = vmatpush1.msra.mxu0 0.0
    %303 = vmatprep.subr.mxu0 0.0
    %304 = vmatpush1.msra.mxu0 0.0
    %305 = vmatprep.subr.mxu0 0.0
    %306 = vmatpush1.msra.mxu0 0.0
    %307 = vmatprep.subr.mxu0 0.0
    %308 = vmatpush1.msra.mxu0 0.0
    %309 = vmatprep.subr.mxu0 0.0
    %310 = vmatpush1.msra.mxu0 0.0
    %311 = vmatprep.subr.mxu0 0.0
    %312 = vmatpush1.msra.mxu0 0.0
    %313 = vmatprep.subr.mxu0 0.0
    %314 = vmatpush1.msra.mxu0 0.0
    %315 = vmatprep.subr.mxu0 0.0
    %316 = vmatpush1.msra.mxu0 0.0
    %317 = vmatprep.subr.mxu0 0.0
    %318 = vmatpush1.msra.mxu0 0.0
    %319 = vmatprep.subr.mxu0 0.0
    %320 = vmatpush1.msra.mxu0 0.0
    %321 = vmatprep.subr.mxu0 0.0
    %322 = vmatpush1.msra.mxu0 0.0
    %323 = vmatprep.subr.mxu0 0.0
    %324 = vmatpush1.msra.mxu0 0.0
    %325 = vmatprep.subr.mxu0 0.0
    %326 = vmatpush1.msra.mxu0 0.0
    %327 = vmatprep.subr.mxu0 0.0
    %328 = vmatpush1.msra.mxu0 0.0
    %329 = vmatprep.subr.mxu0 0.0
    %330 = vmatpush1.msra.mxu0 0.0
    %331 = vmatprep.subr.mxu0 0.0
    %332 = vmatpush1.msra.mxu0 0.0
    %333 = vmatprep.mubr.f32.mxu0 0.0
    %334 = vmatmul.mubr.f32.gmra.mrb[0].mxu0 %v249
    %v335 = vpop.f32.mrb[0].mxu0
    %v336 = vadd.f32 0.0, %v335
    %v337 = vpop.f32.mrb[0].mxu0
    %338 = vmatprep.mubr.f32.mxu0 0.0
    %339 = vmatmul.mubr.f32.gmra.mrb[0].mxu0 %v252
    %v340 = vpop.f32.mrb[0].mxu0
    %v341 = vadd.f32 0.0, %v340
    %v342 = vpop.f32.mrb[0].mxu0
    %343 = vmatprep.mubr.f32.mxu0 0.0
    %344 = vmatmul.mubr.f32.gmra.mrb[0].mxu0 %v255
    %v345 = vpop.f32.mrb[0].mxu0
    %v346 = vadd.f32 0.0, %v345
    %v347 = vpop.f32.mrb[0].mxu0
    %348 = vmatprep.mubr.f32.mxu0 0.0
    %349 = vmatmul.mubr.f32.gmra.mrb[0].mxu0 %v258
    %v350 = vpop.f32.mrb[0].mxu0
    %v351 = vadd.f32 0.0, %v350
    %v352 = vpop.f32.mrb[0].mxu0
    %353 = vmatprep.mubr.f32.mxu0 0.0
    %354 = vmatmul.mubr.f32.gmra.mrb[0].mxu0 %v261
    %v355 = vpop.f32.mrb[0].mxu0
    %v356 = vadd.f32 0.0, %v355
    %v357 = vpop.f32.mrb[0].mxu0
    %358 = vmatprep.mubr.f32.mxu0 0.0
    %359 = vmatmul.mubr.f32.gmra.mrb[0].mxu0 %v264
    %v360 = vpop.f32.mrb[0].mxu0
    %v361 = vadd.f32 0.0, %v360
    %v362 = vpop.f32.mrb[0].mxu0
    %363 = vmatprep.mubr.f32.mxu0 0.0
    %364 = vmatmul.mubr.f32.gmra.mrb[0].mxu0 %v267
    %v365 = vpop.f32.mrb[0].mxu0
    %v366 = vadd.f32 0.0, %v365
    %v367 = vpop.f32.mrb[0].mxu0
    %368 = vdwg.mxu0
    %s369 = scalar_lea.vmem %s2, 64
    %v370 = vld [vmem:[%s369] sm:$0xff]
    %v371 = vld [vmem:[%s369 + $0x8] sm:$0xff]
    %v372 = vld [vmem:[%s369 + $0x10] sm:$0xff]
    %v373 = vld [vmem:[%s369 + $0x18] sm:$0xff]
    %v374 = vld [vmem:[%s369 + $0x20] sm:$0xff]
    %v375 = vld [vmem:[%s369 + $0x28] sm:$0xff]
    %v376 = vld [vmem:[%s369 + $0x30] sm:$0xff]
    %v377 = vld [vmem:[%s369 + $0x38] sm:$0xff]
    %vm378 = vcmask 261120
    %v380 = vsel %vm378, %v336, 0
    %v383 = vsel %vm378, %v341, 0
    %v386 = vsel %vm378, %v346, 0
    %v389 = vsel %vm378, %v351, 0
    %v392 = vsel %vm378, %v356, 0
    %v395 = vsel %vm378, %v361, 0
    %v398 = vsel %vm378, %v366, 0
    %400 = vmatprep.subr.mxu0 %v371
    %401 = vmatpush1.msra.mxu0 %v370
    %402 = vmatprep.subr.mxu0 %v373
    %403 = vmatpush1.msra.mxu0 %v372
    %404 = vmatprep.subr.mxu0 %v375
    %405 = vmatpush1.msra.mxu0 %v374
    %406 = vmatprep.subr.mxu0 %v377
    %407 = vmatpush1.msra.mxu0 %v376
    %408 = vmatprep.subr.mxu0 0.0
    %409 = vmatpush1.msra.mxu0 0.0
    %410 = vmatprep.subr.mxu0 0.0
    %411 = vmatpush1.msra.mxu0 0.0
    %412 = vmatprep.subr.mxu0 0.0
    %413 = vmatpush1.msra.mxu0 0.0
    %414 = vmatprep.subr.mxu0 0.0
    %415 = vmatpush1.msra.mxu0 0.0
    %416 = vmatprep.subr.mxu0 0.0
    %417 = vmatpush1.msra.mxu0 0.0
    %418 = vmatprep.subr.mxu0 0.0
    %419 = vmatpush1.msra.mxu0 0.0
    %420 = vmatprep.subr.mxu0 0.0
    %421 = vmatpush1.msra.mxu0 0.0
    %422 = vmatprep.subr.mxu0 0.0
    %423 = vmatpush1.msra.mxu0 0.0
    %424 = vmatprep.subr.mxu0 0.0
    %425 = vmatpush1.msra.mxu0 0.0
    %426 = vmatprep.subr.mxu0 0.0
    %427 = vmatpush1.msra.mxu0 0.0
    %428 = vmatprep.subr.mxu0 0.0
    %429 = vmatpush1.msra.mxu0 0.0
    %430 = vmatprep.subr.mxu0 0.0
    %431 = vmatpush1.msra.mxu0 0.0
    %432 = vmatprep.subr.mxu0 0.0
    %433 = vmatpush1.msra.mxu0 0.0
    %434 = vmatprep.subr.mxu0 0.0
    %435 = vmatpush1.msra.mxu0 0.0
    %436 = vmatprep.subr.mxu0 0.0
    %437 = vmatpush1.msra.mxu0 0.0
    %438 = vmatprep.subr.mxu0 0.0
    %439 = vmatpush1.msra.mxu0 0.0
    %440 = vmatprep.subr.mxu0 0.0
    %441 = vmatpush1.msra.mxu0 0.0
    %442 = vmatprep.subr.mxu0 0.0
    %443 = vmatpush1.msra.mxu0 0.0
    %444 = vmatprep.subr.mxu0 0.0
    %445 = vmatpush1.msra.mxu0 0.0
    %446 = vmatprep.subr.mxu0 0.0
    %447 = vmatpush1.msra.mxu0 0.0
    %448 = vmatprep.subr.mxu0 0.0
    %449 = vmatpush1.msra.mxu0 0.0
    %450 = vmatprep.subr.mxu0 0.0
    %451 = vmatpush1.msra.mxu0 0.0
    %452 = vmatprep.subr.mxu0 0.0
    %453 = vmatpush1.msra.mxu0 0.0
    %454 = vmatprep.subr.mxu0 0.0
    %455 = vmatpush1.msra.mxu0 0.0
    %456 = vmatprep.subr.mxu0 0.0
    %457 = vmatpush1.msra.mxu0 0.0
    %458 = vmatprep.subr.mxu0 0.0
    %459 = vmatpush1.msra.mxu0 0.0
    %460 = vmatprep.subr.mxu0 0.0
    %461 = vmatpush1.msra.mxu0 0.0
    %462 = vmatprep.subr.mxu0 0.0
    %463 = vmatpush1.msra.mxu0 0.0
    %464 = vmatprep.mubr.f32.mxu0 0.0
    %465 = vmatmul.mubr.f32.gmra.mrb[0].mxu0 %v380
    %v466 = vpop.f32.mrb[0].mxu0
    %v467 = vadd.f32 0.0, %v466
    %v468 = vpop.f32.mrb[0].mxu0
    %v469 = vadd.f32 0.0, %v468
    %470 = vmatprep.mubr.f32.mxu0 0.0
    %471 = vmatmul.mubr.f32.gmra.mrb[0].mxu0 %v383
    %v472 = vpop.f32.mrb[0].mxu0
    %v473 = vadd.f32 0.0, %v472
    %v474 = vpop.f32.mrb[0].mxu0
    %v475 = vadd.f32 0.0, %v474
    %476 = vmatprep.mubr.f32.mxu0 0.0
    %477 = vmatmul.mubr.f32.gmra.mrb[0].mxu0 %v386
    %v478 = vpop.f32.mrb[0].mxu0
    %v479 = vadd.f32 0.0, %v478
    %v480 = vpop.f32.mrb[0].mxu0
    %v481 = vadd.f32 0.0, %v480
    %482 = vmatprep.mubr.f32.mxu0 0.0
    %483 = vmatmul.mubr.f32.gmra.mrb[0].mxu0 %v389
    %v484 = vpop.f32.mrb[0].mxu0
    %v485 = vadd.f32 0.0, %v484
    %v486 = vpop.f32.mrb[0].mxu0
    %v487 = vadd.f32 0.0, %v486
    %488 = vmatprep.mubr.f32.mxu0 0.0
    %489 = vmatmul.mubr.f32.gmra.mrb[0].mxu0 %v392
    %v490 = vpop.f32.mrb[0].mxu0
    %v491 = vadd.f32 0.0, %v490
    %v492 = vpop.f32.mrb[0].mxu0
    %v493 = vadd.f32 0.0, %v492
    %494 = vmatprep.mubr.f32.mxu0 0.0
    %495 = vmatmul.mubr.f32.gmra.mrb[0].mxu0 %v395
    %v496 = vpop.f32.mrb[0].mxu0
    %v497 = vadd.f32 0.0, %v496
    %v498 = vpop.f32.mrb[0].mxu0
    %v499 = vadd.f32 0.0, %v498
    %500 = vmatprep.mubr.f32.mxu0 0.0
    %501 = vmatmul.mubr.f32.gmra.mrb[0].mxu0 %v398
    %v502 = vpop.f32.mrb[0].mxu0
    %v503 = vadd.f32 0.0, %v502
    %v504 = vpop.f32.mrb[0].mxu0
    %v505 = vadd.f32 0.0, %v504
    %506 = vdwg.mxu0
    %v508 = vsel %vm378, %v199, 0
    %v511 = vsel %vm378, %v204, 0
    %v514 = vsel %vm378, %v209, 0
    %v517 = vsel %vm378, %v214, 0
    %v520 = vsel %vm378, %v219, 0
    %v523 = vsel %vm378, %v224, 0
    %v526 = vsel %vm378, %v229, 0
    %528 = vmatprep.subr.mxu0 %v233
    %529 = vmatpush1.msra.mxu0 %v232
    %530 = vmatprep.subr.mxu0 %v235
    %531 = vmatpush1.msra.mxu0 %v234
    %532 = vmatprep.subr.mxu0 %v237
    %533 = vmatpush1.msra.mxu0 %v236
    %534 = vmatprep.subr.mxu0 %v239
    %535 = vmatpush1.msra.mxu0 %v238
    %536 = vmatprep.subr.mxu0 0.0
    %537 = vmatpush1.msra.mxu0 0.0
    %538 = vmatprep.subr.mxu0 0.0
    %539 = vmatpush1.msra.mxu0 0.0
    %540 = vmatprep.subr.mxu0 0.0
    %541 = vmatpush1.msra.mxu0 0.0
    %542 = vmatprep.subr.mxu0 0.0
    %543 = vmatpush1.msra.mxu0 0.0
    %544 = vmatprep.subr.mxu0 0.0
    %545 = vmatpush1.msra.mxu0 0.0
    %546 = vmatprep.subr.mxu0 0.0
    %547 = vmatpush1.msra.mxu0 0.0
    %548 = vmatprep.subr.mxu0 0.0
    %549 = vmatpush1.msra.mxu0 0.0
    %550 = vmatprep.subr.mxu0 0.0
    %551 = vmatpush1.msra.mxu0 0.0
    %552 = vmatprep.subr.mxu0 0.0
    %553 = vmatpush1.msra.mxu0 0.0
    %554 = vmatprep.subr.mxu0 0.0
    %555 = vmatpush1.msra.mxu0 0.0
    %556 = vmatprep.subr.mxu0 0.0
    %557 = vmatpush1.msra.mxu0 0.0
    %558 = vmatprep.subr.mxu0 0.0
    %559 = vmatpush1.msra.mxu0 0.0
    %560 = vmatprep.subr.mxu0 0.0
    %561 = vmatpush1.msra.mxu0 0.0
    %562 = vmatprep.subr.mxu0 0.0
    %563 = vmatpush1.msra.mxu0 0.0
    %564 = vmatprep.subr.mxu0 0.0
    %565 = vmatpush1.msra.mxu0 0.0
    %566 = vmatprep.subr.mxu0 0.0
    %567 = vmatpush1.msra.mxu0 0.0
    %568 = vmatprep.subr.mxu0 0.0
    %569 = vmatpush1.msra.mxu0 0.0
    %570 = vmatprep.subr.mxu0 0.0
    %571 = vmatpush1.msra.mxu0 0.0
    %572 = vmatprep.subr.mxu0 0.0
    %573 = vmatpush1.msra.mxu0 0.0
    %574 = vmatprep.subr.mxu0 0.0
    %575 = vmatpush1.msra.mxu0 0.0
    %576 = vmatprep.subr.mxu0 0.0
    %577 = vmatpush1.msra.mxu0 0.0
    %578 = vmatprep.subr.mxu0 0.0
    %579 = vmatpush1.msra.mxu0 0.0
    %580 = vmatprep.subr.mxu0 0.0
    %581 = vmatpush1.msra.mxu0 0.0
    %582 = vmatprep.subr.mxu0 0.0
    %583 = vmatpush1.msra.mxu0 0.0
    %584 = vmatprep.subr.mxu0 0.0
    %585 = vmatpush1.msra.mxu0 0.0
    %586 = vmatprep.subr.mxu0 0.0
    %587 = vmatpush1.msra.mxu0 0.0
    %588 = vmatprep.subr.mxu0 0.0
    %589 = vmatpush1.msra.mxu0 0.0
    %590 = vmatprep.subr.mxu0 0.0
    %591 = vmatpush1.msra.mxu0 0.0
    %592 = vmatprep.mubr.f32.mxu0 0.0
    %593 = vmatmul.mubr.f32.gmra.mrb[0].mxu0 %v508
    %v594 = vpop.f32.mrb[0].mxu0
    %v595 = vadd.f32 %v467, %v594
    %v596 = vpop.f32.mrb[0].mxu0
    %v597 = vadd.f32 %v469, %v596
    %598 = vmatprep.mubr.f32.mxu0 0.0
    %599 = vmatmul.mubr.f32.gmra.mrb[0].mxu0 %v511
    %v600 = vpop.f32.mrb[0].mxu0
    %v601 = vadd.f32 %v473, %v600
    %v602 = vpop.f32.mrb[0].mxu0
    %v603 = vadd.f32 %v475, %v602
    %604 = vmatprep.mubr.f32.mxu0 0.0
    %605 = vmatmul.mubr.f32.gmra.mrb[0].mxu0 %v514
    %v606 = vpop.f32.mrb[0].mxu0
    %v607 = vadd.f32 %v479, %v606
    %v608 = vpop.f32.mrb[0].mxu0
    %v609 = vadd.f32 %v481, %v608
    %610 = vmatprep.mubr.f32.mxu0 0.0
    %611 = vmatmul.mubr.f32.gmra.mrb[0].mxu0 %v517
    %v612 = vpop.f32.mrb[0].mxu0
    %v613 = vadd.f32 %v485, %v612
    %v614 = vpop.f32.mrb[0].mxu0
    %v615 = vadd.f32 %v487, %v614
    %616 = vmatprep.mubr.f32.mxu0 0.0
    %617 = vmatmul.mubr.f32.gmra.mrb[0].mxu0 %v520
    %v618 = vpop.f32.mrb[0].mxu0
    %v619 = vadd.f32 %v491, %v618
    %v620 = vpop.f32.mrb[0].mxu0
    %v621 = vadd.f32 %v493, %v620
    %622 = vmatprep.mubr.f32.mxu0 0.0
    %623 = vmatmul.mubr.f32.gmra.mrb[0].mxu0 %v523
    %v624 = vpop.f32.mrb[0].mxu0
    %v625 = vadd.f32 %v497, %v624
    %v626 = vpop.f32.mrb[0].mxu0
    %v627 = vadd.f32 %v499, %v626
    %628 = vmatprep.mubr.f32.mxu0 0.0
    %629 = vmatmul.mubr.f32.gmra.mrb[0].mxu0 %v526
    %v630 = vpop.f32.mrb[0].mxu0
    %v631 = vadd.f32 %v503, %v630
    %v632 = vpop.f32.mrb[0].mxu0
    %v633 = vadd.f32 %v505, %v632
    %634 = vdwg.mxu0
    %s635 = scalar_lea.vmem %s1, 112
    %v636 = vld [vmem:[%s635] sm:$0xff]
    %v637 = vld [vmem:[%s635 + $0x8] sm:$0xff]
    %v638 = vld [vmem:[%s635 + $0x10] sm:$0xff]
    %v639 = vld [vmem:[%s635 + $0x18] sm:$0xff]
    %v640 = vld [vmem:[%s635 + $0x20] sm:$0xff]
    %v641 = vld [vmem:[%s635 + $0x28] sm:$0xff]
    %v642 = vld [vmem:[%s635 + $0x30] sm:$0xff]
    %v644 = vsel %vm110, %v636, 0
    %v647 = vsel %vm110, %v637, 0
    %v650 = vsel %vm110, %v638, 0
    %v653 = vsel %vm110, %v639, 0
    %v656 = vsel %vm110, %v640, 0
    %v659 = vsel %vm110, %v641, 0
    %v662 = vsel %vm110, %v642, 0
    %664 = vmatprep.subr.mxu0 0.0
    %665 = vmatpush1.msra.mxu0 %v95
    %666 = vmatprep.subr.mxu0 0.0
    %667 = vmatpush1.msra.mxu0 %v96
    %668 = vmatprep.subr.mxu0 0.0
    %669 = vmatpush1.msra.mxu0 %v97
    %670 = vmatprep.subr.mxu0 0.0
    %671 = vmatpush1.msra.mxu0 %v98
    %672 = vmatprep.subr.mxu0 0.0
    %673 = vmatpush1.msra.mxu0 %v99
    %674 = vmatprep.subr.mxu0 0.0
    %675 = vmatpush1.msra.mxu0 %v100
    %676 = vmatprep.subr.mxu0 0.0
    %677 = vmatpush1.msra.mxu0 %v101
    %678 = vmatprep.subr.mxu0 0.0
    %679 = vmatpush1.msra.mxu0 %v102
    %680 = vmatprep.subr.mxu0 0.0
    %681 = vmatpush1.msra.mxu0 0.0
    %682 = vmatprep.subr.mxu0 0.0
    %683 = vmatpush1.msra.mxu0 0.0
    %684 = vmatprep.subr.mxu0 0.0
    %685 = vmatpush1.msra.mxu0 0.0
    %686 = vmatprep.subr.mxu0 0.0
    %687 = vmatpush1.msra.mxu0 0.0
    %688 = vmatprep.subr.mxu0 0.0
    %689 = vmatpush1.msra.mxu0 0.0
    %690 = vmatprep.subr.mxu0 0.0
    %691 = vmatpush1.msra.mxu0 0.0
    %692 = vmatprep.subr.mxu0 0.0
    %693 = vmatpush1.msra.mxu0 0.0
    %694 = vmatprep.subr.mxu0 0.0
    %695 = vmatpush1.msra.mxu0 0.0
    %696 = vmatprep.subr.mxu0 0.0
    %697 = vmatpush1.msra.mxu0 0.0
    %698 = vmatprep.subr.mxu0 0.0
    %699 = vmatpush1.msra.mxu0 0.0
    %700 = vmatprep.subr.mxu0 0.0
    %701 = vmatpush1.msra.mxu0 0.0
    %702 = vmatprep.subr.mxu0 0.0
    %703 = vmatpush1.msra.mxu0 0.0
    %704 = vmatprep.subr.mxu0 0.0
    %705 = vmatpush1.msra.mxu0 0.0
    %706 = vmatprep.subr.mxu0 0.0
    %707 = vmatpush1.msra.mxu0 0.0
    %708 = vmatprep.subr.mxu0 0.0
    %709 = vmatpush1.msra.mxu0 0.0
    %710 = vmatprep.subr.mxu0 0.0
    %711 = vmatpush1.msra.mxu0 0.0
    %712 = vmatprep.subr.mxu0 0.0
    %713 = vmatpush1.msra.mxu0 0.0
    %714 = vmatprep.subr.mxu0 0.0
    %715 = vmatpush1.msra.mxu0 0.0
    %716 = vmatprep.subr.mxu0 0.0
    %717 = vmatpush1.msra.mxu0 0.0
    %718 = vmatprep.subr.mxu0 0.0
    %719 = vmatpush1.msra.mxu0 0.0
    %720 = vmatprep.subr.mxu0 0.0
    %721 = vmatpush1.msra.mxu0 0.0
    %722 = vmatprep.subr.mxu0 0.0
    %723 = vmatpush1.msra.mxu0 0.0
    %724 = vmatprep.subr.mxu0 0.0
    %725 = vmatpush1.msra.mxu0 0.0
    %726 = vmatprep.subr.mxu0 0.0
    %727 = vmatpush1.msra.mxu0 0.0
    %728 = vmatprep.mubr.f32.mxu0 0.0
    %729 = vmatmul.mubr.f32.gmra.mrb[0].mxu0 %v644
    %v730 = vpop.f32.mrb[0].mxu0
    %v731 = vadd.f32 0.0, %v730
    %v732 = vpop.f32.mrb[0].mxu0
    %733 = vmatprep.mubr.f32.mxu0 0.0
    %734 = vmatmul.mubr.f32.gmra.mrb[0].mxu0 %v647
    %v735 = vpop.f32.mrb[0].mxu0
    %v736 = vadd.f32 0.0, %v735
    %v737 = vpop.f32.mrb[0].mxu0
    %738 = vmatprep.mubr.f32.mxu0 0.0
    %739 = vmatmul.mubr.f32.gmra.mrb[0].mxu0 %v650
    %v740 = vpop.f32.mrb[0].mxu0
    %v741 = vadd.f32 0.0, %v740
    %v742 = vpop.f32.mrb[0].mxu0
    %743 = vmatprep.mubr.f32.mxu0 0.0
    %744 = vmatmul.mubr.f32.gmra.mrb[0].mxu0 %v653
    %v745 = vpop.f32.mrb[0].mxu0
    %v746 = vadd.f32 0.0, %v745
    %v747 = vpop.f32.mrb[0].mxu0
    %748 = vmatprep.mubr.f32.mxu0 0.0
    %749 = vmatmul.mubr.f32.gmra.mrb[0].mxu0 %v656
    %v750 = vpop.f32.mrb[0].mxu0
    %v751 = vadd.f32 0.0, %v750
    %v752 = vpop.f32.mrb[0].mxu0
    %753 = vmatprep.mubr.f32.mxu0 0.0
    %754 = vmatmul.mubr.f32.gmra.mrb[0].mxu0 %v659
    %v755 = vpop.f32.mrb[0].mxu0
    %v756 = vadd.f32 0.0, %v755
    %v757 = vpop.f32.mrb[0].mxu0
    %758 = vmatprep.mubr.f32.mxu0 0.0
    %759 = vmatmul.mubr.f32.gmra.mrb[0].mxu0 %v662
    %v760 = vpop.f32.mrb[0].mxu0
    %v761 = vadd.f32 0.0, %v760
    %v762 = vpop.f32.mrb[0].mxu0
    %763 = vdwg.mxu0
    %s764 = scalar_lea.vmem %s2, 128
    %v765 = vld [vmem:[%s764] sm:$0xff]
    %v766 = vld [vmem:[%s764 + $0x8] sm:$0xff]
    %v767 = vld [vmem:[%s764 + $0x10] sm:$0xff]
    %v768 = vld [vmem:[%s764 + $0x18] sm:$0xff]
    %v769 = vld [vmem:[%s764 + $0x20] sm:$0xff]
    %v770 = vld [vmem:[%s764 + $0x28] sm:$0xff]
    %v771 = vld [vmem:[%s764 + $0x30] sm:$0xff]
    %v772 = vld [vmem:[%s764 + $0x38] sm:$0xff]
    %v774 = vsel %vm378, %v731, 0
    %v777 = vsel %vm378, %v736, 0
    %v780 = vsel %vm378, %v741, 0
    %v783 = vsel %vm378, %v746, 0
    %v786 = vsel %vm378, %v751, 0
    %v789 = vsel %vm378, %v756, 0
    %v792 = vsel %vm378, %v761, 0
    %794 = vmatprep.subr.mxu0 %v766
    %795 = vmatpush1.msra.mxu0 %v765
    %796 = vmatprep.subr.mxu0 %v768
    %797 = vmatpush1.msra.mxu0 %v767
    %798 = vmatprep.subr.mxu0 %v770
    %799 = vmatpush1.msra.mxu0 %v769
    %800 = vmatprep.subr.mxu0 %v772
    %801 = vmatpush1.msra.mxu0 %v771
    %802 = vmatprep.subr.mxu0 0.0
    %803 = vmatpush1.msra.mxu0 0.0
    %804 = vmatprep.subr.mxu0 0.0
    %805 = vmatpush1.msra.mxu0 0.0
    %806 = vmatprep.subr.mxu0 0.0
    %807 = vmatpush1.msra.mxu0 0.0
    %808 = vmatprep.subr.mxu0 0.0
    %809 = vmatpush1.msra.mxu0 0.0
    %810 = vmatprep.subr.mxu0 0.0
    %811 = vmatpush1.msra.mxu0 0.0
    %812 = vmatprep.subr.mxu0 0.0
    %813 = vmatpush1.msra.mxu0 0.0
    %814 = vmatprep.subr.mxu0 0.0
    %815 = vmatpush1.msra.mxu0 0.0
    %816 = vmatprep.subr.mxu0 0.0
    %817 = vmatpush1.msra.mxu0 0.0
    %818 = vmatprep.subr.mxu0 0.0
    %819 = vmatpush1.msra.mxu0 0.0
    %820 = vmatprep.subr.mxu0 0.0
    %821 = vmatpush1.msra.mxu0 0.0
    %822 = vmatprep.subr.mxu0 0.0
    %823 = vmatpush1.msra.mxu0 0.0
    %824 = vmatprep.subr.mxu0 0.0
    %825 = vmatpush1.msra.mxu0 0.0
    %826 = vmatprep.subr.mxu0 0.0
    %827 = vmatpush1.msra.mxu0 0.0
    %828 = vmatprep.subr.mxu0 0.0
    %829 = vmatpush1.msra.mxu0 0.0
    %830 = vmatprep.subr.mxu0 0.0
    %831 = vmatpush1.msra.mxu0 0.0
    %832 = vmatprep.subr.mxu0 0.0
    %833 = vmatpush1.msra.mxu0 0.0
    %834 = vmatprep.subr.mxu0 0.0
    %835 = vmatpush1.msra.mxu0 0.0
    %836 = vmatprep.subr.mxu0 0.0
    %837 = vmatpush1.msra.mxu0 0.0
    %838 = vmatprep.subr.mxu0 0.0
    %839 = vmatpush1.msra.mxu0 0.0
    %840 = vmatprep.subr.mxu0 0.0
    %841 = vmatpush1.msra.mxu0 0.0
    %842 = vmatprep.subr.mxu0 0.0
    %843 = vmatpush1.msra.mxu0 0.0
    %844 = vmatprep.subr.mxu0 0.0
    %845 = vmatpush1.msra.mxu0 0.0
    %846 = vmatprep.subr.mxu0 0.0
    %847 = vmatpush1.msra.mxu0 0.0
    %848 = vmatprep.subr.mxu0 0.0
    %849 = vmatpush1.msra.mxu0 0.0
    %850 = vmatprep.subr.mxu0 0.0
    %851 = vmatpush1.msra.mxu0 0.0
    %852 = vmatprep.subr.mxu0 0.0
    %853 = vmatpush1.msra.mxu0 0.0
    %854 = vmatprep.subr.mxu0 0.0
    %855 = vmatpush1.msra.mxu0 0.0
    %856 = vmatprep.subr.mxu0 0.0
    %857 = vmatpush1.msra.mxu0 0.0
    %858 = vmatprep.mubr.f32.mxu0 0.0
    %859 = vmatmul.mubr.f32.gmra.mrb[0].mxu0 %v774
    %v860 = vpop.f32.mrb[0].mxu0
    %v861 = vadd.f32 0.0, %v860
    %v862 = vpop.f32.mrb[0].mxu0
    %v863 = vadd.f32 0.0, %v862
    %864 = vmatprep.mubr.f32.mxu0 0.0
    %865 = vmatmul.mubr.f32.gmra.mrb[0].mxu0 %v777
    %v866 = vpop.f32.mrb[0].mxu0
    %v867 = vadd.f32 0.0, %v866
    %v868 = vpop.f32.mrb[0].mxu0
    %v869 = vadd.f32 0.0, %v868
    %870 = vmatprep.mubr.f32.mxu0 0.0
    %871 = vmatmul.mubr.f32.gmra.mrb[0].mxu0 %v780
    %v872 = vpop.f32.mrb[0].mxu0
    %v873 = vadd.f32 0.0, %v872
    %v874 = vpop.f32.mrb[0].mxu0
    %v875 = vadd.f32 0.0, %v874
    %876 = vmatprep.mubr.f32.mxu0 0.0
    %877 = vmatmul.mubr.f32.gmra.mrb[0].mxu0 %v783
    %v878 = vpop.f32.mrb[0].mxu0
    %v879 = vadd.f32 0.0, %v878
    %v880 = vpop.f32.mrb[0].mxu0
    %v881 = vadd.f32 0.0, %v880
    %882 = vmatprep.mubr.f32.mxu0 0.0
    %883 = vmatmul.mubr.f32.gmra.mrb[0].mxu0 %v786
    %v884 = vpop.f32.mrb[0].mxu0
    %v885 = vadd.f32 0.0, %v884
    %v886 = vpop.f32.mrb[0].mxu0
    %v887 = vadd.f32 0.0, %v886
    %888 = vmatprep.mubr.f32.mxu0 0.0
    %889 = vmatmul.mubr.f32.gmra.mrb[0].mxu0 %v789
    %v890 = vpop.f32.mrb[0].mxu0
    %v891 = vadd.f32 0.0, %v890
    %v892 = vpop.f32.mrb[0].mxu0
    %v893 = vadd.f32 0.0, %v892
    %894 = vmatprep.mubr.f32.mxu0 0.0
    %895 = vmatmul.mubr.f32.gmra.mrb[0].mxu0 %v792
    %v896 = vpop.f32.mrb[0].mxu0
    %v897 = vadd.f32 0.0, %v896
    %v898 = vpop.f32.mrb[0].mxu0
    %v899 = vadd.f32 0.0, %v898
    %900 = vdwg.mxu0
    %v901 = vadd.f32 %v595, %v861
    %v902 = vadd.f32 %v597, %v863
    %v903 = vadd.f32 %v601, %v867
    %v904 = vadd.f32 %v603, %v869
    %v905 = vadd.f32 %v607, %v873
    %v906 = vadd.f32 %v609, %v875
    %v907 = vadd.f32 %v613, %v879
    %v908 = vadd.f32 %v615, %v881
    %v909 = vadd.f32 %v619, %v885
    %v910 = vadd.f32 %v621, %v887
    %v911 = vadd.f32 %v625, %v891
    %v912 = vadd.f32 %v627, %v893
    %v913 = vadd.f32 %v631, %v897
    %v914 = vadd.f32 %v633, %v899
    %s915 = scalar_lea.vmem %s1, 168
    %v916 = vld [vmem:[%s915] sm:$0xff]
    %v917 = vld [vmem:[%s915 + $0x8] sm:$0xff]
    %v918 = vld [vmem:[%s915 + $0x10] sm:$0xff]
    %v919 = vld [vmem:[%s915 + $0x18] sm:$0xff]
    %v920 = vld [vmem:[%s915 + $0x20] sm:$0xff]
    %v921 = vld [vmem:[%s915 + $0x28] sm:$0xff]
    %v922 = vld [vmem:[%s915 + $0x30] sm:$0xff]
    %v924 = vsel %vm110, %v916, 0
    %v927 = vsel %vm110, %v917, 0
    %v930 = vsel %vm110, %v918, 0
    %v933 = vsel %vm110, %v919, 0
    %v936 = vsel %vm110, %v920, 0
    %v939 = vsel %vm110, %v921, 0
    %v942 = vsel %vm110, %v922, 0
    %944 = vmatprep.subr.mxu0 0.0
    %945 = vmatpush1.msra.mxu0 %v95
    %946 = vmatprep.subr.mxu0 0.0
    %947 = vmatpush1.msra.mxu0 %v96
    %948 = vmatprep.subr.mxu0 0.0
    %949 = vmatpush1.msra.mxu0 %v97
    %950 = vmatprep.subr.mxu0 0.0
    %951 = vmatpush1.msra.mxu0 %v98
    %952 = vmatprep.subr.mxu0 0.0
    %953 = vmatpush1.msra.mxu0 %v99
    %954 = vmatprep.subr.mxu0 0.0
    %955 = vmatpush1.msra.mxu0 %v100
    %956 = vmatprep.subr.mxu0 0.0
    %957 = vmatpush1.msra.mxu0 %v101
    %958 = vmatprep.subr.mxu0 0.0
    %959 = vmatpush1.msra.mxu0 %v102
    %960 = vmatprep.subr.mxu0 0.0
    %961 = vmatpush1.msra.mxu0 0.0
    %962 = vmatprep.subr.mxu0 0.0
    %963 = vmatpush1.msra.mxu0 0.0
    %964 = vmatprep.subr.mxu0 0.0
    %965 = vmatpush1.msra.mxu0 0.0
    %966 = vmatprep.subr.mxu0 0.0
    %967 = vmatpush1.msra.mxu0 0.0
    %968 = vmatprep.subr.mxu0 0.0
    %969 = vmatpush1.msra.mxu0 0.0
    %970 = vmatprep.subr.mxu0 0.0
    %971 = vmatpush1.msra.mxu0 0.0
    %972 = vmatprep.subr.mxu0 0.0
    %973 = vmatpush1.msra.mxu0 0.0
    %974 = vmatprep.subr.mxu0 0.0
    %975 = vmatpush1.msra.mxu0 0.0
    %976 = vmatprep.subr.mxu0 0.0
    %977 = vmatpush1.msra.mxu0 0.0
    %978 = vmatprep.subr.mxu0 0.0
    %979 = vmatpush1.msra.mxu0 0.0
    %980 = vmatprep.subr.mxu0 0.0
    %981 = vmatpush1.msra.mxu0 0.0
    %982 = vmatprep.subr.mxu0 0.0
    %983 = vmatpush1.msra.mxu0 0.0
    %984 = vmatprep.subr.mxu0 0.0
    %985 = vmatpush1.msra.mxu0 0.0
    %986 = vmatprep.subr.mxu0 0.0
    %987 = vmatpush1.msra.mxu0 0.0
    %988 = vmatprep.subr.mxu0 0.0
    %989 = vmatpush1.msra.mxu0 0.0
    %990 = vmatprep.subr.mxu0 0.0
    %991 = vmatpush1.msra.mxu0 0.0
    %992 = vmatprep.subr.mxu0 0.0
    %993 = vmatpush1.msra.mxu0 0.0
    %994 = vmatprep.subr.mxu0 0.0
    %995 = vmatpush1.msra.mxu0 0.0
    %996 = vmatprep.subr.mxu0 0.0
    %997 = vmatpush1.msra.mxu0 0.0
    %998 = vmatprep.subr.mxu0 0.0
    %999 = vmatpush1.msra.mxu0 0.0
    %1000 = vmatprep.subr.mxu0 0.0
    %1001 = vmatpush1.msra.mxu0 0.0
    %1002 = vmatprep.subr.mxu0 0.0
    %1003 = vmatpush1.msra.mxu0 0.0
    %1004 = vmatprep.subr.mxu0 0.0
    %1005 = vmatpush1.msra.mxu0 0.0
    %1006 = vmatprep.subr.mxu0 0.0
    %1007 = vmatpush1.msra.mxu0 0.0
    %1008 = vmatprep.mubr.f32.mxu0 0.0
    %1009 = vmatmul.mubr.f32.gmra.mrb[0].mxu0 %v924
    %v1010 = vpop.f32.mrb[0].mxu0
    %v1011 = vadd.f32 0.0, %v1010
    %v1012 = vpop.f32.mrb[0].mxu0
    %1013 = vmatprep.mubr.f32.mxu0 0.0
    %1014 = vmatmul.mubr.f32.gmra.mrb[0].mxu0 %v927
    %v1015 = vpop.f32.mrb[0].mxu0
    %v1016 = vadd.f32 0.0, %v1015
    %v1017 = vpop.f32.mrb[0].mxu0
    %1018 = vmatprep.mubr.f32.mxu0 0.0
    %1019 = vmatmul.mubr.f32.gmra.mrb[0].mxu0 %v930
    %v1020 = vpop.f32.mrb[0].mxu0
    %v1021 = vadd.f32 0.0, %v1020
    %v1022 = vpop.f32.mrb[0].mxu0
    %1023 = vmatprep.mubr.f32.mxu0 0.0
    %1024 = vmatmul.mubr.f32.gmra.mrb[0].mxu0 %v933
    %v1025 = vpop.f32.mrb[0].mxu0
    %v1026 = vadd.f32 0.0, %v1025
    %v1027 = vpop.f32.mrb[0].mxu0
    %1028 = vmatprep.mubr.f32.mxu0 0.0
    %1029 = vmatmul.mubr.f32.gmra.mrb[0].mxu0 %v936
    %v1030 = vpop.f32.mrb[0].mxu0
    %v1031 = vadd.f32 0.0, %v1030
    %v1032 = vpop.f32.mrb[0].mxu0
    %1033 = vmatprep.mubr.f32.mxu0 0.0
    %1034 = vmatmul.mubr.f32.gmra.mrb[0].mxu0 %v939
    %v1035 = vpop.f32.mrb[0].mxu0
    %v1036 = vadd.f32 0.0, %v1035
    %v1037 = vpop.f32.mrb[0].mxu0
    %1038 = vmatprep.mubr.f32.mxu0 0.0
    %1039 = vmatmul.mubr.f32.gmra.mrb[0].mxu0 %v942
    %v1040 = vpop.f32.mrb[0].mxu0
    %v1041 = vadd.f32 0.0, %v1040
    %v1042 = vpop.f32.mrb[0].mxu0
    %1043 = vdwg.mxu0
    %s1044 = scalar_lea.vmem %s2, 192
    %v1045 = vld [vmem:[%s1044] sm:$0xff]
    %v1046 = vld [vmem:[%s1044 + $0x8] sm:$0xff]
    %v1047 = vld [vmem:[%s1044 + $0x10] sm:$0xff]
    %v1048 = vld [vmem:[%s1044 + $0x18] sm:$0xff]
    %v1049 = vld [vmem:[%s1044 + $0x20] sm:$0xff]
    %v1050 = vld [vmem:[%s1044 + $0x28] sm:$0xff]
    %v1051 = vld [vmem:[%s1044 + $0x30] sm:$0xff]
    %v1052 = vld [vmem:[%s1044 + $0x38] sm:$0xff]
    %v1054 = vsel %vm378, %v1011, 0
    %v1057 = vsel %vm378, %v1016, 0
    %v1060 = vsel %vm378, %v1021, 0
    %v1063 = vsel %vm378, %v1026, 0
    %v1066 = vsel %vm378, %v1031, 0
    %v1069 = vsel %vm378, %v1036, 0
    %v1072 = vsel %vm378, %v1041, 0
    %1074 = vmatprep.subr.mxu0 %v1046
    %1075 = vmatpush1.msra.mxu0 %v1045
    %1076 = vmatprep.subr.mxu0 %v1048
    %1077 = vmatpush1.msra.mxu0 %v1047
    %1078 = vmatprep.subr.mxu0 %v1050
    %1079 = vmatpush1.msra.mxu0 %v1049
    %1080 = vmatprep.subr.mxu0 %v1052
    %1081 = vmatpush1.msra.mxu0 %v1051
    %1082 = vmatprep.subr.mxu0 0.0
    %1083 = vmatpush1.msra.mxu0 0.0
    %1084 = vmatprep.subr.mxu0 0.0
    %1085 = vmatpush1.msra.mxu0 0.0
    %1086 = vmatprep.subr.mxu0 0.0
    %1087 = vmatpush1.msra.mxu0 0.0
    %1088 = vmatprep.subr.mxu0 0.0
    %1089 = vmatpush1.msra.mxu0 0.0
    %1090 = vmatprep.subr.mxu0 0.0
    %1091 = vmatpush1.msra.mxu0 0.0
    %1092 = vmatprep.subr.mxu0 0.0
    %1093 = vmatpush1.msra.mxu0 0.0
    %1094 = vmatprep.subr.mxu0 0.0
    %1095 = vmatpush1.msra.mxu0 0.0
    %1096 = vmatprep.subr.mxu0 0.0
    %1097 = vmatpush1.msra.mxu0 0.0
    %1098 = vmatprep.subr.mxu0 0.0
    %1099 = vmatpush1.msra.mxu0 0.0
    %1100 = vmatprep.subr.mxu0 0.0
    %1101 = vmatpush1.msra.mxu0 0.0
    %1102 = vmatprep.subr.mxu0 0.0
    %1103 = vmatpush1.msra.mxu0 0.0
    %1104 = vmatprep.subr.mxu0 0.0
    %1105 = vmatpush1.msra.mxu0 0.0
    %1106 = vmatprep.subr.mxu0 0.0
    %1107 = vmatpush1.msra.mxu0 0.0
    %1108 = vmatprep.subr.mxu0 0.0
    %1109 = vmatpush1.msra.mxu0 0.0
    %1110 = vmatprep.subr.mxu0 0.0
    %1111 = vmatpush1.msra.mxu0 0.0
    %1112 = vmatprep.subr.mxu0 0.0
    %1113 = vmatpush1.msra.mxu0 0.0
    %1114 = vmatprep.subr.mxu0 0.0
    %1115 = vmatpush1.msra.mxu0 0.0
    %1116 = vmatprep.subr.mxu0 0.0
    %1117 = vmatpush1.msra.mxu0 0.0
    %1118 = vmatprep.subr.mxu0 0.0
    %1119 = vmatpush1.msra.mxu0 0.0
    %1120 = vmatprep.subr.mxu0 0.0
    %1121 = vmatpush1.msra.mxu0 0.0
    %1122 = vmatprep.subr.mxu0 0.0
    %1123 = vmatpush1.msra.mxu0 0.0
    %1124 = vmatprep.subr.mxu0 0.0
    %1125 = vmatpush1.msra.mxu0 0.0
    %1126 = vmatprep.subr.mxu0 0.0
    %1127 = vmatpush1.msra.mxu0 0.0
    %1128 = vmatprep.subr.mxu0 0.0
    %1129 = vmatpush1.msra.mxu0 0.0
    %1130 = vmatprep.subr.mxu0 0.0
    %1131 = vmatpush1.msra.mxu0 0.0
    %1132 = vmatprep.subr.mxu0 0.0
    %1133 = vmatpush1.msra.mxu0 0.0
    %1134 = vmatprep.subr.mxu0 0.0
    %1135 = vmatpush1.msra.mxu0 0.0
    %1136 = vmatprep.subr.mxu0 0.0
    %1137 = vmatpush1.msra.mxu0 0.0
    %1138 = vmatprep.mubr.f32.mxu0 0.0
    %1139 = vmatmul.mubr.f32.gmra.mrb[0].mxu0 %v1054
    %v1140 = vpop.f32.mrb[0].mxu0
    %v1141 = vadd.f32 0.0, %v1140
    %v1142 = vpop.f32.mrb[0].mxu0
    %v1143 = vadd.f32 0.0, %v1142
    %1144 = vmatprep.mubr.f32.mxu0 0.0
    %1145 = vmatmul.mubr.f32.gmra.mrb[0].mxu0 %v1057
    %v1146 = vpop.f32.mrb[0].mxu0
    %v1147 = vadd.f32 0.0, %v1146
    %v1148 = vpop.f32.mrb[0].mxu0
    %v1149 = vadd.f32 0.0, %v1148
    %1150 = vmatprep.mubr.f32.mxu0 0.0
    %1151 = vmatmul.mubr.f32.gmra.mrb[0].mxu0 %v1060
    %v1152 = vpop.f32.mrb[0].mxu0
    %v1153 = vadd.f32 0.0, %v1152
    %v1154 = vpop.f32.mrb[0].mxu0
    %v1155 = vadd.f32 0.0, %v1154
    %1156 = vmatprep.mubr.f32.mxu0 0.0
    %1157 = vmatmul.mubr.f32.gmra.mrb[0].mxu0 %v1063
    %v1158 = vpop.f32.mrb[0].mxu0
    %v1159 = vadd.f32 0.0, %v1158
    %v1160 = vpop.f32.mrb[0].mxu0
    %v1161 = vadd.f32 0.0, %v1160
    %1162 = vmatprep.mubr.f32.mxu0 0.0
    %1163 = vmatmul.mubr.f32.gmra.mrb[0].mxu0 %v1066
    %v1164 = vpop.f32.mrb[0].mxu0
    %v1165 = vadd.f32 0.0, %v1164
    %v1166 = vpop.f32.mrb[0].mxu0
    %v1167 = vadd.f32 0.0, %v1166
    %1168 = vmatprep.mubr.f32.mxu0 0.0
    %1169 = vmatmul.mubr.f32.gmra.mrb[0].mxu0 %v1069
    %v1170 = vpop.f32.mrb[0].mxu0
    %v1171 = vadd.f32 0.0, %v1170
    %v1172 = vpop.f32.mrb[0].mxu0
    %v1173 = vadd.f32 0.0, %v1172
    %1174 = vmatprep.mubr.f32.mxu0 0.0
    %1175 = vmatmul.mubr.f32.gmra.mrb[0].mxu0 %v1072
    %v1176 = vpop.f32.mrb[0].mxu0
    %v1177 = vadd.f32 0.0, %v1176
    %v1178 = vpop.f32.mrb[0].mxu0
    %v1179 = vadd.f32 0.0, %v1178
    %1180 = vdwg.mxu0
    %v1181 = vadd.f32 %v901, %v1141
    %v1182 = vadd.f32 %v902, %v1143
    %v1183 = vadd.f32 %v903, %v1147
    %v1184 = vadd.f32 %v904, %v1149
    %v1185 = vadd.f32 %v905, %v1153
    %v1186 = vadd.f32 %v906, %v1155
    %v1187 = vadd.f32 %v907, %v1159
    %v1188 = vadd.f32 %v908, %v1161
    %v1189 = vadd.f32 %v909, %v1165
    %v1190 = vadd.f32 %v910, %v1167
    %v1191 = vadd.f32 %v911, %v1171
    %v1192 = vadd.f32 %v912, %v1173
    %v1193 = vadd.f32 %v913, %v1177
    %v1194 = vadd.f32 %v914, %v1179
    %s1195 = scalar_lea.vmem %s1, 224
    %v1196 = vld [vmem:[%s1195] sm:$0xff]
    %v1197 = vld [vmem:[%s1195 + $0x8] sm:$0xff]
    %v1198 = vld [vmem:[%s1195 + $0x10] sm:$0xff]
    %v1199 = vld [vmem:[%s1195 + $0x18] sm:$0xff]
    %v1200 = vld [vmem:[%s1195 + $0x20] sm:$0xff]
    %v1201 = vld [vmem:[%s1195 + $0x28] sm:$0xff]
    %v1202 = vld [vmem:[%s1195 + $0x30] sm:$0xff]
    %v1204 = vsel %vm110, %v1196, 0
    %v1207 = vsel %vm110, %v1197, 0
    %v1210 = vsel %vm110, %v1198, 0
    %v1213 = vsel %vm110, %v1199, 0
    %v1216 = vsel %vm110, %v1200, 0
    %v1219 = vsel %vm110, %v1201, 0
    %v1222 = vsel %vm110, %v1202, 0
    %1224 = vmatprep.subr.mxu0 0.0
    %1225 = vmatpush1.msra.mxu0 %v95
    %1226 = vmatprep.subr.mxu0 0.0
    %1227 = vmatpush1.msra.mxu0 %v96
    %1228 = vmatprep.subr.mxu0 0.0
    %1229 = vmatpush1.msra.mxu0 %v97
    %1230 = vmatprep.subr.mxu0 0.0
    %1231 = vmatpush1.msra.mxu0 %v98
    %1232 = vmatprep.subr.mxu0 0.0
    %1233 = vmatpush1.msra.mxu0 %v99
    %1234 = vmatprep.subr.mxu0 0.0
    %1235 = vmatpush1.msra.mxu0 %v100
    %1236 = vmatprep.subr.mxu0 0.0
    %1237 = vmatpush1.msra.mxu0 %v101
    %1238 = vmatprep.subr.mxu0 0.0
    %1239 = vmatpush1.msra.mxu0 %v102
    %1240 = vmatprep.subr.mxu0 0.0
    %1241 = vmatpush1.msra.mxu0 0.0
    %1242 = vmatprep.subr.mxu0 0.0
    %1243 = vmatpush1.msra.mxu0 0.0
    %1244 = vmatprep.subr.mxu0 0.0
    %1245 = vmatpush1.msra.mxu0 0.0
    %1246 = vmatprep.subr.mxu0 0.0
    %1247 = vmatpush1.msra.mxu0 0.0
    %1248 = vmatprep.subr.mxu0 0.0
    %1249 = vmatpush1.msra.mxu0 0.0
    %1250 = vmatprep.subr.mxu0 0.0
    %1251 = vmatpush1.msra.mxu0 0.0
    %1252 = vmatprep.subr.mxu0 0.0
    %1253 = vmatpush1.msra.mxu0 0.0
    %1254 = vmatprep.subr.mxu0 0.0
    %1255 = vmatpush1.msra.mxu0 0.0
    %1256 = vmatprep.subr.mxu0 0.0
    %1257 = vmatpush1.msra.mxu0 0.0
    %1258 = vmatprep.subr.mxu0 0.0
    %1259 = vmatpush1.msra.mxu0 0.0
    %1260 = vmatprep.subr.mxu0 0.0
    %1261 = vmatpush1.msra.mxu0 0.0
    %1262 = vmatprep.subr.mxu0 0.0
    %1263 = vmatpush1.msra.mxu0 0.0
    %1264 = vmatprep.subr.mxu0 0.0
    %1265 = vmatpush1.msra.mxu0 0.0
    %1266 = vmatprep.subr.mxu0 0.0
    %1267 = vmatpush1.msra.mxu0 0.0
    %1268 = vmatprep.subr.mxu0 0.0
    %1269 = vmatpush1.msra.mxu0 0.0
    %1270 = vmatprep.subr.mxu0 0.0
    %1271 = vmatpush1.msra.mxu0 0.0
    %1272 = vmatprep.subr.mxu0 0.0
    %1273 = vmatpush1.msra.mxu0 0.0
    %1274 = vmatprep.subr.mxu0 0.0
    %1275 = vmatpush1.msra.mxu0 0.0
    %1276 = vmatprep.subr.mxu0 0.0
    %1277 = vmatpush1.msra.mxu0 0.0
    %1278 = vmatprep.subr.mxu0 0.0
    %1279 = vmatpush1.msra.mxu0 0.0
    %1280 = vmatprep.subr.mxu0 0.0
    %1281 = vmatpush1.msra.mxu0 0.0
    %1282 = vmatprep.subr.mxu0 0.0
    %1283 = vmatpush1.msra.mxu0 0.0
    %1284 = vmatprep.subr.mxu0 0.0
    %1285 = vmatpush1.msra.mxu0 0.0
    %1286 = vmatprep.subr.mxu0 0.0
    %1287 = vmatpush1.msra.mxu0 0.0
    %1288 = vmatprep.mubr.f32.mxu0 0.0
    %1289 = vmatmul.mubr.f32.gmra.mrb[0].mxu0 %v1204
    %v1290 = vpop.f32.mrb[0].mxu0
    %v1291 = vadd.f32 0.0, %v1290
    %v1292 = vpop.f32.mrb[0].mxu0
    %1293 = vmatprep.mubr.f32.mxu0 0.0
    %1294 = vmatmul.mubr.f32.gmra.mrb[0].mxu0 %v1207
    %v1295 = vpop.f32.mrb[0].mxu0
    %v1296 = vadd.f32 0.0, %v1295
    %v1297 = vpop.f32.mrb[0].mxu0
    %1298 = vmatprep.mubr.f32.mxu0 0.0
    %1299 = vmatmul.mubr.f32.gmra.mrb[0].mxu0 %v1210
    %v1300 = vpop.f32.mrb[0].mxu0
    %v1301 = vadd.f32 0.0, %v1300
    %v1302 = vpop.f32.mrb[0].mxu0
    %1303 = vmatprep.mubr.f32.mxu0 0.0
    %1304 = vmatmul.mubr.f32.gmra.mrb[0].mxu0 %v1213
    %v1305 = vpop.f32.mrb[0].mxu0
    %v1306 = vadd.f32 0.0, %v1305
    %v1307 = vpop.f32.mrb[0].mxu0
    %1308 = vmatprep.mubr.f32.mxu0 0.0
    %1309 = vmatmul.mubr.f32.gmra.mrb[0].mxu0 %v1216
    %v1310 = vpop.f32.mrb[0].mxu0
    %v1311 = vadd.f32 0.0, %v1310
    %v1312 = vpop.f32.mrb[0].mxu0
    %1313 = vmatprep.mubr.f32.mxu0 0.0
    %1314 = vmatmul.mubr.f32.gmra.mrb[0].mxu0 %v1219
    %v1315 = vpop.f32.mrb[0].mxu0
    %v1316 = vadd.f32 0.0, %v1315
    %v1317 = vpop.f32.mrb[0].mxu0
    %1318 = vmatprep.mubr.f32.mxu0 0.0
    %1319 = vmatmul.mubr.f32.gmra.mrb[0].mxu0 %v1222
    %v1320 = vpop.f32.mrb[0].mxu0
    %v1321 = vadd.f32 0.0, %v1320
    %v1322 = vpop.f32.mrb[0].mxu0
    %1323 = vdwg.mxu0
    %s1324 = scalar_lea.vmem %s2, 256
    %v1325 = vld [vmem:[%s1324] sm:$0xff]
    %v1326 = vld [vmem:[%s1324 + $0x8] sm:$0xff]
    %v1327 = vld [vmem:[%s1324 + $0x10] sm:$0xff]
    %v1328 = vld [vmem:[%s1324 + $0x18] sm:$0xff]
    %v1329 = vld [vmem:[%s1324 + $0x20] sm:$0xff]
    %v1330 = vld [vmem:[%s1324 + $0x28] sm:$0xff]
    %v1331 = vld [vmem:[%s1324 + $0x30] sm:$0xff]
    %v1332 = vld [vmem:[%s1324 + $0x38] sm:$0xff]
    %v1334 = vsel %vm378, %v1291, 0
    %v1337 = vsel %vm378, %v1296, 0
    %v1340 = vsel %vm378, %v1301, 0
    %v1343 = vsel %vm378, %v1306, 0
    %v1346 = vsel %vm378, %v1311, 0
    %v1349 = vsel %vm378, %v1316, 0
    %v1352 = vsel %vm378, %v1321, 0
    %1354 = vmatprep.subr.mxu0 %v1326
    %1355 = vmatpush1.msra.mxu0 %v1325
    %1356 = vmatprep.subr.mxu0 %v1328
    %1357 = vmatpush1.msra.mxu0 %v1327
    %1358 = vmatprep.subr.mxu0 %v1330
    %1359 = vmatpush1.msra.mxu0 %v1329
    %1360 = vmatprep.subr.mxu0 %v1332
    %1361 = vmatpush1.msra.mxu0 %v1331
    %1362 = vmatprep.subr.mxu0 0.0
    %1363 = vmatpush1.msra.mxu0 0.0
    %1364 = vmatprep.subr.mxu0 0.0
    %1365 = vmatpush1.msra.mxu0 0.0
    %1366 = vmatprep.subr.mxu0 0.0
    %1367 = vmatpush1.msra.mxu0 0.0
    %1368 = vmatprep.subr.mxu0 0.0
    %1369 = vmatpush1.msra.mxu0 0.0
    %1370 = vmatprep.subr.mxu0 0.0
    %1371 = vmatpush1.msra.mxu0 0.0
    %1372 = vmatprep.subr.mxu0 0.0
    %1373 = vmatpush1.msra.mxu0 0.0
    %1374 = vmatprep.subr.mxu0 0.0
    %1375 = vmatpush1.msra.mxu0 0.0
    %1376 = vmatprep.subr.mxu0 0.0
    %1377 = vmatpush1.msra.mxu0 0.0
    %1378 = vmatprep.subr.mxu0 0.0
    %1379 = vmatpush1.msra.mxu0 0.0
    %1380 = vmatprep.subr.mxu0 0.0
    %1381 = vmatpush1.msra.mxu0 0.0
    %1382 = vmatprep.subr.mxu0 0.0
    %1383 = vmatpush1.msra.mxu0 0.0
    %1384 = vmatprep.subr.mxu0 0.0
    %1385 = vmatpush1.msra.mxu0 0.0
    %1386 = vmatprep.subr.mxu0 0.0
    %1387 = vmatpush1.msra.mxu0 0.0
    %1388 = vmatprep.subr.mxu0 0.0
    %1389 = vmatpush1.msra.mxu0 0.0
    %1390 = vmatprep.subr.mxu0 0.0
    %1391 = vmatpush1.msra.mxu0 0.0
    %1392 = vmatprep.subr.mxu0 0.0
    %1393 = vmatpush1.msra.mxu0 0.0
    %1394 = vmatprep.subr.mxu0 0.0
    %1395 = vmatpush1.msra.mxu0 0.0
    %1396 = vmatprep.subr.mxu0 0.0
    %1397 = vmatpush1.msra.mxu0 0.0
    %1398 = vmatprep.subr.mxu0 0.0
    %1399 = vmatpush1.msra.mxu0 0.0
    %1400 = vmatprep.subr.mxu0 0.0
    %1401 = vmatpush1.msra.mxu0 0.0
    %1402 = vmatprep.subr.mxu0 0.0
    %1403 = vmatpush1.msra.mxu0 0.0
    %1404 = vmatprep.subr.mxu0 0.0
    %1405 = vmatpush1.msra.mxu0 0.0
    %1406 = vmatprep.subr.mxu0 0.0
    %1407 = vmatpush1.msra.mxu0 0.0
    %1408 = vmatprep.subr.mxu0 0.0
    %1409 = vmatpush1.msra.mxu0 0.0
    %1410 = vmatprep.subr.mxu0 0.0
    %1411 = vmatpush1.msra.mxu0 0.0
    %1412 = vmatprep.subr.mxu0 0.0
    %1413 = vmatpush1.msra.mxu0 0.0
    %1414 = vmatprep.subr.mxu0 0.0
    %1415 = vmatpush1.msra.mxu0 0.0
    %1416 = vmatprep.subr.mxu0 0.0
    %1417 = vmatpush1.msra.mxu0 0.0
    %1418 = vmatprep.mubr.f32.mxu0 0.0
    %1419 = vmatmul.mubr.f32.gmra.mrb[0].mxu0 %v1334
    %v1420 = vpop.f32.mrb[0].mxu0
    %v1421 = vadd.f32 0.0, %v1420
    %v1422 = vpop.f32.mrb[0].mxu0
    %v1423 = vadd.f32 0.0, %v1422
    %1424 = vmatprep.mubr.f32.mxu0 0.0
    %1425 = vmatmul.mubr.f32.gmra.mrb[0].mxu0 %v1337
    %v1426 = vpop.f32.mrb[0].mxu0
    %v1427 = vadd.f32 0.0, %v1426
    %v1428 = vpop.f32.mrb[0].mxu0
    %v1429 = vadd.f32 0.0, %v1428
    %1430 = vmatprep.mubr.f32.mxu0 0.0
    %1431 = vmatmul.mubr.f32.gmra.mrb[0].mxu0 %v1340
    %v1432 = vpop.f32.mrb[0].mxu0
    %v1433 = vadd.f32 0.0, %v1432
    %v1434 = vpop.f32.mrb[0].mxu0
    %v1435 = vadd.f32 0.0, %v1434
    %1436 = vmatprep.mubr.f32.mxu0 0.0
    %1437 = vmatmul.mubr.f32.gmra.mrb[0].mxu0 %v1343
    %v1438 = vpop.f32.mrb[0].mxu0
    %v1439 = vadd.f32 0.0, %v1438
    %v1440 = vpop.f32.mrb[0].mxu0
    %v1441 = vadd.f32 0.0, %v1440
    %1442 = vmatprep.mubr.f32.mxu0 0.0
    %1443 = vmatmul.mubr.f32.gmra.mrb[0].mxu0 %v1346
    %v1444 = vpop.f32.mrb[0].mxu0
    %v1445 = vadd.f32 0.0, %v1444
    %v1446 = vpop.f32.mrb[0].mxu0
    %v1447 = vadd.f32 0.0, %v1446
    %1448 = vmatprep.mubr.f32.mxu0 0.0
    %1449 = vmatmul.mubr.f32.gmra.mrb[0].mxu0 %v1349
    %v1450 = vpop.f32.mrb[0].mxu0
    %v1451 = vadd.f32 0.0, %v1450
    %v1452 = vpop.f32.mrb[0].mxu0
    %v1453 = vadd.f32 0.0, %v1452
    %1454 = vmatprep.mubr.f32.mxu0 0.0
    %1455 = vmatmul.mubr.f32.gmra.mrb[0].mxu0 %v1352
    %v1456 = vpop.f32.mrb[0].mxu0
    %v1457 = vadd.f32 0.0, %v1456
    %v1458 = vpop.f32.mrb[0].mxu0
    %v1459 = vadd.f32 0.0, %v1458
    %1460 = vdwg.mxu0
    %v1461 = vadd.f32 %v1181, %v1421
    %v1462 = vadd.f32 %v1182, %v1423
    %v1463 = vadd.f32 %v1183, %v1427
    %v1464 = vadd.f32 %v1184, %v1429
    %v1465 = vadd.f32 %v1185, %v1433
    %v1466 = vadd.f32 %v1186, %v1435
    %v1467 = vadd.f32 %v1187, %v1439
    %v1468 = vadd.f32 %v1188, %v1441
    %v1469 = vadd.f32 %v1189, %v1445
    %v1470 = vadd.f32 %v1190, %v1447
    %v1471 = vadd.f32 %v1191, %v1451
    %v1472 = vadd.f32 %v1192, %v1453
    %v1473 = vadd.f32 %v1193, %v1457
    %v1474 = vadd.f32 %v1194, %v1459
    %v1475 = vld [vmem:[%s3] sm:$0xff]
    %v1476 = vld [vmem:[%s3 + $0x8] sm:$0xff]
    %v1477 = vld [vmem:[%s3 + $0x10] sm:$0xff]
    %v1478 = vld [vmem:[%s3 + $0x18] sm:$0xf]
    %vm1479 = vcmask 457728
    %v1481 = vsel %vm1479, %v1475, 0
    %v1484 = vsel %vm1479, %v1476, 0
    %v1487 = vsel %vm1479, %v1477, 0
    %v1490 = vsel %vm1479, %v1478, 0
    %1492 = vmatprep.subr.mxu0 %v1462
    %1493 = vmatpush1.msra.mxu0 %v1461
    %1494 = vmatprep.subr.mxu0 %v1464
    %1495 = vmatpush1.msra.mxu0 %v1463
    %1496 = vmatprep.subr.mxu0 %v1466
    %1497 = vmatpush1.msra.mxu0 %v1465
    %1498 = vmatprep.subr.mxu0 %v1468
    %1499 = vmatpush1.msra.mxu0 %v1467
    %1500 = vmatprep.subr.mxu0 %v1470
    %1501 = vmatpush1.msra.mxu0 %v1469
    %1502 = vmatprep.subr.mxu0 %v1472
    %1503 = vmatpush1.msra.mxu0 %v1471
    %1504 = vmatprep.subr.mxu0 %v1474
    %1505 = vmatpush1.msra.mxu0 %v1473
    %1506 = vmatprep.subr.mxu0 0.0
    %1507 = vmatpush1.msra.mxu0 0.0
    %1508 = vmatprep.subr.mxu0 0.0
    %1509 = vmatpush1.msra.mxu0 0.0
    %1510 = vmatprep.subr.mxu0 0.0
    %1511 = vmatpush1.msra.mxu0 0.0
    %1512 = vmatprep.subr.mxu0 0.0
    %1513 = vmatpush1.msra.mxu0 0.0
    %1514 = vmatprep.subr.mxu0 0.0
    %1515 = vmatpush1.msra.mxu0 0.0
    %1516 = vmatprep.subr.mxu0 0.0
    %1517 = vmatpush1.msra.mxu0 0.0
    %1518 = vmatprep.subr.mxu0 0.0
    %1519 = vmatpush1.msra.mxu0 0.0
    %1520 = vmatprep.subr.mxu0 0.0
    %1521 = vmatpush1.msra.mxu0 0.0
    %1522 = vmatprep.subr.mxu0 0.0
    %1523 = vmatpush1.msra.mxu0 0.0
    %1524 = vmatprep.subr.mxu0 0.0
    %1525 = vmatpush1.msra.mxu0 0.0
    %1526 = vmatprep.subr.mxu0 0.0
    %1527 = vmatpush1.msra.mxu0 0.0
    %1528 = vmatprep.subr.mxu0 0.0
    %1529 = vmatpush1.msra.mxu0 0.0
    %1530 = vmatprep.subr.mxu0 0.0
    %1531 = vmatpush1.msra.mxu0 0.0
    %1532 = vmatprep.subr.mxu0 0.0
    %1533 = vmatpush1.msra.mxu0 0.0
    %1534 = vmatprep.subr.mxu0 0.0
    %1535 = vmatpush1.msra.mxu0 0.0
    %1536 = vmatprep.subr.mxu0 0.0
    %1537 = vmatpush1.msra.mxu0 0.0
    %1538 = vmatprep.subr.mxu0 0.0
    %1539 = vmatpush1.msra.mxu0 0.0
    %1540 = vmatprep.subr.mxu0 0.0
    %1541 = vmatpush1.msra.mxu0 0.0
    %1542 = vmatprep.subr.mxu0 0.0
    %1543 = vmatpush1.msra.mxu0 0.0
    %1544 = vmatprep.subr.mxu0 0.0
    %1545 = vmatpush1.msra.mxu0 0.0
    %1546 = vmatprep.subr.mxu0 0.0
    %1547 = vmatpush1.msra.mxu0 0.0
    %1548 = vmatprep.subr.mxu0 0.0
    %1549 = vmatpush1.msra.mxu0 0.0
    %1550 = vmatprep.subr.mxu0 0.0
    %1551 = vmatpush1.msra.mxu0 0.0
    %1552 = vmatprep.subr.mxu0 0.0
    %1553 = vmatpush1.msra.mxu0 0.0
    %1554 = vmatprep.subr.mxu0 0.0
    %1555 = vmatpush1.msra.mxu0 0.0
    %1556 = vmatprep.mubr.f32.mxu0 0.0
    %1557 = vmatmul.mubr.f32.gmra.mrb[0].mxu0 %v1481
    %v1558 = vpop.f32.mrb[0].mxu0
    %v1559 = vadd.f32 0.0, %v1558
    %v1560 = vpop.f32.mrb[0].mxu0
    %v1561 = vadd.f32 0.0, %v1560
    %1562 = vmatprep.mubr.f32.mxu0 0.0
    %1563 = vmatmul.mubr.f32.gmra.mrb[0].mxu0 %v1484
    %v1564 = vpop.f32.mrb[0].mxu0
    %v1565 = vadd.f32 0.0, %v1564
    %v1566 = vpop.f32.mrb[0].mxu0
    %v1567 = vadd.f32 0.0, %v1566
    %1568 = vmatprep.mubr.f32.mxu0 0.0
    %1569 = vmatmul.mubr.f32.gmra.mrb[0].mxu0 %v1487
    %v1570 = vpop.f32.mrb[0].mxu0
    %v1571 = vadd.f32 0.0, %v1570
    %v1572 = vpop.f32.mrb[0].mxu0
    %v1573 = vadd.f32 0.0, %v1572
    %1574 = vmatprep.mubr.f32.mxu0 0.0
    %1575 = vmatmul.mubr.f32.gmra.mrb[0].mxu0 %v1490
    %v1576 = vpop.f32.mrb[0].mxu0
    %v1577 = vadd.f32 0.0, %v1576
    %v1578 = vpop.f32.mrb[0].mxu0
    %v1579 = vadd.f32 0.0, %v1578
    %1580 = vdwg.mxu0
    %s1581 = scalar_lea.vmem %s3, 32
    %v1582 = vld [vmem:[%s1581] sm:$0xff]
    %v1583 = vld [vmem:[%s1581 + $0x8] sm:$0xff]
    %v1584 = vld [vmem:[%s1581 + $0x10] sm:$0xff]
    %v1585 = vld [vmem:[%s1581 + $0x18] sm:$0xf]
    %v1587 = vsel %vm1479, %v1582, 0
    %v1590 = vsel %vm1479, %v1583, 0
    %v1593 = vsel %vm1479, %v1584, 0
    %v1596 = vsel %vm1479, %v1585, 0
    %1598 = vmatprep.subr.mxu0 %v1462
    %1599 = vmatpush1.msra.mxu0 %v1461
    %1600 = vmatprep.subr.mxu0 %v1464
    %1601 = vmatpush1.msra.mxu0 %v1463
    %1602 = vmatprep.subr.mxu0 %v1466
    %1603 = vmatpush1.msra.mxu0 %v1465
    %1604 = vmatprep.subr.mxu0 %v1468
    %1605 = vmatpush1.msra.mxu0 %v1467
    %1606 = vmatprep.subr.mxu0 %v1470
    %1607 = vmatpush1.msra.mxu0 %v1469
    %1608 = vmatprep.subr.mxu0 %v1472
    %1609 = vmatpush1.msra.mxu0 %v1471
    %1610 = vmatprep.subr.mxu0 %v1474
    %1611 = vmatpush1.msra.mxu0 %v1473
    %1612 = vmatprep.subr.mxu0 0.0
    %1613 = vmatpush1.msra.mxu0 0.0
    %1614 = vmatprep.subr.mxu0 0.0
    %1615 = vmatpush1.msra.mxu0 0.0
    %1616 = vmatprep.subr.mxu0 0.0
    %1617 = vmatpush1.msra.mxu0 0.0
    %1618 = vmatprep.subr.mxu0 0.0
    %1619 = vmatpush1.msra.mxu0 0.0
    %1620 = vmatprep.subr.mxu0 0.0
    %1621 = vmatpush1.msra.mxu0 0.0
    %1622 = vmatprep.subr.mxu0 0.0
    %1623 = vmatpush1.msra.mxu0 0.0
    %1624 = vmatprep.subr.mxu0 0.0
    %1625 = vmatpush1.msra.mxu0 0.0
    %1626 = vmatprep.subr.mxu0 0.0
    %1627 = vmatpush1.msra.mxu0 0.0
    %1628 = vmatprep.subr.mxu0 0.0
    %1629 = vmatpush1.msra.mxu0 0.0
    %1630 = vmatprep.subr.mxu0 0.0
    %1631 = vmatpush1.msra.mxu0 0.0
    %1632 = vmatprep.subr.mxu0 0.0
    %1633 = vmatpush1.msra.mxu0 0.0
    %1634 = vmatprep.subr.mxu0 0.0
    %1635 = vmatpush1.msra.mxu0 0.0
    %1636 = vmatprep.subr.mxu0 0.0
    %1637 = vmatpush1.msra.mxu0 0.0
    %1638 = vmatprep.subr.mxu0 0.0
    %1639 = vmatpush1.msra.mxu0 0.0
    %1640 = vmatprep.subr.mxu0 0.0
    %1641 = vmatpush1.msra.mxu0 0.0
    %1642 = vmatprep.subr.mxu0 0.0
    %1643 = vmatpush1.msra.mxu0 0.0
    %1644 = vmatprep.subr.mxu0 0.0
    %1645 = vmatpush1.msra.mxu0 0.0
    %1646 = vmatprep.subr.mxu0 0.0
    %1647 = vmatpush1.msra.mxu0 0.0
    %1648 = vmatprep.subr.mxu0 0.0
    %1649 = vmatpush1.msra.mxu0 0.0
    %1650 = vmatprep.subr.mxu0 0.0
    %1651 = vmatpush1.msra.mxu0 0.0
    %1652 = vmatprep.subr.mxu0 0.0
    %1653 = vmatpush1.msra.mxu0 0.0
    %1654 = vmatprep.subr.mxu0 0.0
    %1655 = vmatpush1.msra.mxu0 0.0
    %1656 = vmatprep.subr.mxu0 0.0
    %1657 = vmatpush1.msra.mxu0 0.0
    %1658 = vmatprep.subr.mxu0 0.0
    %1659 = vmatpush1.msra.mxu0 0.0
    %1660 = vmatprep.subr.mxu0 0.0
    %1661 = vmatpush1.msra.mxu0 0.0
    %1662 = vmatprep.mubr.f32.mxu0 0.0
    %1663 = vmatmul.mubr.f32.gmra.mrb[0].mxu0 %v1587
    %v1664 = vpop.f32.mrb[0].mxu0
    %v1665 = vadd.f32 0.0, %v1664
    %v1666 = vpop.f32.mrb[0].mxu0
    %v1667 = vadd.f32 0.0, %v1666
    %1668 = vmatprep.mubr.f32.mxu0 0.0
    %1669 = vmatmul.mubr.f32.gmra.mrb[0].mxu0 %v1590
    %v1670 = vpop.f32.mrb[0].mxu0
    %v1671 = vadd.f32 0.0, %v1670
    %v1672 = vpop.f32.mrb[0].mxu0
    %v1673 = vadd.f32 0.0, %v1672
    %1674 = vmatprep.mubr.f32.mxu0 0.0
    %1675 = vmatmul.mubr.f32.gmra.mrb[0].mxu0 %v1593
    %v1676 = vpop.f32.mrb[0].mxu0
    %v1677 = vadd.f32 0.0, %v1676
    %v1678 = vpop.f32.mrb[0].mxu0
    %v1679 = vadd.f32 0.0, %v1678
    %1680 = vmatprep.mubr.f32.mxu0 0.0
    %1681 = vmatmul.mubr.f32.gmra.mrb[0].mxu0 %v1596
    %v1682 = vpop.f32.mrb[0].mxu0
    %v1683 = vadd.f32 0.0, %v1682
    %v1684 = vpop.f32.mrb[0].mxu0
    %v1685 = vadd.f32 0.0, %v1684
    %1686 = vdwg.mxu0
    %v1687 = vmax.f32 %v1559, %v1665
    %v1688 = vmax.f32 %v1561, %v1667
    %v1689 = vmax.f32 %v1565, %v1671
    %v1690 = vmax.f32 %v1567, %v1673
    %v1691 = vmax.f32 %v1571, %v1677
    %v1692 = vmax.f32 %v1573, %v1679
    %v1693 = vmax.f32 %v1577, %v1683
    %v1694 = vmax.f32 %v1579, %v1685
    %v1695 = vld [vmem:[%s4] sm:$0xff]
    %v1696 = vld [vmem:[%s4 + $0x8] sm:$0xff]
    %v1697 = vld [vmem:[%s4 + $0x10] sm:$0xff]
    %v1698 = vld [vmem:[%s4 + $0x18] sm:$0xff]
    %v1699 = vld [vmem:[%s4 + $0x20] sm:$0xff]
    %v1700 = vld [vmem:[%s4 + $0x28] sm:$0xff]
    %v1701 = vld [vmem:[%s4 + $0x30] sm:$0xff]
    %v1702 = vld [vmem:[%s4 + $0x38] sm:$0xff]
    %v1703 = vld [vmem:[%s4 + $0x40] sm:$0xff]
    %v1704 = vld [vmem:[%s4 + $0x48] sm:$0xff]
    %v1705 = vld [vmem:[%s4 + $0x50] sm:$0xff]
    %v1706 = vld [vmem:[%s4 + $0x58] sm:$0xff]
    %v1707 = vld [vmem:[%s4 + $0x60] sm:$0xff]
    %v1708 = vld [vmem:[%s4 + $0x68] sm:$0xff]
    %v1709 = vld [vmem:[%s4 + $0x70] sm:$0xff]
    %v1710 = vld [vmem:[%s4 + $0x78] sm:$0xff]
    %v1711 = vld [vmem:[%s4 + $0x80] sm:$0xff]
    %v1712 = vld [vmem:[%s4 + $0x88] sm:$0xff]
    %v1713 = vld [vmem:[%s4 + $0x90] sm:$0xff]
    %v1714 = vld [vmem:[%s4 + $0x98] sm:$0xff]
    %v1715 = vld [vmem:[%s4 + $0xa0] sm:$0xff]
    %vm1716 = vcmask 326656
    %v1718 = vsel %vm1716, %v1688, 0
    %v1721 = vsel %vm1716, %v1690, 0
    %v1724 = vsel %vm1716, %v1692, 0
    %v1727 = vsel %vm1716, %v1694, 0
    %1729 = vmatprep.subr.mxu0 0.0
    %1730 = vmatpush1.msra.mxu0 %v1695
    %1731 = vmatprep.subr.mxu0 0.0
    %1732 = vmatpush1.msra.mxu0 %v1696
    %1733 = vmatprep.subr.mxu0 0.0
    %1734 = vmatpush1.msra.mxu0 %v1697
    %1735 = vmatprep.subr.mxu0 0.0
    %1736 = vmatpush1.msra.mxu0 %v1698
    %1737 = vmatprep.subr.mxu0 0.0
    %1738 = vmatpush1.msra.mxu0 %v1699
    %1739 = vmatprep.subr.mxu0 0.0
    %1740 = vmatpush1.msra.mxu0 %v1700
    %1741 = vmatprep.subr.mxu0 0.0
    %1742 = vmatpush1.msra.mxu0 %v1701
    %1743 = vmatprep.subr.mxu0 0.0
    %1744 = vmatpush1.msra.mxu0 %v1702
    %1745 = vmatprep.subr.mxu0 0.0
    %1746 = vmatpush1.msra.mxu0 %v1703
    %1747 = vmatprep.subr.mxu0 0.0
    %1748 = vmatpush1.msra.mxu0 %v1704
    %1749 = vmatprep.subr.mxu0 0.0
    %1750 = vmatpush1.msra.mxu0 %v1705
    %1751 = vmatprep.subr.mxu0 0.0
    %1752 = vmatpush1.msra.mxu0 %v1706
    %1753 = vmatprep.subr.mxu0 0.0
    %1754 = vmatpush1.msra.mxu0 %v1707
    %1755 = vmatprep.subr.mxu0 0.0
    %1756 = vmatpush1.msra.mxu0 %v1708
    %1757 = vmatprep.subr.mxu0 0.0
    %1758 = vmatpush1.msra.mxu0 %v1709
    %1759 = vmatprep.subr.mxu0 0.0
    %1760 = vmatpush1.msra.mxu0 %v1710
    %1761 = vmatprep.subr.mxu0 0.0
    %1762 = vmatpush1.msra.mxu0 %v1711
    %1763 = vmatprep.subr.mxu0 0.0
    %1764 = vmatpush1.msra.mxu0 %v1712
    %1765 = vmatprep.subr.mxu0 0.0
    %1766 = vmatpush1.msra.mxu0 %v1713
    %1767 = vmatprep.subr.mxu0 0.0
    %1768 = vmatpush1.msra.mxu0 %v1714
    %1769 = vmatprep.subr.mxu0 0.0
    %1770 = vmatpush1.msra.mxu0 %v1715
    %1771 = vmatprep.subr.mxu0 0.0
    %1772 = vmatpush1.msra.mxu0 0.0
    %1773 = vmatprep.subr.mxu0 0.0
    %1774 = vmatpush1.msra.mxu0 0.0
    %1775 = vmatprep.subr.mxu0 0.0
    %1776 = vmatpush1.msra.mxu0 0.0
    %1777 = vmatprep.subr.mxu0 0.0
    %1778 = vmatpush1.msra.mxu0 0.0
    %1779 = vmatprep.subr.mxu0 0.0
    %1780 = vmatpush1.msra.mxu0 0.0
    %1781 = vmatprep.subr.mxu0 0.0
    %1782 = vmatpush1.msra.mxu0 0.0
    %1783 = vmatprep.subr.mxu0 0.0
    %1784 = vmatpush1.msra.mxu0 0.0
    %1785 = vmatprep.subr.mxu0 0.0
    %1786 = vmatpush1.msra.mxu0 0.0
    %1787 = vmatprep.subr.mxu0 0.0
    %1788 = vmatpush1.msra.mxu0 0.0
    %1789 = vmatprep.subr.mxu0 0.0
    %1790 = vmatpush1.msra.mxu0 0.0
    %1791 = vmatprep.subr.mxu0 0.0
    %1792 = vmatpush1.msra.mxu0 0.0
    %1793 = vmatprep.mubr.f32.mxu0 %v1718
    %1794 = vmatmul.mubr.f32.gmra.mrb[0].mxu0 %v1687
    %v1795 = vpop.f32.mrb[0].mxu0
    %v1796 = vadd.f32 0.0, %v1795
    %v1797 = vpop.f32.mrb[0].mxu0
    %1798 = vmatprep.mubr.f32.mxu0 %v1721
    %1799 = vmatmul.mubr.f32.gmra.mrb[0].mxu0 %v1689
    %v1800 = vpop.f32.mrb[0].mxu0
    %v1801 = vadd.f32 0.0, %v1800
    %v1802 = vpop.f32.mrb[0].mxu0
    %1803 = vmatprep.mubr.f32.mxu0 %v1724
    %1804 = vmatmul.mubr.f32.gmra.mrb[0].mxu0 %v1691
    %v1805 = vpop.f32.mrb[0].mxu0
    %v1806 = vadd.f32 0.0, %v1805
    %v1807 = vpop.f32.mrb[0].mxu0
    %1808 = vmatprep.mubr.f32.mxu0 %v1727
    %1809 = vmatmul.mubr.f32.gmra.mrb[0].mxu0 %v1693
    %v1810 = vpop.f32.mrb[0].mxu0
    %v1811 = vadd.f32 0.0, %v1810
    %v1812 = vpop.f32.mrb[0].mxu0
    %1813 = vdwg.mxu0
    %s1814 = scalar_lea.vmem %s4, 168
    %v1815 = vld [vmem:[%s1814] sm:$0xff]
    %v1816 = vld [vmem:[%s1814 + $0x8] sm:$0xff]
    %v1817 = vld [vmem:[%s1814 + $0x10] sm:$0xff]
    %v1818 = vld [vmem:[%s1814 + $0x18] sm:$0xff]
    %v1819 = vld [vmem:[%s1814 + $0x20] sm:$0xff]
    %v1820 = vld [vmem:[%s1814 + $0x28] sm:$0xff]
    %v1821 = vld [vmem:[%s1814 + $0x30] sm:$0xff]
    %v1822 = vld [vmem:[%s1814 + $0x38] sm:$0xff]
    %v1823 = vld [vmem:[%s1814 + $0x40] sm:$0xff]
    %v1824 = vld [vmem:[%s1814 + $0x48] sm:$0xff]
    %v1825 = vld [vmem:[%s1814 + $0x50] sm:$0xff]
    %v1826 = vld [vmem:[%s1814 + $0x58] sm:$0xff]
    %v1827 = vld [vmem:[%s1814 + $0x60] sm:$0xff]
    %v1828 = vld [vmem:[%s1814 + $0x68] sm:$0xff]
    %v1829 = vld [vmem:[%s1814 + $0x70] sm:$0xff]
    %v1830 = vld [vmem:[%s1814 + $0x78] sm:$0xff]
    %v1831 = vld [vmem:[%s1814 + $0x80] sm:$0xff]
    %v1832 = vld [vmem:[%s1814 + $0x88] sm:$0xff]
    %v1833 = vld [vmem:[%s1814 + $0x90] sm:$0xff]
    %v1834 = vld [vmem:[%s1814 + $0x98] sm:$0xff]
    %v1835 = vld [vmem:[%s1814 + $0xa0] sm:$0xff]
    %1836 = vmatprep.subr.mxu0 0.0
    %1837 = vmatpush1.msra.mxu0 %v1815
    %1838 = vmatprep.subr.mxu0 0.0
    %1839 = vmatpush1.msra.mxu0 %v1816
    %1840 = vmatprep.subr.mxu0 0.0
    %1841 = vmatpush1.msra.mxu0 %v1817
    %1842 = vmatprep.subr.mxu0 0.0
    %1843 = vmatpush1.msra.mxu0 %v1818
    %1844 = vmatprep.subr.mxu0 0.0
    %1845 = vmatpush1.msra.mxu0 %v1819
    %1846 = vmatprep.subr.mxu0 0.0
    %1847 = vmatpush1.msra.mxu0 %v1820
    %1848 = vmatprep.subr.mxu0 0.0
    %1849 = vmatpush1.msra.mxu0 %v1821
    %1850 = vmatprep.subr.mxu0 0.0
    %1851 = vmatpush1.msra.mxu0 %v1822
    %1852 = vmatprep.subr.mxu0 0.0
    %1853 = vmatpush1.msra.mxu0 %v1823
    %1854 = vmatprep.subr.mxu0 0.0
    %1855 = vmatpush1.msra.mxu0 %v1824
    %1856 = vmatprep.subr.mxu0 0.0
    %1857 = vmatpush1.msra.mxu0 %v1825
    %1858 = vmatprep.subr.mxu0 0.0
    %1859 = vmatpush1.msra.mxu0 %v1826
    %1860 = vmatprep.subr.mxu0 0.0
    %1861 = vmatpush1.msra.mxu0 %v1827
    %1862 = vmatprep.subr.mxu0 0.0
    %1863 = vmatpush1.msra.mxu0 %v1828
    %1864 = vmatprep.subr.mxu0 0.0
    %1865 = vmatpush1.msra.mxu0 %v1829
    %1866 = vmatprep.subr.mxu0 0.0
    %1867 = vmatpush1.msra.mxu0 %v1830
    %1868 = vmatprep.subr.mxu0 0.0
    %1869 = vmatpush1.msra.mxu0 %v1831
    %1870 = vmatprep.subr.mxu0 0.0
    %1871 = vmatpush1.msra.mxu0 %v1832
    %1872 = vmatprep.subr.mxu0 0.0
    %1873 = vmatpush1.msra.mxu0 %v1833
    %1874 = vmatprep.subr.mxu0 0.0
    %1875 = vmatpush1.msra.mxu0 %v1834
    %1876 = vmatprep.subr.mxu0 0.0
    %1877 = vmatpush1.msra.mxu0 %v1835
    %1878 = vmatprep.subr.mxu0 0.0
    %1879 = vmatpush1.msra.mxu0 0.0
    %1880 = vmatprep.subr.mxu0 0.0
    %1881 = vmatpush1.msra.mxu0 0.0
    %1882 = vmatprep.subr.mxu0 0.0
    %1883 = vmatpush1.msra.mxu0 0.0
    %1884 = vmatprep.subr.mxu0 0.0
    %1885 = vmatpush1.msra.mxu0 0.0
    %1886 = vmatprep.subr.mxu0 0.0
    %1887 = vmatpush1.msra.mxu0 0.0
    %1888 = vmatprep.subr.mxu0 0.0
    %1889 = vmatpush1.msra.mxu0 0.0
    %1890 = vmatprep.subr.mxu0 0.0
    %1891 = vmatpush1.msra.mxu0 0.0
    %1892 = vmatprep.subr.mxu0 0.0
    %1893 = vmatpush1.msra.mxu0 0.0
    %1894 = vmatprep.subr.mxu0 0.0
    %1895 = vmatpush1.msra.mxu0 0.0
    %1896 = vmatprep.subr.mxu0 0.0
    %1897 = vmatpush1.msra.mxu0 0.0
    %1898 = vmatprep.subr.mxu0 0.0
    %1899 = vmatpush1.msra.mxu0 0.0
    %1900 = vmatprep.mubr.f32.mxu0 %v1718
    %1901 = vmatmul.mubr.f32.gmra.mrb[0].mxu0 %v1687
    %v1902 = vpop.f32.mrb[0].mxu0
    %v1903 = vadd.f32 0.0, %v1902
    %v1904 = vpop.f32.mrb[0].mxu0
    %1905 = vmatprep.mubr.f32.mxu0 %v1721
    %1906 = vmatmul.mubr.f32.gmra.mrb[0].mxu0 %v1689
    %v1907 = vpop.f32.mrb[0].mxu0
    %v1908 = vadd.f32 0.0, %v1907
    %v1909 = vpop.f32.mrb[0].mxu0
    %1910 = vmatprep.mubr.f32.mxu0 %v1724
    %1911 = vmatmul.mubr.f32.gmra.mrb[0].mxu0 %v1691
    %v1912 = vpop.f32.mrb[0].mxu0
    %v1913 = vadd.f32 0.0, %v1912
    %v1914 = vpop.f32.mrb[0].mxu0
    %1915 = vmatprep.mubr.f32.mxu0 %v1727
    %1916 = vmatmul.mubr.f32.gmra.mrb[0].mxu0 %v1693
    %v1917 = vpop.f32.mrb[0].mxu0
    %v1918 = vadd.f32 0.0, %v1917
    %v1919 = vpop.f32.mrb[0].mxu0
    %1920 = vdwg.mxu0
    %v1921 = vmax.f32 %v1796, %v1903
    %v1922 = vmax.f32 %v1801, %v1908
    %v1923 = vmax.f32 %v1806, %v1913
    %v1924 = vmax.f32 %v1811, %v1918
    %v1925 = vld [vmem:[%s5] sm:$0x1]
    %v1927 = vlaneseq
    %v1928 = vshrl.u32 %v1927, 7
    %v1929 = vsub.s32 0, %v1928
    %v1930 = vrot.slane %v1925, %v1929
    %v1932 = vadd.f32 %v1921, %v1930
    %v1933 = vadd.f32 %v1922, %v1930
    %v1934 = vadd.f32 %v1923, %v1930
    %v1935 = vadd.f32 %v1924, %v1930
    %v1936 = vmax.f32 %v1932, 0.0
    %v1937 = vmax.f32 %v1933, 0.0
    %v1938 = vmax.f32 %v1934, 0.0
    %v1939 = vmax.f32 %v1935, 0.0
    %v1940 = vld [vmem:[%s6] sm:$0xff]
    %v1941 = vld [vmem:[%s6 + $0x8] sm:$0xff]
    %v1942 = vld [vmem:[%s6 + $0x10] sm:$0xf]
    %vm1943 = vcmask 228352
    %v1945 = vsel %vm1943, %v1940, 0
    %v1948 = vsel %vm1943, %v1941, 0
    %v1951 = vsel %vm1943, %v1942, 0
    %vm1953 = vcmask 1043456
    %v1955 = vsel %vm1953, %v1939, 0
    %1957 = vmatprep.subr.mxu0 0.0
    %1958 = vmatpush1.msra.mxu0 %v1936
    %1959 = vmatprep.subr.mxu0 0.0
    %1960 = vmatpush1.msra.mxu0 %v1937
    %1961 = vmatprep.subr.mxu0 0.0
    %1962 = vmatpush1.msra.mxu0 %v1938
    %1963 = vmatprep.subr.mxu0 0.0
    %1964 = vmatpush1.msra.mxu0 %v1955
    %1965 = vmatprep.subr.mxu0 0.0
    %1966 = vmatpush1.msra.mxu0 0.0
    %1967 = vmatprep.subr.mxu0 0.0
    %1968 = vmatpush1.msra.mxu0 0.0
    %1969 = vmatprep.subr.mxu0 0.0
    %1970 = vmatpush1.msra.mxu0 0.0
    %1971 = vmatprep.subr.mxu0 0.0
    %1972 = vmatpush1.msra.mxu0 0.0
    %1973 = vmatprep.subr.mxu0 0.0
    %1974 = vmatpush1.msra.mxu0 0.0
    %1975 = vmatprep.subr.mxu0 0.0
    %1976 = vmatpush1.msra.mxu0 0.0
    %1977 = vmatprep.subr.mxu0 0.0
    %1978 = vmatpush1.msra.mxu0 0.0
    %1979 = vmatprep.subr.mxu0 0.0
    %1980 = vmatpush1.msra.mxu0 0.0
    %1981 = vmatprep.subr.mxu0 0.0
    %1982 = vmatpush1.msra.mxu0 0.0
    %1983 = vmatprep.subr.mxu0 0.0
    %1984 = vmatpush1.msra.mxu0 0.0
    %1985 = vmatprep.subr.mxu0 0.0
    %1986 = vmatpush1.msra.mxu0 0.0
    %1987 = vmatprep.subr.mxu0 0.0
    %1988 = vmatpush1.msra.mxu0 0.0
    %1989 = vmatprep.subr.mxu0 0.0
    %1990 = vmatpush1.msra.mxu0 0.0
    %1991 = vmatprep.subr.mxu0 0.0
    %1992 = vmatpush1.msra.mxu0 0.0
    %1993 = vmatprep.subr.mxu0 0.0
    %1994 = vmatpush1.msra.mxu0 0.0
    %1995 = vmatprep.subr.mxu0 0.0
    %1996 = vmatpush1.msra.mxu0 0.0
    %1997 = vmatprep.subr.mxu0 0.0
    %1998 = vmatpush1.msra.mxu0 0.0
    %1999 = vmatprep.subr.mxu0 0.0
    %2000 = vmatpush1.msra.mxu0 0.0
    %2001 = vmatprep.subr.mxu0 0.0
    %2002 = vmatpush1.msra.mxu0 0.0
    %2003 = vmatprep.subr.mxu0 0.0
    %2004 = vmatpush1.msra.mxu0 0.0
    %2005 = vmatprep.subr.mxu0 0.0
    %2006 = vmatpush1.msra.mxu0 0.0
    %2007 = vmatprep.subr.mxu0 0.0
    %2008 = vmatpush1.msra.mxu0 0.0
    %2009 = vmatprep.subr.mxu0 0.0
    %2010 = vmatpush1.msra.mxu0 0.0
    %2011 = vmatprep.subr.mxu0 0.0
    %2012 = vmatpush1.msra.mxu0 0.0
    %2013 = vmatprep.subr.mxu0 0.0
    %2014 = vmatpush1.msra.mxu0 0.0
    %2015 = vmatprep.subr.mxu0 0.0
    %2016 = vmatpush1.msra.mxu0 0.0
    %2017 = vmatprep.subr.mxu0 0.0
    %2018 = vmatpush1.msra.mxu0 0.0
    %2019 = vmatprep.subr.mxu0 0.0
    %2020 = vmatpush1.msra.mxu0 0.0
    %2021 = vmatprep.mubr.f32.mxu0 0.0
    %2022 = vmatmul.mubr.f32.gmra.mrb[0].mxu0 %v1945
    %v2023 = vpop.f32.mrb[0].mxu0
    %v2024 = vadd.f32 0.0, %v2023
    %v2025 = vpop.f32.mrb[0].mxu0
    %2026 = vmatprep.mubr.f32.mxu0 0.0
    %2027 = vmatmul.mubr.f32.gmra.mrb[0].mxu0 %v1948
    %v2028 = vpop.f32.mrb[0].mxu0
    %v2029 = vadd.f32 0.0, %v2028
    %v2030 = vpop.f32.mrb[0].mxu0
    %2031 = vmatprep.mubr.f32.mxu0 0.0
    %2032 = vmatmul.mubr.f32.gmra.mrb[0].mxu0 %v1951
    %v2033 = vpop.f32.mrb[0].mxu0
    %v2034 = vadd.f32 0.0, %v2033
    %v2035 = vpop.f32.mrb[0].mxu0
    %2036 = vdwg.mxu0
    %v2037 = vld [vmem:[%s7] sm:$0xff]
    %v2038 = vld [vmem:[%s7 + $0x8] sm:$0xff]
    %v2039 = vld [vmem:[%s7 + $0x10] sm:$0xff]
    %v2040 = vld [vmem:[%s7 + $0x18] sm:$0xff]
    %v2041 = vld [vmem:[%s7 + $0x20] sm:$0xff]
    %v2042 = vld [vmem:[%s7 + $0x28] sm:$0xff]
    %v2043 = vld [vmem:[%s7 + $0x30] sm:$0xff]
    %v2044 = vld [vmem:[%s7 + $0x38] sm:$0xff]
    %v2045 = vld [vmem:[%s7 + $0x40] sm:$0xff]
    %v2046 = vld [vmem:[%s7 + $0x48] sm:$0xff]
    %v2047 = vld [vmem:[%s7 + $0x50] sm:$0xff]
    %v2048 = vld [vmem:[%s7 + $0x58] sm:$0xff]
    %v2049 = vld [vmem:[%s7 + $0x60] sm:$0xff]
    %v2050 = vld [vmem:[%s7 + $0x68] sm:$0xff]
    %v2051 = vld [vmem:[%s7 + $0x70] sm:$0xff]
    %v2052 = vld [vmem:[%s7 + $0x78] sm:$0xff]
    %v2053 = vld [vmem:[%s7 + $0x80] sm:$0xff]
    %v2054 = vld [vmem:[%s7 + $0x88] sm:$0xff]
    %v2055 = vld [vmem:[%s7 + $0x90] sm:$0xff]
    %v2056 = vld [vmem:[%s7 + $0x98] sm:$0xff]
    %v2057 = vld [vmem:[%s7 + $0xa0] sm:$0xf]
    %v2058 = vld [vmem:[%s7 + $0xa8] sm:$0xf]
    %s2059 = scalar_lea.vmem %s6, 24
    %v2060 = vld [vmem:[%s2059] sm:$0xff]
    %v2061 = vld [vmem:[%s2059 + $0x8] sm:$0xff]
    %v2062 = vld [vmem:[%s2059 + $0x10] sm:$0xf]
    %v2064 = vsel %vm1943, %v2060, 0
    %v2067 = vsel %vm1943, %v2061, 0
    %v2070 = vsel %vm1943, %v2062, 0
    %2072 = vmatprep.subr.mxu0 0.0
    %2073 = vmatpush1.msra.mxu0 %v1936
    %2074 = vmatprep.subr.mxu0 0.0
    %2075 = vmatpush1.msra.mxu0 %v1937
    %2076 = vmatprep.subr.mxu0 0.0
    %2077 = vmatpush1.msra.mxu0 %v1938
    %2078 = vmatprep.subr.mxu0 0.0
    %2079 = vmatpush1.msra.mxu0 %v1955
    %2080 = vmatprep.subr.mxu0 0.0
    %2081 = vmatpush1.msra.mxu0 0.0
    %2082 = vmatprep.subr.mxu0 0.0
    %2083 = vmatpush1.msra.mxu0 0.0
    %2084 = vmatprep.subr.mxu0 0.0
    %2085 = vmatpush1.msra.mxu0 0.0
    %2086 = vmatprep.subr.mxu0 0.0
    %2087 = vmatpush1.msra.mxu0 0.0
    %2088 = vmatprep.subr.mxu0 0.0
    %2089 = vmatpush1.msra.mxu0 0.0
    %2090 = vmatprep.subr.mxu0 0.0
    %2091 = vmatpush1.msra.mxu0 0.0
    %2092 = vmatprep.subr.mxu0 0.0
    %2093 = vmatpush1.msra.mxu0 0.0
    %2094 = vmatprep.subr.mxu0 0.0
    %2095 = vmatpush1.msra.mxu0 0.0
    %2096 = vmatprep.subr.mxu0 0.0
    %2097 = vmatpush1.msra.mxu0 0.0
    %2098 = vmatprep.subr.mxu0 0.0
    %2099 = vmatpush1.msra.mxu0 0.0
    %2100 = vmatprep.subr.mxu0 0.0
    %2101 = vmatpush1.msra.mxu0 0.0
    %2102 = vmatprep.subr.mxu0 0.0
    %2103 = vmatpush1.msra.mxu0 0.0
    %2104 = vmatprep.subr.mxu0 0.0
    %2105 = vmatpush1.msra.mxu0 0.0
    %2106 = vmatprep.subr.mxu0 0.0
    %2107 = vmatpush1.msra.mxu0 0.0
    %2108 = vmatprep.subr.mxu0 0.0
    %2109 = vmatpush1.msra.mxu0 0.0
    %2110 = vmatprep.subr.mxu0 0.0
    %2111 = vmatpush1.msra.mxu0 0.0
    %2112 = vmatprep.subr.mxu0 0.0
    %2113 = vmatpush1.msra.mxu0 0.0
    %2114 = vmatprep.subr.mxu0 0.0
    %2115 = vmatpush1.msra.mxu0 0.0
    %2116 = vmatprep.subr.mxu0 0.0
    %2117 = vmatpush1.msra.mxu0 0.0
    %2118 = vmatprep.subr.mxu0 0.0
    %2119 = vmatpush1.msra.mxu0 0.0
    %2120 = vmatprep.subr.mxu0 0.0
    %2121 = vmatpush1.msra.mxu0 0.0
    %2122 = vmatprep.subr.mxu0 0.0
    %2123 = vmatpush1.msra.mxu0 0.0
    %2124 = vmatprep.subr.mxu0 0.0
    %2125 = vmatpush1.msra.mxu0 0.0
    %2126 = vmatprep.subr.mxu0 0.0
    %2127 = vmatpush1.msra.mxu0 0.0
    %2128 = vmatprep.subr.mxu0 0.0
    %2129 = vmatpush1.msra.mxu0 0.0
    %2130 = vmatprep.subr.mxu0 0.0
    %2131 = vmatpush1.msra.mxu0 0.0
    %2132 = vmatprep.subr.mxu0 0.0
    %2133 = vmatpush1.msra.mxu0 0.0
    %2134 = vmatprep.subr.mxu0 0.0
    %2135 = vmatpush1.msra.mxu0 0.0
    %2136 = vmatprep.mubr.f32.mxu0 0.0
    %2137 = vmatmul.mubr.f32.gmra.mrb[0].mxu0 %v2064
    %v2138 = vpop.f32.mrb[0].mxu0
    %v2139 = vadd.f32 0.0, %v2138
    %v2140 = vpop.f32.mrb[0].mxu0
    %2141 = vmatprep.mubr.f32.mxu0 0.0
    %2142 = vmatmul.mubr.f32.gmra.mrb[0].mxu0 %v2067
    %v2143 = vpop.f32.mrb[0].mxu0
    %v2144 = vadd.f32 0.0, %v2143
    %v2145 = vpop.f32.mrb[0].mxu0
    %2146 = vmatprep.mubr.f32.mxu0 0.0
    %2147 = vmatmul.mubr.f32.gmra.mrb[0].mxu0 %v2070
    %v2148 = vpop.f32.mrb[0].mxu0
    %v2149 = vadd.f32 0.0, %v2148
    %v2150 = vpop.f32.mrb[0].mxu0
    %2151 = vdwg.mxu0
    %s2152 = scalar_lea.vmem %s7, 176
    %v2153 = vld [vmem:[%s2152] sm:$0xff]
    %v2154 = vld [vmem:[%s2152 + $0x8] sm:$0xff]
    %v2155 = vld [vmem:[%s2152 + $0x10] sm:$0xff]
    %v2156 = vld [vmem:[%s2152 + $0x18] sm:$0xff]
    %v2157 = vld [vmem:[%s2152 + $0x20] sm:$0xff]
    %v2158 = vld [vmem:[%s2152 + $0x28] sm:$0xff]
    %v2159 = vld [vmem:[%s2152 + $0x30] sm:$0xff]
    %v2160 = vld [vmem:[%s2152 + $0x38] sm:$0xff]
    %v2161 = vld [vmem:[%s2152 + $0x40] sm:$0xff]
    %v2162 = vld [vmem:[%s2152 + $0x48] sm:$0xff]
    %v2163 = vld [vmem:[%s2152 + $0x50] sm:$0xff]
    %v2164 = vld [vmem:[%s2152 + $0x58] sm:$0xff]
    %v2165 = vld [vmem:[%s2152 + $0x60] sm:$0xff]
    %v2166 = vld [vmem:[%s2152 + $0x68] sm:$0xff]
    %v2167 = vld [vmem:[%s2152 + $0x70] sm:$0xff]
    %v2168 = vld [vmem:[%s2152 + $0x78] sm:$0xff]
    %v2169 = vld [vmem:[%s2152 + $0x80] sm:$0xff]
    %v2170 = vld [vmem:[%s2152 + $0x88] sm:$0xff]
    %v2171 = vld [vmem:[%s2152 + $0x90] sm:$0xff]
    %v2172 = vld [vmem:[%s2152 + $0x98] sm:$0xff]
    %v2173 = vld [vmem:[%s2152 + $0xa0] sm:$0xf]
    %v2174 = vld [vmem:[%s2152 + $0xa8] sm:$0xf]
    %vm2175 = vcmask 687104
    %v2177 = vsel %vm2175, %v2139, 0
    %v2180 = vsel %vm2175, %v2144, 0
    %v2183 = vsel %vm2175, %v2149, 0
    %v2186 = vsel %vm1953, %v2173, 0
    %v2189 = vsel %vm1953, %v2174, 0
    %2191 = vmatprep.subr.mxu0 %v2154
    %2192 = vmatpush1.msra.mxu0 %v2153
    %2193 = vmatprep.subr.mxu0 %v2156
    %2194 = vmatpush1.msra.mxu0 %v2155
    %2195 = vmatprep.subr.mxu0 %v2158
    %2196 = vmatpush1.msra.mxu0 %v2157
    %2197 = vmatprep.subr.mxu0 %v2160
    %2198 = vmatpush1.msra.mxu0 %v2159
    %2199 = vmatprep.subr.mxu0 %v2162
    %2200 = vmatpush1.msra.mxu0 %v2161
    %2201 = vmatprep.subr.mxu0 %v2164
    %2202 = vmatpush1.msra.mxu0 %v2163
    %2203 = vmatprep.subr.mxu0 %v2166
    %2204 = vmatpush1.msra.mxu0 %v2165
    %2205 = vmatprep.subr.mxu0 %v2168
    %2206 = vmatpush1.msra.mxu0 %v2167
    %2207 = vmatprep.subr.mxu0 %v2170
    %2208 = vmatpush1.msra.mxu0 %v2169
    %2209 = vmatprep.subr.mxu0 %v2172
    %2210 = vmatpush1.msra.mxu0 %v2171
    %2211 = vmatprep.subr.mxu0 %v2189
    %2212 = vmatpush1.msra.mxu0 %v2186
    %2213 = vmatprep.subr.mxu0 0.0
    %2214 = vmatpush1.msra.mxu0 0.0
    %2215 = vmatprep.subr.mxu0 0.0
    %2216 = vmatpush1.msra.mxu0 0.0
    %2217 = vmatprep.subr.mxu0 0.0
    %2218 = vmatpush1.msra.mxu0 0.0
    %2219 = vmatprep.subr.mxu0 0.0
    %2220 = vmatpush1.msra.mxu0 0.0
    %2221 = vmatprep.subr.mxu0 0.0
    %2222 = vmatpush1.msra.mxu0 0.0
    %2223 = vmatprep.subr.mxu0 0.0
    %2224 = vmatpush1.msra.mxu0 0.0
    %2225 = vmatprep.subr.mxu0 0.0
    %2226 = vmatpush1.msra.mxu0 0.0
    %2227 = vmatprep.subr.mxu0 0.0
    %2228 = vmatpush1.msra.mxu0 0.0
    %2229 = vmatprep.subr.mxu0 0.0
    %2230 = vmatpush1.msra.mxu0 0.0
    %2231 = vmatprep.subr.mxu0 0.0
    %2232 = vmatpush1.msra.mxu0 0.0
    %2233 = vmatprep.subr.mxu0 0.0
    %2234 = vmatpush1.msra.mxu0 0.0
    %2235 = vmatprep.subr.mxu0 0.0
    %2236 = vmatpush1.msra.mxu0 0.0
    %2237 = vmatprep.subr.mxu0 0.0
    %2238 = vmatpush1.msra.mxu0 0.0
    %2239 = vmatprep.subr.mxu0 0.0
    %2240 = vmatpush1.msra.mxu0 0.0
    %2241 = vmatprep.subr.mxu0 0.0
    %2242 = vmatpush1.msra.mxu0 0.0
    %2243 = vmatprep.subr.mxu0 0.0
    %2244 = vmatpush1.msra.mxu0 0.0
    %2245 = vmatprep.subr.mxu0 0.0
    %2246 = vmatpush1.msra.mxu0 0.0
    %2247 = vmatprep.subr.mxu0 0.0
    %2248 = vmatpush1.msra.mxu0 0.0
    %2249 = vmatprep.subr.mxu0 0.0
    %2250 = vmatpush1.msra.mxu0 0.0
    %2251 = vmatprep.subr.mxu0 0.0
    %2252 = vmatpush1.msra.mxu0 0.0
    %2253 = vmatprep.subr.mxu0 0.0
    %2254 = vmatpush1.msra.mxu0 0.0
    %2255 = vmatprep.mubr.f32.mxu0 0.0
    %2256 = vmatmul.mubr.f32.gmra.mrb[0].mxu0 %v2177
    %v2257 = vpop.f32.mrb[0].mxu0
    %v2258 = vadd.f32 0.0, %v2257
    %v2259 = vpop.f32.mrb[0].mxu0
    %v2260 = vadd.f32 0.0, %v2259
    %2261 = vmatprep.mubr.f32.mxu0 0.0
    %2262 = vmatmul.mubr.f32.gmra.mrb[0].mxu0 %v2180
    %v2263 = vpop.f32.mrb[0].mxu0
    %v2264 = vadd.f32 0.0, %v2263
    %v2265 = vpop.f32.mrb[0].mxu0
    %v2266 = vadd.f32 0.0, %v2265
    %2267 = vmatprep.mubr.f32.mxu0 0.0
    %2268 = vmatmul.mubr.f32.gmra.mrb[0].mxu0 %v2183
    %v2269 = vpop.f32.mrb[0].mxu0
    %v2270 = vadd.f32 0.0, %v2269
    %v2271 = vpop.f32.mrb[0].mxu0
    %v2272 = vadd.f32 0.0, %v2271
    %2273 = vdwg.mxu0
    %v2275 = vsel %vm2175, %v2024, 0
    %v2278 = vsel %vm2175, %v2029, 0
    %v2281 = vsel %vm2175, %v2034, 0
    %v2284 = vsel %vm1953, %v2057, 0
    %v2287 = vsel %vm1953, %v2058, 0
    %2289 = vmatprep.subr.mxu0 %v2038
    %2290 = vmatpush1.msra.mxu0 %v2037
    %2291 = vmatprep.subr.mxu0 %v2040
    %2292 = vmatpush1.msra.mxu0 %v2039
    %2293 = vmatprep.subr.mxu0 %v2042
    %2294 = vmatpush1.msra.mxu0 %v2041
    %2295 = vmatprep.subr.mxu0 %v2044
    %2296 = vmatpush1.msra.mxu0 %v2043
    %2297 = vmatprep.subr.mxu0 %v2046
    %2298 = vmatpush1.msra.mxu0 %v2045
    %2299 = vmatprep.subr.mxu0 %v2048
    %2300 = vmatpush1.msra.mxu0 %v2047
    %2301 = vmatprep.subr.mxu0 %v2050
    %2302 = vmatpush1.msra.mxu0 %v2049
    %2303 = vmatprep.subr.mxu0 %v2052
    %2304 = vmatpush1.msra.mxu0 %v2051
    %2305 = vmatprep.subr.mxu0 %v2054
    %2306 = vmatpush1.msra.mxu0 %v2053
    %2307 = vmatprep.subr.mxu0 %v2056
    %2308 = vmatpush1.msra.mxu0 %v2055
    %2309 = vmatprep.subr.mxu0 %v2287
    %2310 = vmatpush1.msra.mxu0 %v2284
    %2311 = vmatprep.subr.mxu0 0.0
    %2312 = vmatpush1.msra.mxu0 0.0
    %2313 = vmatprep.subr.mxu0 0.0
    %2314 = vmatpush1.msra.mxu0 0.0
    %2315 = vmatprep.subr.mxu0 0.0
    %2316 = vmatpush1.msra.mxu0 0.0
    %2317 = vmatprep.subr.mxu0 0.0
    %2318 = vmatpush1.msra.mxu0 0.0
    %2319 = vmatprep.subr.mxu0 0.0
    %2320 = vmatpush1.msra.mxu0 0.0
    %2321 = vmatprep.subr.mxu0 0.0
    %2322 = vmatpush1.msra.mxu0 0.0
    %2323 = vmatprep.subr.mxu0 0.0
    %2324 = vmatpush1.msra.mxu0 0.0
    %2325 = vmatprep.subr.mxu0 0.0
    %2326 = vmatpush1.msra.mxu0 0.0
    %2327 = vmatprep.subr.mxu0 0.0
    %2328 = vmatpush1.msra.mxu0 0.0
    %2329 = vmatprep.subr.mxu0 0.0
    %2330 = vmatpush1.msra.mxu0 0.0
    %2331 = vmatprep.subr.mxu0 0.0
    %2332 = vmatpush1.msra.mxu0 0.0
    %2333 = vmatprep.subr.mxu0 0.0
    %2334 = vmatpush1.msra.mxu0 0.0
    %2335 = vmatprep.subr.mxu0 0.0
    %2336 = vmatpush1.msra.mxu0 0.0
    %2337 = vmatprep.subr.mxu0 0.0
    %2338 = vmatpush1.msra.mxu0 0.0
    %2339 = vmatprep.subr.mxu0 0.0
    %2340 = vmatpush1.msra.mxu0 0.0
    %2341 = vmatprep.subr.mxu0 0.0
    %2342 = vmatpush1.msra.mxu0 0.0
    %2343 = vmatprep.subr.mxu0 0.0
    %2344 = vmatpush1.msra.mxu0 0.0
    %2345 = vmatprep.subr.mxu0 0.0
    %2346 = vmatpush1.msra.mxu0 0.0
    %2347 = vmatprep.subr.mxu0 0.0
    %2348 = vmatpush1.msra.mxu0 0.0
    %2349 = vmatprep.subr.mxu0 0.0
    %2350 = vmatpush1.msra.mxu0 0.0
    %2351 = vmatprep.subr.mxu0 0.0
    %2352 = vmatpush1.msra.mxu0 0.0
    %2353 = vmatprep.mubr.f32.mxu0 0.0
    %2354 = vmatmul.mubr.f32.gmra.mrb[0].mxu0 %v2275
    %v2355 = vpop.f32.mrb[0].mxu0
    %v2356 = vadd.f32 %v2258, %v2355
    %v2357 = vpop.f32.mrb[0].mxu0
    %v2358 = vadd.f32 %v2260, %v2357
    %2359 = vmatprep.mubr.f32.mxu0 0.0
    %2360 = vmatmul.mubr.f32.gmra.mrb[0].mxu0 %v2278
    %v2361 = vpop.f32.mrb[0].mxu0
    %v2362 = vadd.f32 %v2264, %v2361
    %v2363 = vpop.f32.mrb[0].mxu0
    %v2364 = vadd.f32 %v2266, %v2363
    %2365 = vmatprep.mubr.f32.mxu0 0.0
    %2366 = vmatmul.mubr.f32.gmra.mrb[0].mxu0 %v2281
    %v2367 = vpop.f32.mrb[0].mxu0
    %v2368 = vadd.f32 %v2270, %v2367
    %v2369 = vpop.f32.mrb[0].mxu0
    %v2370 = vadd.f32 %v2272, %v2369
    %2371 = vdwg.mxu0
    %s2372 = scalar_lea.vmem %s6, 48
    %v2373 = vld [vmem:[%s2372] sm:$0xff]
    %v2374 = vld [vmem:[%s2372 + $0x8] sm:$0xff]
    %v2375 = vld [vmem:[%s2372 + $0x10] sm:$0xf]
    %v2377 = vsel %vm1943, %v2373, 0
    %v2380 = vsel %vm1943, %v2374, 0
    %v2383 = vsel %vm1943, %v2375, 0
    %2385 = vmatprep.subr.mxu0 0.0
    %2386 = vmatpush1.msra.mxu0 %v1936
    %2387 = vmatprep.subr.mxu0 0.0
    %2388 = vmatpush1.msra.mxu0 %v1937
    %2389 = vmatprep.subr.mxu0 0.0
    %2390 = vmatpush1.msra.mxu0 %v1938
    %2391 = vmatprep.subr.mxu0 0.0
    %2392 = vmatpush1.msra.mxu0 %v1955
    %2393 = vmatprep.subr.mxu0 0.0
    %2394 = vmatpush1.msra.mxu0 0.0
    %2395 = vmatprep.subr.mxu0 0.0
    %2396 = vmatpush1.msra.mxu0 0.0
    %2397 = vmatprep.subr.mxu0 0.0
    %2398 = vmatpush1.msra.mxu0 0.0
    %2399 = vmatprep.subr.mxu0 0.0
    %2400 = vmatpush1.msra.mxu0 0.0
    %2401 = vmatprep.subr.mxu0 0.0
    %2402 = vmatpush1.msra.mxu0 0.0
    %2403 = vmatprep.subr.mxu0 0.0
    %2404 = vmatpush1.msra.mxu0 0.0
    %2405 = vmatprep.subr.mxu0 0.0
    %2406 = vmatpush1.msra.mxu0 0.0
    %2407 = vmatprep.subr.mxu0 0.0
    %2408 = vmatpush1.msra.mxu0 0.0
    %2409 = vmatprep.subr.mxu0 0.0
    %2410 = vmatpush1.msra.mxu0 0.0
    %2411 = vmatprep.subr.mxu0 0.0
    %2412 = vmatpush1.msra.mxu0 0.0
    %2413 = vmatprep.subr.mxu0 0.0
    %2414 = vmatpush1.msra.mxu0 0.0
    %2415 = vmatprep.subr.mxu0 0.0
    %2416 = vmatpush1.msra.mxu0 0.0
    %2417 = vmatprep.subr.mxu0 0.0
    %2418 = vmatpush1.msra.mxu0 0.0
    %2419 = vmatprep.subr.mxu0 0.0
    %2420 = vmatpush1.msra.mxu0 0.0
    %2421 = vmatprep.subr.mxu0 0.0
    %2422 = vmatpush1.msra.mxu0 0.0
    %2423 = vmatprep.subr.mxu0 0.0
    %2424 = vmatpush1.msra.mxu0 0.0
    %2425 = vmatprep.subr.mxu0 0.0
    %2426 = vmatpush1.msra.mxu0 0.0
    %2427 = vmatprep.subr.mxu0 0.0
    %2428 = vmatpush1.msra.mxu0 0.0
    %2429 = vmatprep.subr.mxu0 0.0
    %2430 = vmatpush1.msra.mxu0 0.0
    %2431 = vmatprep.subr.mxu0 0.0
    %2432 = vmatpush1.msra.mxu0 0.0
    %2433 = vmatprep.subr.mxu0 0.0
    %2434 = vmatpush1.msra.mxu0 0.0
    %2435 = vmatprep.subr.mxu0 0.0
    %2436 = vmatpush1.msra.mxu0 0.0
    %2437 = vmatprep.subr.mxu0 0.0
    %2438 = vmatpush1.msra.mxu0 0.0
    %2439 = vmatprep.subr.mxu0 0.0
    %2440 = vmatpush1.msra.mxu0 0.0
    %2441 = vmatprep.subr.mxu0 0.0
    %2442 = vmatpush1.msra.mxu0 0.0
    %2443 = vmatprep.subr.mxu0 0.0
    %2444 = vmatpush1.msra.mxu0 0.0
    %2445 = vmatprep.subr.mxu0 0.0
    %2446 = vmatpush1.msra.mxu0 0.0
    %2447 = vmatprep.subr.mxu0 0.0
    %2448 = vmatpush1.msra.mxu0 0.0
    %2449 = vmatprep.mubr.f32.mxu0 0.0
    %2450 = vmatmul.mubr.f32.gmra.mrb[0].mxu0 %v2377
    %v2451 = vpop.f32.mrb[0].mxu0
    %v2452 = vadd.f32 0.0, %v2451
    %v2453 = vpop.f32.mrb[0].mxu0
    %2454 = vmatprep.mubr.f32.mxu0 0.0
    %2455 = vmatmul.mubr.f32.gmra.mrb[0].mxu0 %v2380
    %v2456 = vpop.f32.mrb[0].mxu0
    %v2457 = vadd.f32 0.0, %v2456
    %v2458 = vpop.f32.mrb[0].mxu0
    %2459 = vmatprep.mubr.f32.mxu0 0.0
    %2460 = vmatmul.mubr.f32.gmra.mrb[0].mxu0 %v2383
    %v2461 = vpop.f32.mrb[0].mxu0
    %v2462 = vadd.f32 0.0, %v2461
    %v2463 = vpop.f32.mrb[0].mxu0
    %2464 = vdwg.mxu0
    %s2465 = scalar_lea.vmem %s7, 352
    %v2466 = vld [vmem:[%s2465] sm:$0xff]
    %v2467 = vld [vmem:[%s2465 + $0x8] sm:$0xff]
    %v2468 = vld [vmem:[%s2465 + $0x10] sm:$0xff]
    %v2469 = vld [vmem:[%s2465 + $0x18] sm:$0xff]
    %v2470 = vld [vmem:[%s2465 + $0x20] sm:$0xff]
    %v2471 = vld [vmem:[%s2465 + $0x28] sm:$0xff]
    %v2472 = vld [vmem:[%s2465 + $0x30] sm:$0xff]
    %v2473 = vld [vmem:[%s2465 + $0x38] sm:$0xff]
    %v2474 = vld [vmem:[%s2465 + $0x40] sm:$0xff]
    %v2475 = vld [vmem:[%s2465 + $0x48] sm:$0xff]
    %v2476 = vld [vmem:[%s2465 + $0x50] sm:$0xff]
    %v2477 = vld [vmem:[%s2465 + $0x58] sm:$0xff]
    %v2478 = vld [vmem:[%s2465 + $0x60] sm:$0xff]
    %v2479 = vld [vmem:[%s2465 + $0x68] sm:$0xff]
    %v2480 = vld [vmem:[%s2465 + $0x70] sm:$0xff]
    %v2481 = vld [vmem:[%s2465 + $0x78] sm:$0xff]
    %v2482 = vld [vmem:[%s2465 + $0x80] sm:$0xff]
    %v2483 = vld [vmem:[%s2465 + $0x88] sm:$0xff]
    %v2484 = vld [vmem:[%s2465 + $0x90] sm:$0xff]
    %v2485 = vld [vmem:[%s2465 + $0x98] sm:$0xff]
    %v2486 = vld [vmem:[%s2465 + $0xa0] sm:$0xf]
    %v2487 = vld [vmem:[%s2465 + $0xa8] sm:$0xf]
    %v2489 = vsel %vm2175, %v2452, 0
    %v2492 = vsel %vm2175, %v2457, 0
    %v2495 = vsel %vm2175, %v2462, 0
    %v2498 = vsel %vm1953, %v2486, 0
    %v2501 = vsel %vm1953, %v2487, 0
    %2503 = vmatprep.subr.mxu0 %v2467
    %2504 = vmatpush1.msra.mxu0 %v2466
    %2505 = vmatprep.subr.mxu0 %v2469
    %2506 = vmatpush1.msra.mxu0 %v2468
    %2507 = vmatprep.subr.mxu0 %v2471
    %2508 = vmatpush1.msra.mxu0 %v2470
    %2509 = vmatprep.subr.mxu0 %v2473
    %2510 = vmatpush1.msra.mxu0 %v2472
    %2511 = vmatprep.subr.mxu0 %v2475
    %2512 = vmatpush1.msra.mxu0 %v2474
    %2513 = vmatprep.subr.mxu0 %v2477
    %2514 = vmatpush1.msra.mxu0 %v2476
    %2515 = vmatprep.subr.mxu0 %v2479
    %2516 = vmatpush1.msra.mxu0 %v2478
    %2517 = vmatprep.subr.mxu0 %v2481
    %2518 = vmatpush1.msra.mxu0 %v2480
    %2519 = vmatprep.subr.mxu0 %v2483
    %2520 = vmatpush1.msra.mxu0 %v2482
    %2521 = vmatprep.subr.mxu0 %v2485
    %2522 = vmatpush1.msra.mxu0 %v2484
    %2523 = vmatprep.subr.mxu0 %v2501
    %2524 = vmatpush1.msra.mxu0 %v2498
    %2525 = vmatprep.subr.mxu0 0.0
    %2526 = vmatpush1.msra.mxu0 0.0
    %2527 = vmatprep.subr.mxu0 0.0
    %2528 = vmatpush1.msra.mxu0 0.0
    %2529 = vmatprep.subr.mxu0 0.0
    %2530 = vmatpush1.msra.mxu0 0.0
    %2531 = vmatprep.subr.mxu0 0.0
    %2532 = vmatpush1.msra.mxu0 0.0
    %2533 = vmatprep.subr.mxu0 0.0
    %2534 = vmatpush1.msra.mxu0 0.0
    %2535 = vmatprep.subr.mxu0 0.0
    %2536 = vmatpush1.msra.mxu0 0.0
    %2537 = vmatprep.subr.mxu0 0.0
    %2538 = vmatpush1.msra.mxu0 0.0
    %2539 = vmatprep.subr.mxu0 0.0
    %2540 = vmatpush1.msra.mxu0 0.0
    %2541 = vmatprep.subr.mxu0 0.0
    %2542 = vmatpush1.msra.mxu0 0.0
    %2543 = vmatprep.subr.mxu0 0.0
    %2544 = vmatpush1.msra.mxu0 0.0
    %2545 = vmatprep.subr.mxu0 0.0
    %2546 = vmatpush1.msra.mxu0 0.0
    %2547 = vmatprep.subr.mxu0 0.0
    %2548 = vmatpush1.msra.mxu0 0.0
    %2549 = vmatprep.subr.mxu0 0.0
    %2550 = vmatpush1.msra.mxu0 0.0
    %2551 = vmatprep.subr.mxu0 0.0
    %2552 = vmatpush1.msra.mxu0 0.0
    %2553 = vmatprep.subr.mxu0 0.0
    %2554 = vmatpush1.msra.mxu0 0.0
    %2555 = vmatprep.subr.mxu0 0.0
    %2556 = vmatpush1.msra.mxu0 0.0
    %2557 = vmatprep.subr.mxu0 0.0
    %2558 = vmatpush1.msra.mxu0 0.0
    %2559 = vmatprep.subr.mxu0 0.0
    %2560 = vmatpush1.msra.mxu0 0.0
    %2561 = vmatprep.subr.mxu0 0.0
    %2562 = vmatpush1.msra.mxu0 0.0
    %2563 = vmatprep.subr.mxu0 0.0
    %2564 = vmatpush1.msra.mxu0 0.0
    %2565 = vmatprep.subr.mxu0 0.0
    %2566 = vmatpush1.msra.mxu0 0.0
    %2567 = vmatprep.mubr.f32.mxu0 0.0
    %2568 = vmatmul.mubr.f32.gmra.mrb[0].mxu0 %v2489
    %v2569 = vpop.f32.mrb[0].mxu0
    %v2570 = vadd.f32 0.0, %v2569
    %v2571 = vpop.f32.mrb[0].mxu0
    %v2572 = vadd.f32 0.0, %v2571
    %2573 = vmatprep.mubr.f32.mxu0 0.0
    %2574 = vmatmul.mubr.f32.gmra.mrb[0].mxu0 %v2492
    %v2575 = vpop.f32.mrb[0].mxu0
    %v2576 = vadd.f32 0.0, %v2575
    %v2577 = vpop.f32.mrb[0].mxu0
    %v2578 = vadd.f32 0.0, %v2577
    %2579 = vmatprep.mubr.f32.mxu0 0.0
    %2580 = vmatmul.mubr.f32.gmra.mrb[0].mxu0 %v2495
    %v2581 = vpop.f32.mrb[0].mxu0
    %v2582 = vadd.f32 0.0, %v2581
    %v2583 = vpop.f32.mrb[0].mxu0
    %v2584 = vadd.f32 0.0, %v2583
    %2585 = vdwg.mxu0
    %v2586 = vadd.f32 %v2356, %v2570
    %v2587 = vadd.f32 %v2358, %v2572
    %v2588 = vadd.f32 %v2362, %v2576
    %v2589 = vadd.f32 %v2364, %v2578
    %v2590 = vadd.f32 %v2368, %v2582
    %v2591 = vadd.f32 %v2370, %v2584
    %s2592 = scalar_lea.vmem %s6, 72
    %v2593 = vld [vmem:[%s2592] sm:$0xff]
    %v2594 = vld [vmem:[%s2592 + $0x8] sm:$0xff]
    %v2595 = vld [vmem:[%s2592 + $0x10] sm:$0xf]
    %v2597 = vsel %vm1943, %v2593, 0
    %v2600 = vsel %vm1943, %v2594, 0
    %v2603 = vsel %vm1943, %v2595, 0
    %2605 = vmatprep.subr.mxu0 0.0
    %2606 = vmatpush1.msra.mxu0 %v1936
    %2607 = vmatprep.subr.mxu0 0.0
    %2608 = vmatpush1.msra.mxu0 %v1937
    %2609 = vmatprep.subr.mxu0 0.0
    %2610 = vmatpush1.msra.mxu0 %v1938
    %2611 = vmatprep.subr.mxu0 0.0
    %2612 = vmatpush1.msra.mxu0 %v1955
    %2613 = vmatprep.subr.mxu0 0.0
    %2614 = vmatpush1.msra.mxu0 0.0
    %2615 = vmatprep.subr.mxu0 0.0
    %2616 = vmatpush1.msra.mxu0 0.0
    %2617 = vmatprep.subr.mxu0 0.0
    %2618 = vmatpush1.msra.mxu0 0.0
    %2619 = vmatprep.subr.mxu0 0.0
    %2620 = vmatpush1.msra.mxu0 0.0
    %2621 = vmatprep.subr.mxu0 0.0
    %2622 = vmatpush1.msra.mxu0 0.0
    %2623 = vmatprep.subr.mxu0 0.0
    %2624 = vmatpush1.msra.mxu0 0.0
    %2625 = vmatprep.subr.mxu0 0.0
    %2626 = vmatpush1.msra.mxu0 0.0
    %2627 = vmatprep.subr.mxu0 0.0
    %2628 = vmatpush1.msra.mxu0 0.0
    %2629 = vmatprep.subr.mxu0 0.0
    %2630 = vmatpush1.msra.mxu0 0.0
    %2631 = vmatprep.subr.mxu0 0.0
    %2632 = vmatpush1.msra.mxu0 0.0
    %2633 = vmatprep.subr.mxu0 0.0
    %2634 = vmatpush1.msra.mxu0 0.0
    %2635 = vmatprep.subr.mxu0 0.0
    %2636 = vmatpush1.msra.mxu0 0.0
    %2637 = vmatprep.subr.mxu0 0.0
    %2638 = vmatpush1.msra.mxu0 0.0
    %2639 = vmatprep.subr.mxu0 0.0
    %2640 = vmatpush1.msra.mxu0 0.0
    %2641 = vmatprep.subr.mxu0 0.0
    %2642 = vmatpush1.msra.mxu0 0.0
    %2643 = vmatprep.subr.mxu0 0.0
    %2644 = vmatpush1.msra.mxu0 0.0
    %2645 = vmatprep.subr.mxu0 0.0
    %2646 = vmatpush1.msra.mxu0 0.0
    %2647 = vmatprep.subr.mxu0 0.0
    %2648 = vmatpush1.msra.mxu0 0.0
    %2649 = vmatprep.subr.mxu0 0.0
    %2650 = vmatpush1.msra.mxu0 0.0
    %2651 = vmatprep.subr.mxu0 0.0
    %2652 = vmatpush1.msra.mxu0 0.0
    %2653 = vmatprep.subr.mxu0 0.0
    %2654 = vmatpush1.msra.mxu0 0.0
    %2655 = vmatprep.subr.mxu0 0.0
    %2656 = vmatpush1.msra.mxu0 0.0
    %2657 = vmatprep.subr.mxu0 0.0
    %2658 = vmatpush1.msra.mxu0 0.0
    %2659 = vmatprep.subr.mxu0 0.0
    %2660 = vmatpush1.msra.mxu0 0.0
    %2661 = vmatprep.subr.mxu0 0.0
    %2662 = vmatpush1.msra.mxu0 0.0
    %2663 = vmatprep.subr.mxu0 0.0
    %2664 = vmatpush1.msra.mxu0 0.0
    %2665 = vmatprep.subr.mxu0 0.0
    %2666 = vmatpush1.msra.mxu0 0.0
    %2667 = vmatprep.subr.mxu0 0.0
    %2668 = vmatpush1.msra.mxu0 0.0
    %2669 = vmatprep.mubr.f32.mxu0 0.0
    %2670 = vmatmul.mubr.f32.gmra.mrb[0].mxu0 %v2597
    %v2671 = vpop.f32.mrb[0].mxu0
    %v2672 = vadd.f32 0.0, %v2671
    %v2673 = vpop.f32.mrb[0].mxu0
    %2674 = vmatprep.mubr.f32.mxu0 0.0
    %2675 = vmatmul.mubr.f32.gmra.mrb[0].mxu0 %v2600
    %v2676 = vpop.f32.mrb[0].mxu0
    %v2677 = vadd.f32 0.0, %v2676
    %v2678 = vpop.f32.mrb[0].mxu0
    %2679 = vmatprep.mubr.f32.mxu0 0.0
    %2680 = vmatmul.mubr.f32.gmra.mrb[0].mxu0 %v2603
    %v2681 = vpop.f32.mrb[0].mxu0
    %v2682 = vadd.f32 0.0, %v2681
    %v2683 = vpop.f32.mrb[0].mxu0
    %2684 = vdwg.mxu0
    %s2685 = scalar_lea.vmem %s7, 528
    %v2686 = vld [vmem:[%s2685] sm:$0xff]
    %v2687 = vld [vmem:[%s2685 + $0x8] sm:$0xff]
    %v2688 = vld [vmem:[%s2685 + $0x10] sm:$0xff]
    %v2689 = vld [vmem:[%s2685 + $0x18] sm:$0xff]
    %v2690 = vld [vmem:[%s2685 + $0x20] sm:$0xff]
    %v2691 = vld [vmem:[%s2685 + $0x28] sm:$0xff]
    %v2692 = vld [vmem:[%s2685 + $0x30] sm:$0xff]
    %v2693 = vld [vmem:[%s2685 + $0x38] sm:$0xff]
    %v2694 = vld [vmem:[%s2685 + $0x40] sm:$0xff]
    %v2695 = vld [vmem:[%s2685 + $0x48] sm:$0xff]
    %v2696 = vld [vmem:[%s2685 + $0x50] sm:$0xff]
    %v2697 = vld [vmem:[%s2685 + $0x58] sm:$0xff]
    %v2698 = vld [vmem:[%s2685 + $0x60] sm:$0xff]
    %v2699 = vld [vmem:[%s2685 + $0x68] sm:$0xff]
    %v2700 = vld [vmem:[%s2685 + $0x70] sm:$0xff]
    %v2701 = vld [vmem:[%s2685 + $0x78] sm:$0xff]
    %v2702 = vld [vmem:[%s2685 + $0x80] sm:$0xff]
    %v2703 = vld [vmem:[%s2685 + $0x88] sm:$0xff]
    %v2704 = vld [vmem:[%s2685 + $0x90] sm:$0xff]
    %v2705 = vld [vmem:[%s2685 + $0x98] sm:$0xff]
    %v2706 = vld [vmem:[%s2685 + $0xa0] sm:$0xf]
    %v2707 = vld [vmem:[%s2685 + $0xa8] sm:$0xf]
    %v2709 = vsel %vm2175, %v2672, 0
    %v2712 = vsel %vm2175, %v2677, 0
    %v2715 = vsel %vm2175, %v2682, 0
    %v2718 = vsel %vm1953, %v2706, 0
    %v2721 = vsel %vm1953, %v2707, 0
    %2723 = vmatprep.subr.mxu0 %v2687
    %2724 = vmatpush1.msra.mxu0 %v2686
    %2725 = vmatprep.subr.mxu0 %v2689
    %2726 = vmatpush1.msra.mxu0 %v2688
    %2727 = vmatprep.subr.mxu0 %v2691
    %2728 = vmatpush1.msra.mxu0 %v2690
    %2729 = vmatprep.subr.mxu0 %v2693
    %2730 = vmatpush1.msra.mxu0 %v2692
    %2731 = vmatprep.subr.mxu0 %v2695
    %2732 = vmatpush1.msra.mxu0 %v2694
    %2733 = vmatprep.subr.mxu0 %v2697
    %2734 = vmatpush1.msra.mxu0 %v2696
    %2735 = vmatprep.subr.mxu0 %v2699
    %2736 = vmatpush1.msra.mxu0 %v2698
    %2737 = vmatprep.subr.mxu0 %v2701
    %2738 = vmatpush1.msra.mxu0 %v2700
    %2739 = vmatprep.subr.mxu0 %v2703
    %2740 = vmatpush1.msra.mxu0 %v2702
    %2741 = vmatprep.subr.mxu0 %v2705
    %2742 = vmatpush1.msra.mxu0 %v2704
    %2743 = vmatprep.subr.mxu0 %v2721
    %2744 = vmatpush1.msra.mxu0 %v2718
    %2745 = vmatprep.subr.mxu0 0.0
    %2746 = vmatpush1.msra.mxu0 0.0
    %2747 = vmatprep.subr.mxu0 0.0
    %2748 = vmatpush1.msra.mxu0 0.0
    %2749 = vmatprep.subr.mxu0 0.0
    %2750 = vmatpush1.msra.mxu0 0.0
    %2751 = vmatprep.subr.mxu0 0.0
    %2752 = vmatpush1.msra.mxu0 0.0
    %2753 = vmatprep.subr.mxu0 0.0
    %2754 = vmatpush1.msra.mxu0 0.0
    %2755 = vmatprep.subr.mxu0 0.0
    %2756 = vmatpush1.msra.mxu0 0.0
    %2757 = vmatprep.subr.mxu0 0.0
    %2758 = vmatpush1.msra.mxu0 0.0
    %2759 = vmatprep.subr.mxu0 0.0
    %2760 = vmatpush1.msra.mxu0 0.0
    %2761 = vmatprep.subr.mxu0 0.0
    %2762 = vmatpush1.msra.mxu0 0.0
    %2763 = vmatprep.subr.mxu0 0.0
    %2764 = vmatpush1.msra.mxu0 0.0
    %2765 = vmatprep.subr.mxu0 0.0
    %2766 = vmatpush1.msra.mxu0 0.0
    %2767 = vmatprep.subr.mxu0 0.0
    %2768 = vmatpush1.msra.mxu0 0.0
    %2769 = vmatprep.subr.mxu0 0.0
    %2770 = vmatpush1.msra.mxu0 0.0
    %2771 = vmatprep.subr.mxu0 0.0
    %2772 = vmatpush1.msra.mxu0 0.0
    %2773 = vmatprep.subr.mxu0 0.0
    %2774 = vmatpush1.msra.mxu0 0.0
    %2775 = vmatprep.subr.mxu0 0.0
    %2776 = vmatpush1.msra.mxu0 0.0
    %2777 = vmatprep.subr.mxu0 0.0
    %2778 = vmatpush1.msra.mxu0 0.0
    %2779 = vmatprep.subr.mxu0 0.0
    %2780 = vmatpush1.msra.mxu0 0.0
    %2781 = vmatprep.subr.mxu0 0.0
    %2782 = vmatpush1.msra.mxu0 0.0
    %2783 = vmatprep.subr.mxu0 0.0
    %2784 = vmatpush1.msra.mxu0 0.0
    %2785 = vmatprep.subr.mxu0 0.0
    %2786 = vmatpush1.msra.mxu0 0.0
    %2787 = vmatprep.mubr.f32.mxu0 0.0
    %2788 = vmatmul.mubr.f32.gmra.mrb[0].mxu0 %v2709
    %v2789 = vpop.f32.mrb[0].mxu0
    %v2790 = vadd.f32 0.0, %v2789
    %v2791 = vpop.f32.mrb[0].mxu0
    %v2792 = vadd.f32 0.0, %v2791
    %2793 = vmatprep.mubr.f32.mxu0 0.0
    %2794 = vmatmul.mubr.f32.gmra.mrb[0].mxu0 %v2712
    %v2795 = vpop.f32.mrb[0].mxu0
    %v2796 = vadd.f32 0.0, %v2795
    %v2797 = vpop.f32.mrb[0].mxu0
    %v2798 = vadd.f32 0.0, %v2797
    %2799 = vmatprep.mubr.f32.mxu0 0.0
    %2800 = vmatmul.mubr.f32.gmra.mrb[0].mxu0 %v2715
    %v2801 = vpop.f32.mrb[0].mxu0
    %v2802 = vadd.f32 0.0, %v2801
    %v2803 = vpop.f32.mrb[0].mxu0
    %v2804 = vadd.f32 0.0, %v2803
    %2805 = vdwg.mxu0
    %v2806 = vadd.f32 %v2586, %v2790
    %v2807 = vadd.f32 %v2587, %v2792
    %v2808 = vadd.f32 %v2588, %v2796
    %v2809 = vadd.f32 %v2589, %v2798
    %v2810 = vadd.f32 %v2590, %v2802
    %v2811 = vadd.f32 %v2591, %v2804
    %s2812 = scalar_lea.vmem %s6, 96
    %v2813 = vld [vmem:[%s2812] sm:$0xff]
    %v2814 = vld [vmem:[%s2812 + $0x8] sm:$0xff]
    %v2815 = vld [vmem:[%s2812 + $0x10] sm:$0xf]
    %v2817 = vsel %vm1943, %v2813, 0
    %v2820 = vsel %vm1943, %v2814, 0
    %v2823 = vsel %vm1943, %v2815, 0
    %2825 = vmatprep.subr.mxu0 0.0
    %2826 = vmatpush1.msra.mxu0 %v1936
    %2827 = vmatprep.subr.mxu0 0.0
    %2828 = vmatpush1.msra.mxu0 %v1937
    %2829 = vmatprep.subr.mxu0 0.0
    %2830 = vmatpush1.msra.mxu0 %v1938
    %2831 = vmatprep.subr.mxu0 0.0
    %2832 = vmatpush1.msra.mxu0 %v1955
    %2833 = vmatprep.subr.mxu0 0.0
    %2834 = vmatpush1.msra.mxu0 0.0
    %2835 = vmatprep.subr.mxu0 0.0
    %2836 = vmatpush1.msra.mxu0 0.0
    %2837 = vmatprep.subr.mxu0 0.0
    %2838 = vmatpush1.msra.mxu0 0.0
    %2839 = vmatprep.subr.mxu0 0.0
    %2840 = vmatpush1.msra.mxu0 0.0
    %2841 = vmatprep.subr.mxu0 0.0
    %2842 = vmatpush1.msra.mxu0 0.0
    %2843 = vmatprep.subr.mxu0 0.0
    %2844 = vmatpush1.msra.mxu0 0.0
    %2845 = vmatprep.subr.mxu0 0.0
    %2846 = vmatpush1.msra.mxu0 0.0
    %2847 = vmatprep.subr.mxu0 0.0
    %2848 = vmatpush1.msra.mxu0 0.0
    %2849 = vmatprep.subr.mxu0 0.0
    %2850 = vmatpush1.msra.mxu0 0.0
    %2851 = vmatprep.subr.mxu0 0.0
    %2852 = vmatpush1.msra.mxu0 0.0
    %2853 = vmatprep.subr.mxu0 0.0
    %2854 = vmatpush1.msra.mxu0 0.0
    %2855 = vmatprep.subr.mxu0 0.0
    %2856 = vmatpush1.msra.mxu0 0.0
    %2857 = vmatprep.subr.mxu0 0.0
    %2858 = vmatpush1.msra.mxu0 0.0
    %2859 = vmatprep.subr.mxu0 0.0
    %2860 = vmatpush1.msra.mxu0 0.0
    %2861 = vmatprep.subr.mxu0 0.0
    %2862 = vmatpush1.msra.mxu0 0.0
    %2863 = vmatprep.subr.mxu0 0.0
    %2864 = vmatpush1.msra.mxu0 0.0
    %2865 = vmatprep.subr.mxu0 0.0
    %2866 = vmatpush1.msra.mxu0 0.0
    %2867 = vmatprep.subr.mxu0 0.0
    %2868 = vmatpush1.msra.mxu0 0.0
    %2869 = vmatprep.subr.mxu0 0.0
    %2870 = vmatpush1.msra.mxu0 0.0
    %2871 = vmatprep.subr.mxu0 0.0
    %2872 = vmatpush1.msra.mxu0 0.0
    %2873 = vmatprep.subr.mxu0 0.0
    %2874 = vmatpush1.msra.mxu0 0.0
    %2875 = vmatprep.subr.mxu0 0.0
    %2876 = vmatpush1.msra.mxu0 0.0
    %2877 = vmatprep.subr.mxu0 0.0
    %2878 = vmatpush1.msra.mxu0 0.0
    %2879 = vmatprep.subr.mxu0 0.0
    %2880 = vmatpush1.msra.mxu0 0.0
    %2881 = vmatprep.subr.mxu0 0.0
    %2882 = vmatpush1.msra.mxu0 0.0
    %2883 = vmatprep.subr.mxu0 0.0
    %2884 = vmatpush1.msra.mxu0 0.0
    %2885 = vmatprep.subr.mxu0 0.0
    %2886 = vmatpush1.msra.mxu0 0.0
    %2887 = vmatprep.subr.mxu0 0.0
    %2888 = vmatpush1.msra.mxu0 0.0
    %2889 = vmatprep.mubr.f32.mxu0 0.0
    %2890 = vmatmul.mubr.f32.gmra.mrb[0].mxu0 %v2817
    %v2891 = vpop.f32.mrb[0].mxu0
    %v2892 = vadd.f32 0.0, %v2891
    %v2893 = vpop.f32.mrb[0].mxu0
    %2894 = vmatprep.mubr.f32.mxu0 0.0
    %2895 = vmatmul.mubr.f32.gmra.mrb[0].mxu0 %v2820
    %v2896 = vpop.f32.mrb[0].mxu0
    %v2897 = vadd.f32 0.0, %v2896
    %v2898 = vpop.f32.mrb[0].mxu0
    %2899 = vmatprep.mubr.f32.mxu0 0.0
    %2900 = vmatmul.mubr.f32.gmra.mrb[0].mxu0 %v2823
    %v2901 = vpop.f32.mrb[0].mxu0
    %v2902 = vadd.f32 0.0, %v2901
    %v2903 = vpop.f32.mrb[0].mxu0
    %2904 = vdwg.mxu0
    %s2905 = scalar_lea.vmem %s7, 704
    %v2906 = vld [vmem:[%s2905] sm:$0xff]
    %v2907 = vld [vmem:[%s2905 + $0x8] sm:$0xff]
    %v2908 = vld [vmem:[%s2905 + $0x10] sm:$0xff]
    %v2909 = vld [vmem:[%s2905 + $0x18] sm:$0xff]
    %v2910 = vld [vmem:[%s2905 + $0x20] sm:$0xff]
    %v2911 = vld [vmem:[%s2905 + $0x28] sm:$0xff]
    %v2912 = vld [vmem:[%s2905 + $0x30] sm:$0xff]
    %v2913 = vld [vmem:[%s2905 + $0x38] sm:$0xff]
    %v2914 = vld [vmem:[%s2905 + $0x40] sm:$0xff]
    %v2915 = vld [vmem:[%s2905 + $0x48] sm:$0xff]
    %v2916 = vld [vmem:[%s2905 + $0x50] sm:$0xff]
    %v2917 = vld [vmem:[%s2905 + $0x58] sm:$0xff]
    %v2918 = vld [vmem:[%s2905 + $0x60] sm:$0xff]
    %v2919 = vld [vmem:[%s2905 + $0x68] sm:$0xff]
    %v2920 = vld [vmem:[%s2905 + $0x70] sm:$0xff]
    %v2921 = vld [vmem:[%s2905 + $0x78] sm:$0xff]
    %v2922 = vld [vmem:[%s2905 + $0x80] sm:$0xff]
    %v2923 = vld [vmem:[%s2905 + $0x88] sm:$0xff]
    %v2924 = vld [vmem:[%s2905 + $0x90] sm:$0xff]
    %v2925 = vld [vmem:[%s2905 + $0x98] sm:$0xff]
    %v2926 = vld [vmem:[%s2905 + $0xa0] sm:$0xf]
    %v2927 = vld [vmem:[%s2905 + $0xa8] sm:$0xf]
    %v2929 = vsel %vm2175, %v2892, 0
    %v2932 = vsel %vm2175, %v2897, 0
    %v2935 = vsel %vm2175, %v2902, 0
    %v2938 = vsel %vm1953, %v2926, 0
    %v2941 = vsel %vm1953, %v2927, 0
    %2943 = vmatprep.subr.mxu0 %v2907
    %2944 = vmatpush1.msra.mxu0 %v2906
    %2945 = vmatprep.subr.mxu0 %v2909
    %2946 = vmatpush1.msra.mxu0 %v2908
    %2947 = vmatprep.subr.mxu0 %v2911
    %2948 = vmatpush1.msra.mxu0 %v2910
    %2949 = vmatprep.subr.mxu0 %v2913
    %2950 = vmatpush1.msra.mxu0 %v2912
    %2951 = vmatprep.subr.mxu0 %v2915
    %2952 = vmatpush1.msra.mxu0 %v2914
    %2953 = vmatprep.subr.mxu0 %v2917
    %2954 = vmatpush1.msra.mxu0 %v2916
    %2955 = vmatprep.subr.mxu0 %v2919
    %2956 = vmatpush1.msra.mxu0 %v2918
    %2957 = vmatprep.subr.mxu0 %v2921
    %2958 = vmatpush1.msra.mxu0 %v2920
    %2959 = vmatprep.subr.mxu0 %v2923
    %2960 = vmatpush1.msra.mxu0 %v2922
    %2961 = vmatprep.subr.mxu0 %v2925
    %2962 = vmatpush1.msra.mxu0 %v2924
    %2963 = vmatprep.subr.mxu0 %v2941
    %2964 = vmatpush1.msra.mxu0 %v2938
    %2965 = vmatprep.subr.mxu0 0.0
    %2966 = vmatpush1.msra.mxu0 0.0
    %2967 = vmatprep.subr.mxu0 0.0
    %2968 = vmatpush1.msra.mxu0 0.0
    %2969 = vmatprep.subr.mxu0 0.0
    %2970 = vmatpush1.msra.mxu0 0.0
    %2971 = vmatprep.subr.mxu0 0.0
    %2972 = vmatpush1.msra.mxu0 0.0
    %2973 = vmatprep.subr.mxu0 0.0
    %2974 = vmatpush1.msra.mxu0 0.0
    %2975 = vmatprep.subr.mxu0 0.0
    %2976 = vmatpush1.msra.mxu0 0.0
    %2977 = vmatprep.subr.mxu0 0.0
    %2978 = vmatpush1.msra.mxu0 0.0
    %2979 = vmatprep.subr.mxu0 0.0
    %2980 = vmatpush1.msra.mxu0 0.0
    %2981 = vmatprep.subr.mxu0 0.0
    %2982 = vmatpush1.msra.mxu0 0.0
    %2983 = vmatprep.subr.mxu0 0.0
    %2984 = vmatpush1.msra.mxu0 0.0
    %2985 = vmatprep.subr.mxu0 0.0
    %2986 = vmatpush1.msra.mxu0 0.0
    %2987 = vmatprep.subr.mxu0 0.0
    %2988 = vmatpush1.msra.mxu0 0.0
    %2989 = vmatprep.subr.mxu0 0.0
    %2990 = vmatpush1.msra.mxu0 0.0
    %2991 = vmatprep.subr.mxu0 0.0
    %2992 = vmatpush1.msra.mxu0 0.0
    %2993 = vmatprep.subr.mxu0 0.0
    %2994 = vmatpush1.msra.mxu0 0.0
    %2995 = vmatprep.subr.mxu0 0.0
    %2996 = vmatpush1.msra.mxu0 0.0
    %2997 = vmatprep.subr.mxu0 0.0
    %2998 = vmatpush1.msra.mxu0 0.0
    %2999 = vmatprep.subr.mxu0 0.0
    %3000 = vmatpush1.msra.mxu0 0.0
    %3001 = vmatprep.subr.mxu0 0.0
    %3002 = vmatpush1.msra.mxu0 0.0
    %3003 = vmatprep.subr.mxu0 0.0
    %3004 = vmatpush1.msra.mxu0 0.0
    %3005 = vmatprep.subr.mxu0 0.0
    %3006 = vmatpush1.msra.mxu0 0.0
    %3007 = vmatprep.mubr.f32.mxu0 0.0
    %3008 = vmatmul.mubr.f32.gmra.mrb[0].mxu0 %v2929
    %v3009 = vpop.f32.mrb[0].mxu0
    %v3010 = vadd.f32 0.0, %v3009
    %v3011 = vpop.f32.mrb[0].mxu0
    %v3012 = vadd.f32 0.0, %v3011
    %3013 = vmatprep.mubr.f32.mxu0 0.0
    %3014 = vmatmul.mubr.f32.gmra.mrb[0].mxu0 %v2932
    %v3015 = vpop.f32.mrb[0].mxu0
    %v3016 = vadd.f32 0.0, %v3015
    %v3017 = vpop.f32.mrb[0].mxu0
    %v3018 = vadd.f32 0.0, %v3017
    %3019 = vmatprep.mubr.f32.mxu0 0.0
    %3020 = vmatmul.mubr.f32.gmra.mrb[0].mxu0 %v2935
    %v3021 = vpop.f32.mrb[0].mxu0
    %v3022 = vadd.f32 0.0, %v3021
    %v3023 = vpop.f32.mrb[0].mxu0
    %v3024 = vadd.f32 0.0, %v3023
    %3025 = vdwg.mxu0
    %v3026 = vadd.f32 %v2806, %v3010
    %v3027 = vadd.f32 %v2807, %v3012
    %v3028 = vadd.f32 %v2808, %v3016
    %v3029 = vadd.f32 %v2809, %v3018
    %v3030 = vadd.f32 %v2810, %v3022
    %v3031 = vadd.f32 %v2811, %v3024
    %v3032 = vld [vmem:[%s8] sm:$0xff]
    %v3033 = vld [vmem:[%s8 + $0x8] sm:$0x3]
    %vm3034 = vcmask 162816
    %v3036 = vsel %vm3034, %v3032, 0
    %v3039 = vsel %vm3034, %v3033, 0
    %v3042 = vsel %vm1953, %v3030, 0
    %v3045 = vsel %vm1953, %v3031, 0
    %3047 = vmatprep.subr.mxu0 %v3027
    %3048 = vmatpush1.msra.mxu0 %v3026
    %3049 = vmatprep.subr.mxu0 %v3029
    %3050 = vmatpush1.msra.mxu0 %v3028
    %3051 = vmatprep.subr.mxu0 %v3045
    %3052 = vmatpush1.msra.mxu0 %v3042
    %3053 = vmatprep.subr.mxu0 0.0
    %3054 = vmatpush1.msra.mxu0 0.0
    %3055 = vmatprep.subr.mxu0 0.0
    %3056 = vmatpush1.msra.mxu0 0.0
    %3057 = vmatprep.subr.mxu0 0.0
    %3058 = vmatpush1.msra.mxu0 0.0
    %3059 = vmatprep.subr.mxu0 0.0
    %3060 = vmatpush1.msra.mxu0 0.0
    %3061 = vmatprep.subr.mxu0 0.0
    %3062 = vmatpush1.msra.mxu0 0.0
    %3063 = vmatprep.subr.mxu0 0.0
    %3064 = vmatpush1.msra.mxu0 0.0
    %3065 = vmatprep.subr.mxu0 0.0
    %3066 = vmatpush1.msra.mxu0 0.0
    %3067 = vmatprep.subr.mxu0 0.0
    %3068 = vmatpush1.msra.mxu0 0.0
    %3069 = vmatprep.subr.mxu0 0.0
    %3070 = vmatpush1.msra.mxu0 0.0
    %3071 = vmatprep.subr.mxu0 0.0
    %3072 = vmatpush1.msra.mxu0 0.0
    %3073 = vmatprep.subr.mxu0 0.0
    %3074 = vmatpush1.msra.mxu0 0.0
    %3075 = vmatprep.subr.mxu0 0.0
    %3076 = vmatpush1.msra.mxu0 0.0
    %3077 = vmatprep.subr.mxu0 0.0
    %3078 = vmatpush1.msra.mxu0 0.0
    %3079 = vmatprep.subr.mxu0 0.0
    %3080 = vmatpush1.msra.mxu0 0.0
    %3081 = vmatprep.subr.mxu0 0.0
    %3082 = vmatpush1.msra.mxu0 0.0
    %3083 = vmatprep.subr.mxu0 0.0
    %3084 = vmatpush1.msra.mxu0 0.0
    %3085 = vmatprep.subr.mxu0 0.0
    %3086 = vmatpush1.msra.mxu0 0.0
    %3087 = vmatprep.subr.mxu0 0.0
    %3088 = vmatpush1.msra.mxu0 0.0
    %3089 = vmatprep.subr.mxu0 0.0
    %3090 = vmatpush1.msra.mxu0 0.0
    %3091 = vmatprep.subr.mxu0 0.0
    %3092 = vmatpush1.msra.mxu0 0.0
    %3093 = vmatprep.subr.mxu0 0.0
    %3094 = vmatpush1.msra.mxu0 0.0
    %3095 = vmatprep.subr.mxu0 0.0
    %3096 = vmatpush1.msra.mxu0 0.0
    %3097 = vmatprep.subr.mxu0 0.0
    %3098 = vmatpush1.msra.mxu0 0.0
    %3099 = vmatprep.subr.mxu0 0.0
    %3100 = vmatpush1.msra.mxu0 0.0
    %3101 = vmatprep.subr.mxu0 0.0
    %3102 = vmatpush1.msra.mxu0 0.0
    %3103 = vmatprep.subr.mxu0 0.0
    %3104 = vmatpush1.msra.mxu0 0.0
    %3105 = vmatprep.subr.mxu0 0.0
    %3106 = vmatpush1.msra.mxu0 0.0
    %3107 = vmatprep.subr.mxu0 0.0
    %3108 = vmatpush1.msra.mxu0 0.0
    %3109 = vmatprep.subr.mxu0 0.0
    %3110 = vmatpush1.msra.mxu0 0.0
    %3111 = vmatprep.mubr.f32.mxu0 0.0
    %3112 = vmatmul.mubr.f32.gmra.mrb[0].mxu0 %v3036
    %v3113 = vpop.f32.mrb[0].mxu0
    %v3114 = vadd.f32 0.0, %v3113
    %v3115 = vpop.f32.mrb[0].mxu0
    %v3116 = vadd.f32 0.0, %v3115
    %3117 = vmatprep.mubr.f32.mxu0 0.0
    %3118 = vmatmul.mubr.f32.gmra.mrb[0].mxu0 %v3039
    %v3119 = vpop.f32.mrb[0].mxu0
    %v3120 = vadd.f32 0.0, %v3119
    %v3121 = vpop.f32.mrb[0].mxu0
    %v3122 = vadd.f32 0.0, %v3121
    %3123 = vdwg.mxu0
    %s3124 = scalar_lea.vmem %s8, 16
    %v3125 = vld [vmem:[%s3124] sm:$0xff]
    %v3126 = vld [vmem:[%s3124 + $0x8] sm:$0x3]
    %v3128 = vsel %vm3034, %v3125, 0
    %v3131 = vsel %vm3034, %v3126, 0
    %3133 = vmatprep.subr.mxu0 %v3027
    %3134 = vmatpush1.msra.mxu0 %v3026
    %3135 = vmatprep.subr.mxu0 %v3029
    %3136 = vmatpush1.msra.mxu0 %v3028
    %3137 = vmatprep.subr.mxu0 %v3045
    %3138 = vmatpush1.msra.mxu0 %v3042
    %3139 = vmatprep.subr.mxu0 0.0
    %3140 = vmatpush1.msra.mxu0 0.0
    %3141 = vmatprep.subr.mxu0 0.0
    %3142 = vmatpush1.msra.mxu0 0.0
    %3143 = vmatprep.subr.mxu0 0.0
    %3144 = vmatpush1.msra.mxu0 0.0
    %3145 = vmatprep.subr.mxu0 0.0
    %3146 = vmatpush1.msra.mxu0 0.0
    %3147 = vmatprep.subr.mxu0 0.0
    %3148 = vmatpush1.msra.mxu0 0.0
    %3149 = vmatprep.subr.mxu0 0.0
    %3150 = vmatpush1.msra.mxu0 0.0
    %3151 = vmatprep.subr.mxu0 0.0
    %3152 = vmatpush1.msra.mxu0 0.0
    %3153 = vmatprep.subr.mxu0 0.0
    %3154 = vmatpush1.msra.mxu0 0.0
    %3155 = vmatprep.subr.mxu0 0.0
    %3156 = vmatpush1.msra.mxu0 0.0
    %3157 = vmatprep.subr.mxu0 0.0
    %3158 = vmatpush1.msra.mxu0 0.0
    %3159 = vmatprep.subr.mxu0 0.0
    %3160 = vmatpush1.msra.mxu0 0.0
    %3161 = vmatprep.subr.mxu0 0.0
    %3162 = vmatpush1.msra.mxu0 0.0
    %3163 = vmatprep.subr.mxu0 0.0
    %3164 = vmatpush1.msra.mxu0 0.0
    %3165 = vmatprep.subr.mxu0 0.0
    %3166 = vmatpush1.msra.mxu0 0.0
    %3167 = vmatprep.subr.mxu0 0.0
    %3168 = vmatpush1.msra.mxu0 0.0
    %3169 = vmatprep.subr.mxu0 0.0
    %3170 = vmatpush1.msra.mxu0 0.0
    %3171 = vmatprep.subr.mxu0 0.0
    %3172 = vmatpush1.msra.mxu0 0.0
    %3173 = vmatprep.subr.mxu0 0.0
    %3174 = vmatpush1.msra.mxu0 0.0
    %3175 = vmatprep.subr.mxu0 0.0
    %3176 = vmatpush1.msra.mxu0 0.0
    %3177 = vmatprep.subr.mxu0 0.0
    %3178 = vmatpush1.msra.mxu0 0.0
    %3179 = vmatprep.subr.mxu0 0.0
    %3180 = vmatpush1.msra.mxu0 0.0
    %3181 = vmatprep.subr.mxu0 0.0
    %3182 = vmatpush1.msra.mxu0 0.0
    %3183 = vmatprep.subr.mxu0 0.0
    %3184 = vmatpush1.msra.mxu0 0.0
    %3185 = vmatprep.subr.mxu0 0.0
    %3186 = vmatpush1.msra.mxu0 0.0
    %3187 = vmatprep.subr.mxu0 0.0
    %3188 = vmatpush1.msra.mxu0 0.0
    %3189 = vmatprep.subr.mxu0 0.0
    %3190 = vmatpush1.msra.mxu0 0.0
    %3191 = vmatprep.subr.mxu0 0.0
    %3192 = vmatpush1.msra.mxu0 0.0
    %3193 = vmatprep.subr.mxu0 0.0
    %3194 = vmatpush1.msra.mxu0 0.0
    %3195 = vmatprep.subr.mxu0 0.0
    %3196 = vmatpush1.msra.mxu0 0.0
    %3197 = vmatprep.mubr.f32.mxu0 0.0
    %3198 = vmatmul.mubr.f32.gmra.mrb[0].mxu0 %v3128
    %v3199 = vpop.f32.mrb[0].mxu0
    %v3200 = vadd.f32 0.0, %v3199
    %v3201 = vpop.f32.mrb[0].mxu0
    %v3202 = vadd.f32 0.0, %v3201
    %3203 = vmatprep.mubr.f32.mxu0 0.0
    %3204 = vmatmul.mubr.f32.gmra.mrb[0].mxu0 %v3131
    %v3205 = vpop.f32.mrb[0].mxu0
    %v3206 = vadd.f32 0.0, %v3205
    %v3207 = vpop.f32.mrb[0].mxu0
    %v3208 = vadd.f32 0.0, %v3207
    %3209 = vdwg.mxu0
    %v3210 = vmax.f32 %v3114, %v3200
    %v3211 = vmax.f32 %v3116, %v3202
    %v3212 = vmax.f32 %v3120, %v3206
    %v3213 = vmax.f32 %v3122, %v3208
    %v3214 = vld [vmem:[%s9] sm:$0xff]
    %v3215 = vld [vmem:[%s9 + $0x8] sm:$0xff]
    %v3216 = vld [vmem:[%s9 + $0x10] sm:$0xff]
    %v3217 = vld [vmem:[%s9 + $0x18] sm:$0xff]
    %v3218 = vld [vmem:[%s9 + $0x20] sm:$0xff]
    %v3219 = vld [vmem:[%s9 + $0x28] sm:$0xff]
    %v3220 = vld [vmem:[%s9 + $0x30] sm:$0xff]
    %v3221 = vld [vmem:[%s9 + $0x38] sm:$0xff]
    %v3222 = vld [vmem:[%s9 + $0x40] sm:$0xff]
    %v3223 = vld [vmem:[%s9 + $0x48] sm:$0xff]
    %v3224 = vld [vmem:[%s9 + $0x50] sm:$0xff]
    %v3225 = vld [vmem:[%s9 + $0x58] sm:$0xff]
    %v3226 = vld [vmem:[%s9 + $0x60] sm:$0xff]
    %v3227 = vld [vmem:[%s9 + $0x68] sm:$0xff]
    %v3228 = vld [vmem:[%s9 + $0x70] sm:$0xff]
    %v3229 = vld [vmem:[%s9 + $0x78] sm:$0xff]
    %v3230 = vld [vmem:[%s9 + $0x80] sm:$0xff]
    %v3231 = vld [vmem:[%s9 + $0x88] sm:$0xff]
    %v3232 = vld [vmem:[%s9 + $0x90] sm:$0xff]
    %v3233 = vld [vmem:[%s9 + $0x98] sm:$0xff]
    %v3235 = vsel %vm378, %v3211, 0
    %v3238 = vsel %vm378, %v3213, 0
    %3240 = vmatprep.subr.mxu0 0.0
    %3241 = vmatpush1.msra.mxu0 %v3214
    %3242 = vmatprep.subr.mxu0 0.0
    %3243 = vmatpush1.msra.mxu0 %v3215
    %3244 = vmatprep.subr.mxu0 0.0
    %3245 = vmatpush1.msra.mxu0 %v3216
    %3246 = vmatprep.subr.mxu0 0.0
    %3247 = vmatpush1.msra.mxu0 %v3217
    %3248 = vmatprep.subr.mxu0 0.0
    %3249 = vmatpush1.msra.mxu0 %v3218
    %3250 = vmatprep.subr.mxu0 0.0
    %3251 = vmatpush1.msra.mxu0 %v3219
    %3252 = vmatprep.subr.mxu0 0.0
    %3253 = vmatpush1.msra.mxu0 %v3220
    %3254 = vmatprep.subr.mxu0 0.0
    %3255 = vmatpush1.msra.mxu0 %v3221
    %3256 = vmatprep.subr.mxu0 0.0
    %3257 = vmatpush1.msra.mxu0 %v3222
    %3258 = vmatprep.subr.mxu0 0.0
    %3259 = vmatpush1.msra.mxu0 %v3223
    %3260 = vmatprep.subr.mxu0 0.0
    %3261 = vmatpush1.msra.mxu0 %v3224
    %3262 = vmatprep.subr.mxu0 0.0
    %3263 = vmatpush1.msra.mxu0 %v3225
    %3264 = vmatprep.subr.mxu0 0.0
    %3265 = vmatpush1.msra.mxu0 %v3226
    %3266 = vmatprep.subr.mxu0 0.0
    %3267 = vmatpush1.msra.mxu0 %v3227
    %3268 = vmatprep.subr.mxu0 0.0
    %3269 = vmatpush1.msra.mxu0 %v3228
    %3270 = vmatprep.subr.mxu0 0.0
    %3271 = vmatpush1.msra.mxu0 %v3229
    %3272 = vmatprep.subr.mxu0 0.0
    %3273 = vmatpush1.msra.mxu0 %v3230
    %3274 = vmatprep.subr.mxu0 0.0
    %3275 = vmatpush1.msra.mxu0 %v3231
    %3276 = vmatprep.subr.mxu0 0.0
    %3277 = vmatpush1.msra.mxu0 %v3232
    %3278 = vmatprep.subr.mxu0 0.0
    %3279 = vmatpush1.msra.mxu0 %v3233
    %3280 = vmatprep.subr.mxu0 0.0
    %3281 = vmatpush1.msra.mxu0 0.0
    %3282 = vmatprep.subr.mxu0 0.0
    %3283 = vmatpush1.msra.mxu0 0.0
    %3284 = vmatprep.subr.mxu0 0.0
    %3285 = vmatpush1.msra.mxu0 0.0
    %3286 = vmatprep.subr.mxu0 0.0
    %3287 = vmatpush1.msra.mxu0 0.0
    %3288 = vmatprep.subr.mxu0 0.0
    %3289 = vmatpush1.msra.mxu0 0.0
    %3290 = vmatprep.subr.mxu0 0.0
    %3291 = vmatpush1.msra.mxu0 0.0
    %3292 = vmatprep.subr.mxu0 0.0
    %3293 = vmatpush1.msra.mxu0 0.0
    %3294 = vmatprep.subr.mxu0 0.0
    %3295 = vmatpush1.msra.mxu0 0.0
    %3296 = vmatprep.subr.mxu0 0.0
    %3297 = vmatpush1.msra.mxu0 0.0
    %3298 = vmatprep.subr.mxu0 0.0
    %3299 = vmatpush1.msra.mxu0 0.0
    %3300 = vmatprep.subr.mxu0 0.0
    %3301 = vmatpush1.msra.mxu0 0.0
    %3302 = vmatprep.subr.mxu0 0.0
    %3303 = vmatpush1.msra.mxu0 0.0
    %3304 = vmatprep.mubr.f32.mxu0 %v3235
    %3305 = vmatmul.mubr.f32.gmra.mrb[0].mxu0 %v3210
    %v3306 = vpop.f32.mrb[0].mxu0
    %v3307 = vadd.f32 0.0, %v3306
    %v3308 = vpop.f32.mrb[0].mxu0
    %3309 = vmatprep.mubr.f32.mxu0 %v3238
    %3310 = vmatmul.mubr.f32.gmra.mrb[0].mxu0 %v3212
    %v3311 = vpop.f32.mrb[0].mxu0
    %v3312 = vadd.f32 0.0, %v3311
    %v3313 = vpop.f32.mrb[0].mxu0
    %3314 = vdwg.mxu0
    %s3315 = scalar_lea.vmem %s9, 160
    %v3316 = vld [vmem:[%s3315] sm:$0xff]
    %v3317 = vld [vmem:[%s3315 + $0x8] sm:$0xff]
    %v3318 = vld [vmem:[%s3315 + $0x10] sm:$0xff]
    %v3319 = vld [vmem:[%s3315 + $0x18] sm:$0xff]
    %v3320 = vld [vmem:[%s3315 + $0x20] sm:$0xff]
    %v3321 = vld [vmem:[%s3315 + $0x28] sm:$0xff]
    %v3322 = vld [vmem:[%s3315 + $0x30] sm:$0xff]
    %v3323 = vld [vmem:[%s3315 + $0x38] sm:$0xff]
    %v3324 = vld [vmem:[%s3315 + $0x40] sm:$0xff]
    %v3325 = vld [vmem:[%s3315 + $0x48] sm:$0xff]
    %v3326 = vld [vmem:[%s3315 + $0x50] sm:$0xff]
    %v3327 = vld [vmem:[%s3315 + $0x58] sm:$0xff]
    %v3328 = vld [vmem:[%s3315 + $0x60] sm:$0xff]
    %v3329 = vld [vmem:[%s3315 + $0x68] sm:$0xff]
    %v3330 = vld [vmem:[%s3315 + $0x70] sm:$0xff]
    %v3331 = vld [vmem:[%s3315 + $0x78] sm:$0xff]
    %v3332 = vld [vmem:[%s3315 + $0x80] sm:$0xff]
    %v3333 = vld [vmem:[%s3315 + $0x88] sm:$0xff]
    %v3334 = vld [vmem:[%s3315 + $0x90] sm:$0xff]
    %v3335 = vld [vmem:[%s3315 + $0x98] sm:$0xff]
    %3336 = vmatprep.subr.mxu0 0.0
    %3337 = vmatpush1.msra.mxu0 %v3316
    %3338 = vmatprep.subr.mxu0 0.0
    %3339 = vmatpush1.msra.mxu0 %v3317
    %3340 = vmatprep.subr.mxu0 0.0
    %3341 = vmatpush1.msra.mxu0 %v3318
    %3342 = vmatprep.subr.mxu0 0.0
    %3343 = vmatpush1.msra.mxu0 %v3319
    %3344 = vmatprep.subr.mxu0 0.0
    %3345 = vmatpush1.msra.mxu0 %v3320
    %3346 = vmatprep.subr.mxu0 0.0
    %3347 = vmatpush1.msra.mxu0 %v3321
    %3348 = vmatprep.subr.mxu0 0.0
    %3349 = vmatpush1.msra.mxu0 %v3322
    %3350 = vmatprep.subr.mxu0 0.0
    %3351 = vmatpush1.msra.mxu0 %v3323
    %3352 = vmatprep.subr.mxu0 0.0
    %3353 = vmatpush1.msra.mxu0 %v3324
    %3354 = vmatprep.subr.mxu0 0.0
    %3355 = vmatpush1.msra.mxu0 %v3325
    %3356 = vmatprep.subr.mxu0 0.0
    %3357 = vmatpush1.msra.mxu0 %v3326
    %3358 = vmatprep.subr.mxu0 0.0
    %3359 = vmatpush1.msra.mxu0 %v3327
    %3360 = vmatprep.subr.mxu0 0.0
    %3361 = vmatpush1.msra.mxu0 %v3328
    %3362 = vmatprep.subr.mxu0 0.0
    %3363 = vmatpush1.msra.mxu0 %v3329
    %3364 = vmatprep.subr.mxu0 0.0
    %3365 = vmatpush1.msra.mxu0 %v3330
    %3366 = vmatprep.subr.mxu0 0.0
    %3367 = vmatpush1.msra.mxu0 %v3331
    %3368 = vmatprep.subr.mxu0 0.0
    %3369 = vmatpush1.msra.mxu0 %v3332
    %3370 = vmatprep.subr.mxu0 0.0
    %3371 = vmatpush1.msra.mxu0 %v3333
    %3372 = vmatprep.subr.mxu0 0.0
    %3373 = vmatpush1.msra.mxu0 %v3334
    %3374 = vmatprep.subr.mxu0 0.0
    %3375 = vmatpush1.msra.mxu0 %v3335
    %3376 = vmatprep.subr.mxu0 0.0
    %3377 = vmatpush1.msra.mxu0 0.0
    %3378 = vmatprep.subr.mxu0 0.0
    %3379 = vmatpush1.msra.mxu0 0.0
    %3380 = vmatprep.subr.mxu0 0.0
    %3381 = vmatpush1.msra.mxu0 0.0
    %3382 = vmatprep.subr.mxu0 0.0
    %3383 = vmatpush1.msra.mxu0 0.0
    %3384 = vmatprep.subr.mxu0 0.0
    %3385 = vmatpush1.msra.mxu0 0.0
    %3386 = vmatprep.subr.mxu0 0.0
    %3387 = vmatpush1.msra.mxu0 0.0
    %3388 = vmatprep.subr.mxu0 0.0
    %3389 = vmatpush1.msra.mxu0 0.0
    %3390 = vmatprep.subr.mxu0 0.0
    %3391 = vmatpush1.msra.mxu0 0.0
    %3392 = vmatprep.subr.mxu0 0.0
    %3393 = vmatpush1.msra.mxu0 0.0
    %3394 = vmatprep.subr.mxu0 0.0
    %3395 = vmatpush1.msra.mxu0 0.0
    %3396 = vmatprep.subr.mxu0 0.0
    %3397 = vmatpush1.msra.mxu0 0.0
    %3398 = vmatprep.subr.mxu0 0.0
    %3399 = vmatpush1.msra.mxu0 0.0
    %3400 = vmatprep.mubr.f32.mxu0 %v3235
    %3401 = vmatmul.mubr.f32.gmra.mrb[0].mxu0 %v3210
    %v3402 = vpop.f32.mrb[0].mxu0
    %v3403 = vadd.f32 0.0, %v3402
    %v3404 = vpop.f32.mrb[0].mxu0
    %3405 = vmatprep.mubr.f32.mxu0 %v3238
    %3406 = vmatmul.mubr.f32.gmra.mrb[0].mxu0 %v3212
    %v3407 = vpop.f32.mrb[0].mxu0
    %v3408 = vadd.f32 0.0, %v3407
    %v3409 = vpop.f32.mrb[0].mxu0
    %3410 = vdwg.mxu0
    %v3411 = vmax.f32 %v3307, %v3403
    %v3412 = vmax.f32 %v3312, %v3408
    %v3413 = vld [vmem:[%s10] sm:$0x1]
    %v3415 = vlaneseq
    %v3416 = vshrl.u32 %v3415, 7
    %v3417 = vsub.s32 0, %v3416
    %v3418 = vrot.slane %v3413, %v3417
    %v3420 = vadd.f32 %v3411, %v3418
    %v3421 = vadd.f32 %v3412, %v3418
    %v3422 = vmax.f32 %v3420, 0.0
    %v3423 = vmax.f32 %v3421, 0.0
    %v3424 = vld [vmem:[%s11] sm:$0x3]
    %vm3425 = vcmask 80896
    %v3427 = vsel %vm3425, %v3424, 0
    %vm3429 = vcmask 1041408
    %v3431 = vsel %vm3429, %v3423, 0
    %3433 = vmatprep.subr.mxu0 0.0
    %3434 = vmatpush1.msra.mxu0 %v3422
    %3435 = vmatprep.subr.mxu0 0.0
    %3436 = vmatpush1.msra.mxu0 %v3431
    %3437 = vmatprep.subr.mxu0 0.0
    %3438 = vmatpush1.msra.mxu0 0.0
    %3439 = vmatprep.subr.mxu0 0.0
    %3440 = vmatpush1.msra.mxu0 0.0
    %3441 = vmatprep.subr.mxu0 0.0
    %3442 = vmatpush1.msra.mxu0 0.0
    %3443 = vmatprep.subr.mxu0 0.0
    %3444 = vmatpush1.msra.mxu0 0.0
    %3445 = vmatprep.subr.mxu0 0.0
    %3446 = vmatpush1.msra.mxu0 0.0
    %3447 = vmatprep.subr.mxu0 0.0
    %3448 = vmatpush1.msra.mxu0 0.0
    %3449 = vmatprep.subr.mxu0 0.0
    %3450 = vmatpush1.msra.mxu0 0.0
    %3451 = vmatprep.subr.mxu0 0.0
    %3452 = vmatpush1.msra.mxu0 0.0
    %3453 = vmatprep.subr.mxu0 0.0
    %3454 = vmatpush1.msra.mxu0 0.0
    %3455 = vmatprep.subr.mxu0 0.0
    %3456 = vmatpush1.msra.mxu0 0.0
    %3457 = vmatprep.subr.mxu0 0.0
    %3458 = vmatpush1.msra.mxu0 0.0
    %3459 = vmatprep.subr.mxu0 0.0
    %3460 = vmatpush1.msra.mxu0 0.0
    %3461 = vmatprep.subr.mxu0 0.0
    %3462 = vmatpush1.msra.mxu0 0.0
    %3463 = vmatprep.subr.mxu0 0.0
    %3464 = vmatpush1.msra.mxu0 0.0
    %3465 = vmatprep.subr.mxu0 0.0
    %3466 = vmatpush1.msra.mxu0 0.0
    %3467 = vmatprep.subr.mxu0 0.0
    %3468 = vmatpush1.msra.mxu0 0.0
    %3469 = vmatprep.subr.mxu0 0.0
    %3470 = vmatpush1.msra.mxu0 0.0
    %3471 = vmatprep.subr.mxu0 0.0
    %3472 = vmatpush1.msra.mxu0 0.0
    %3473 = vmatprep.subr.mxu0 0.0
    %3474 = vmatpush1.msra.mxu0 0.0
    %3475 = vmatprep.subr.mxu0 0.0
    %3476 = vmatpush1.msra.mxu0 0.0
    %3477 = vmatprep.subr.mxu0 0.0
    %3478 = vmatpush1.msra.mxu0 0.0
    %3479 = vmatprep.subr.mxu0 0.0
    %3480 = vmatpush1.msra.mxu0 0.0
    %3481 = vmatprep.subr.mxu0 0.0
    %3482 = vmatpush1.msra.mxu0 0.0
    %3483 = vmatprep.subr.mxu0 0.0
    %3484 = vmatpush1.msra.mxu0 0.0
    %3485 = vmatprep.subr.mxu0 0.0
    %3486 = vmatpush1.msra.mxu0 0.0
    %3487 = vmatprep.subr.mxu0 0.0
    %3488 = vmatpush1.msra.mxu0 0.0
    %3489 = vmatprep.subr.mxu0 0.0
    %3490 = vmatpush1.msra.mxu0 0.0
    %3491 = vmatprep.subr.mxu0 0.0
    %3492 = vmatpush1.msra.mxu0 0.0
    %3493 = vmatprep.subr.mxu0 0.0
    %3494 = vmatpush1.msra.mxu0 0.0
    %3495 = vmatprep.subr.mxu0 0.0
    %3496 = vmatpush1.msra.mxu0 0.0
    %3497 = vmatprep.mubr.f32.mxu0 0.0
    %3498 = vmatmul.mubr.f32.gmra.mrb[0].mxu0 %v3427
    %v3499 = vpop.f32.mrb[0].mxu0
    %v3500 = vadd.f32 0.0, %v3499
    %v3501 = vpop.f32.mrb[0].mxu0
    %3502 = vdwg.mxu0
    %v3503 = vld [vmem:[%s12] sm:$0xff]
    %v3504 = vld [vmem:[%s12 + $0x8] sm:$0xff]
    %v3505 = vld [vmem:[%s12 + $0x10] sm:$0xff]
    %v3506 = vld [vmem:[%s12 + $0x18] sm:$0xff]
    %v3507 = vld [vmem:[%s12 + $0x20] sm:$0xff]
    %v3508 = vld [vmem:[%s12 + $0x28] sm:$0xff]
    %v3509 = vld [vmem:[%s12 + $0x30] sm:$0xff]
    %v3510 = vld [vmem:[%s12 + $0x38] sm:$0xff]
    %v3511 = vld [vmem:[%s12 + $0x40] sm:$0xff]
    %v3512 = vld [vmem:[%s12 + $0x48] sm:$0xff]
    %s3513 = scalar_lea.vmem %s11, 2
    %v3514 = vld [vmem:[%s3513] sm:$0x3]
    %v3516 = vsel %vm3425, %v3514, 0
    %3518 = vmatprep.subr.mxu0 0.0
    %3519 = vmatpush1.msra.mxu0 %v3422
    %3520 = vmatprep.subr.mxu0 0.0
    %3521 = vmatpush1.msra.mxu0 %v3431
    %3522 = vmatprep.subr.mxu0 0.0
    %3523 = vmatpush1.msra.mxu0 0.0
    %3524 = vmatprep.subr.mxu0 0.0
    %3525 = vmatpush1.msra.mxu0 0.0
    %3526 = vmatprep.subr.mxu0 0.0
    %3527 = vmatpush1.msra.mxu0 0.0
    %3528 = vmatprep.subr.mxu0 0.0
    %3529 = vmatpush1.msra.mxu0 0.0
    %3530 = vmatprep.subr.mxu0 0.0
    %3531 = vmatpush1.msra.mxu0 0.0
    %3532 = vmatprep.subr.mxu0 0.0
    %3533 = vmatpush1.msra.mxu0 0.0
    %3534 = vmatprep.subr.mxu0 0.0
    %3535 = vmatpush1.msra.mxu0 0.0
    %3536 = vmatprep.subr.mxu0 0.0
    %3537 = vmatpush1.msra.mxu0 0.0
    %3538 = vmatprep.subr.mxu0 0.0
    %3539 = vmatpush1.msra.mxu0 0.0
    %3540 = vmatprep.subr.mxu0 0.0
    %3541 = vmatpush1.msra.mxu0 0.0
    %3542 = vmatprep.subr.mxu0 0.0
    %3543 = vmatpush1.msra.mxu0 0.0
    %3544 = vmatprep.subr.mxu0 0.0
    %3545 = vmatpush1.msra.mxu0 0.0
    %3546 = vmatprep.subr.mxu0 0.0
    %3547 = vmatpush1.msra.mxu0 0.0
    %3548 = vmatprep.subr.mxu0 0.0
    %3549 = vmatpush1.msra.mxu0 0.0
    %3550 = vmatprep.subr.mxu0 0.0
    %3551 = vmatpush1.msra.mxu0 0.0
    %3552 = vmatprep.subr.mxu0 0.0
    %3553 = vmatpush1.msra.mxu0 0.0
    %3554 = vmatprep.subr.mxu0 0.0
    %3555 = vmatpush1.msra.mxu0 0.0
    %3556 = vmatprep.subr.mxu0 0.0
    %3557 = vmatpush1.msra.mxu0 0.0
    %3558 = vmatprep.subr.mxu0 0.0
    %3559 = vmatpush1.msra.mxu0 0.0
    %3560 = vmatprep.subr.mxu0 0.0
    %3561 = vmatpush1.msra.mxu0 0.0
    %3562 = vmatprep.subr.mxu0 0.0
    %3563 = vmatpush1.msra.mxu0 0.0
    %3564 = vmatprep.subr.mxu0 0.0
    %3565 = vmatpush1.msra.mxu0 0.0
    %3566 = vmatprep.subr.mxu0 0.0
    %3567 = vmatpush1.msra.mxu0 0.0
    %3568 = vmatprep.subr.mxu0 0.0
    %3569 = vmatpush1.msra.mxu0 0.0
    %3570 = vmatprep.subr.mxu0 0.0
    %3571 = vmatpush1.msra.mxu0 0.0
    %3572 = vmatprep.subr.mxu0 0.0
    %3573 = vmatpush1.msra.mxu0 0.0
    %3574 = vmatprep.subr.mxu0 0.0
    %3575 = vmatpush1.msra.mxu0 0.0
    %3576 = vmatprep.subr.mxu0 0.0
    %3577 = vmatpush1.msra.mxu0 0.0
    %3578 = vmatprep.subr.mxu0 0.0
    %3579 = vmatpush1.msra.mxu0 0.0
    %3580 = vmatprep.subr.mxu0 0.0
    %3581 = vmatpush1.msra.mxu0 0.0
    %3582 = vmatprep.mubr.f32.mxu0 0.0
    %3583 = vmatmul.mubr.f32.gmra.mrb[0].mxu0 %v3516
    %v3584 = vpop.f32.mrb[0].mxu0
    %v3585 = vadd.f32 0.0, %v3584
    %v3586 = vpop.f32.mrb[0].mxu0
    %3587 = vdwg.mxu0
    %s3588 = scalar_lea.vmem %s12, 80
    %v3589 = vld [vmem:[%s3588] sm:$0xff]
    %v3590 = vld [vmem:[%s3588 + $0x8] sm:$0xff]
    %v3591 = vld [vmem:[%s3588 + $0x10] sm:$0xff]
    %v3592 = vld [vmem:[%s3588 + $0x18] sm:$0xff]
    %v3593 = vld [vmem:[%s3588 + $0x20] sm:$0xff]
    %v3594 = vld [vmem:[%s3588 + $0x28] sm:$0xff]
    %v3595 = vld [vmem:[%s3588 + $0x30] sm:$0xff]
    %v3596 = vld [vmem:[%s3588 + $0x38] sm:$0xff]
    %v3597 = vld [vmem:[%s3588 + $0x40] sm:$0xff]
    %v3598 = vld [vmem:[%s3588 + $0x48] sm:$0xff]
    %vm3599 = vcmask 654336
    %v3601 = vsel %vm3599, %v3585, 0
    %3603 = vmatprep.subr.mxu0 0.0
    %3604 = vmatpush1.msra.mxu0 %v3589
    %3605 = vmatprep.subr.mxu0 0.0
    %3606 = vmatpush1.msra.mxu0 %v3590
    %3607 = vmatprep.subr.mxu0 0.0
    %3608 = vmatpush1.msra.mxu0 %v3591
    %3609 = vmatprep.subr.mxu0 0.0
    %3610 = vmatpush1.msra.mxu0 %v3592
    %3611 = vmatprep.subr.mxu0 0.0
    %3612 = vmatpush1.msra.mxu0 %v3593
    %3613 = vmatprep.subr.mxu0 0.0
    %3614 = vmatpush1.msra.mxu0 %v3594
    %3615 = vmatprep.subr.mxu0 0.0
    %3616 = vmatpush1.msra.mxu0 %v3595
    %3617 = vmatprep.subr.mxu0 0.0
    %3618 = vmatpush1.msra.mxu0 %v3596
    %3619 = vmatprep.subr.mxu0 0.0
    %3620 = vmatpush1.msra.mxu0 %v3597
    %3621 = vmatprep.subr.mxu0 0.0
    %3622 = vmatpush1.msra.mxu0 %v3598
    %3623 = vmatprep.subr.mxu0 0.0
    %3624 = vmatpush1.msra.mxu0 0.0
    %3625 = vmatprep.subr.mxu0 0.0
    %3626 = vmatpush1.msra.mxu0 0.0
    %3627 = vmatprep.subr.mxu0 0.0
    %3628 = vmatpush1.msra.mxu0 0.0
    %3629 = vmatprep.subr.mxu0 0.0
    %3630 = vmatpush1.msra.mxu0 0.0
    %3631 = vmatprep.subr.mxu0 0.0
    %3632 = vmatpush1.msra.mxu0 0.0
    %3633 = vmatprep.subr.mxu0 0.0
    %3634 = vmatpush1.msra.mxu0 0.0
    %3635 = vmatprep.subr.mxu0 0.0
    %3636 = vmatpush1.msra.mxu0 0.0
    %3637 = vmatprep.subr.mxu0 0.0
    %3638 = vmatpush1.msra.mxu0 0.0
    %3639 = vmatprep.subr.mxu0 0.0
    %3640 = vmatpush1.msra.mxu0 0.0
    %3641 = vmatprep.subr.mxu0 0.0
    %3642 = vmatpush1.msra.mxu0 0.0
    %3643 = vmatprep.subr.mxu0 0.0
    %3644 = vmatpush1.msra.mxu0 0.0
    %3645 = vmatprep.subr.mxu0 0.0
    %3646 = vmatpush1.msra.mxu0 0.0
    %3647 = vmatprep.subr.mxu0 0.0
    %3648 = vmatpush1.msra.mxu0 0.0
    %3649 = vmatprep.subr.mxu0 0.0
    %3650 = vmatpush1.msra.mxu0 0.0
    %3651 = vmatprep.subr.mxu0 0.0
    %3652 = vmatpush1.msra.mxu0 0.0
    %3653 = vmatprep.subr.mxu0 0.0
    %3654 = vmatpush1.msra.mxu0 0.0
    %3655 = vmatprep.subr.mxu0 0.0
    %3656 = vmatpush1.msra.mxu0 0.0
    %3657 = vmatprep.subr.mxu0 0.0
    %3658 = vmatpush1.msra.mxu0 0.0
    %3659 = vmatprep.subr.mxu0 0.0
    %3660 = vmatpush1.msra.mxu0 0.0
    %3661 = vmatprep.subr.mxu0 0.0
    %3662 = vmatpush1.msra.mxu0 0.0
    %3663 = vmatprep.subr.mxu0 0.0
    %3664 = vmatpush1.msra.mxu0 0.0
    %3665 = vmatprep.subr.mxu0 0.0
    %3666 = vmatpush1.msra.mxu0 0.0
    %3667 = vmatprep.mubr.f32.mxu0 0.0
    %3668 = vmatmul.mubr.f32.gmra.mrb[0].mxu0 %v3601
    %v3669 = vpop.f32.mrb[0].mxu0
    %v3670 = vadd.f32 0.0, %v3669
    %v3671 = vpop.f32.mrb[0].mxu0
    %3672 = vdwg.mxu0
    %v3674 = vsel %vm3599, %v3500, 0
    %3676 = vmatprep.subr.mxu0 0.0
    %3677 = vmatpush1.msra.mxu0 %v3503
    %3678 = vmatprep.subr.mxu0 0.0
    %3679 = vmatpush1.msra.mxu0 %v3504
    %3680 = vmatprep.subr.mxu0 0.0
    %3681 = vmatpush1.msra.mxu0 %v3505
    %3682 = vmatprep.subr.mxu0 0.0
    %3683 = vmatpush1.msra.mxu0 %v3506
    %3684 = vmatprep.subr.mxu0 0.0
    %3685 = vmatpush1.msra.mxu0 %v3507
    %3686 = vmatprep.subr.mxu0 0.0
    %3687 = vmatpush1.msra.mxu0 %v3508
    %3688 = vmatprep.subr.mxu0 0.0
    %3689 = vmatpush1.msra.mxu0 %v3509
    %3690 = vmatprep.subr.mxu0 0.0
    %3691 = vmatpush1.msra.mxu0 %v3510
    %3692 = vmatprep.subr.mxu0 0.0
    %3693 = vmatpush1.msra.mxu0 %v3511
    %3694 = vmatprep.subr.mxu0 0.0
    %3695 = vmatpush1.msra.mxu0 %v3512
    %3696 = vmatprep.subr.mxu0 0.0
    %3697 = vmatpush1.msra.mxu0 0.0
    %3698 = vmatprep.subr.mxu0 0.0
    %3699 = vmatpush1.msra.mxu0 0.0
    %3700 = vmatprep.subr.mxu0 0.0
    %3701 = vmatpush1.msra.mxu0 0.0
    %3702 = vmatprep.subr.mxu0 0.0
    %3703 = vmatpush1.msra.mxu0 0.0
    %3704 = vmatprep.subr.mxu0 0.0
    %3705 = vmatpush1.msra.mxu0 0.0
    %3706 = vmatprep.subr.mxu0 0.0
    %3707 = vmatpush1.msra.mxu0 0.0
    %3708 = vmatprep.subr.mxu0 0.0
    %3709 = vmatpush1.msra.mxu0 0.0
    %3710 = vmatprep.subr.mxu0 0.0
    %3711 = vmatpush1.msra.mxu0 0.0
    %3712 = vmatprep.subr.mxu0 0.0
    %3713 = vmatpush1.msra.mxu0 0.0
    %3714 = vmatprep.subr.mxu0 0.0
    %3715 = vmatpush1.msra.mxu0 0.0
    %3716 = vmatprep.subr.mxu0 0.0
    %3717 = vmatpush1.msra.mxu0 0.0
    %3718 = vmatprep.subr.mxu0 0.0
    %3719 = vmatpush1.msra.mxu0 0.0
    %3720 = vmatprep.subr.mxu0 0.0
    %3721 = vmatpush1.msra.mxu0 0.0
    %3722 = vmatprep.subr.mxu0 0.0
    %3723 = vmatpush1.msra.mxu0 0.0
    %3724 = vmatprep.subr.mxu0 0.0
    %3725 = vmatpush1.msra.mxu0 0.0
    %3726 = vmatprep.subr.mxu0 0.0
    %3727 = vmatpush1.msra.mxu0 0.0
    %3728 = vmatprep.subr.mxu0 0.0
    %3729 = vmatpush1.msra.mxu0 0.0
    %3730 = vmatprep.subr.mxu0 0.0
    %3731 = vmatpush1.msra.mxu0 0.0
    %3732 = vmatprep.subr.mxu0 0.0
    %3733 = vmatpush1.msra.mxu0 0.0
    %3734 = vmatprep.subr.mxu0 0.0
    %3735 = vmatpush1.msra.mxu0 0.0
    %3736 = vmatprep.subr.mxu0 0.0
    %3737 = vmatpush1.msra.mxu0 0.0
    %3738 = vmatprep.subr.mxu0 0.0
    %3739 = vmatpush1.msra.mxu0 0.0
    %3740 = vmatprep.mubr.f32.mxu0 0.0
    %3741 = vmatmul.mubr.f32.gmra.mrb[0].mxu0 %v3674
    %v3742 = vpop.f32.mrb[0].mxu0
    %v3743 = vadd.f32 %v3670, %v3742
    %v3744 = vpop.f32.mrb[0].mxu0
    %3745 = vdwg.mxu0
    %s3746 = scalar_lea.vmem %s11, 4
    %v3747 = vld [vmem:[%s3746] sm:$0x3]
    %v3749 = vsel %vm3425, %v3747, 0
    %3751 = vmatprep.subr.mxu0 0.0
    %3752 = vmatpush1.msra.mxu0 %v3422
    %3753 = vmatprep.subr.mxu0 0.0
    %3754 = vmatpush1.msra.mxu0 %v3431
    %3755 = vmatprep.subr.mxu0 0.0
    %3756 = vmatpush1.msra.mxu0 0.0
    %3757 = vmatprep.subr.mxu0 0.0
    %3758 = vmatpush1.msra.mxu0 0.0
    %3759 = vmatprep.subr.mxu0 0.0
    %3760 = vmatpush1.msra.mxu0 0.0
    %3761 = vmatprep.subr.mxu0 0.0
    %3762 = vmatpush1.msra.mxu0 0.0
    %3763 = vmatprep.subr.mxu0 0.0
    %3764 = vmatpush1.msra.mxu0 0.0
    %3765 = vmatprep.subr.mxu0 0.0
    %3766 = vmatpush1.msra.mxu0 0.0
    %3767 = vmatprep.subr.mxu0 0.0
    %3768 = vmatpush1.msra.mxu0 0.0
    %3769 = vmatprep.subr.mxu0 0.0
    %3770 = vmatpush1.msra.mxu0 0.0
    %3771 = vmatprep.subr.mxu0 0.0
    %3772 = vmatpush1.msra.mxu0 0.0
    %3773 = vmatprep.subr.mxu0 0.0
    %3774 = vmatpush1.msra.mxu0 0.0
    %3775 = vmatprep.subr.mxu0 0.0
    %3776 = vmatpush1.msra.mxu0 0.0
    %3777 = vmatprep.subr.mxu0 0.0
    %3778 = vmatpush1.msra.mxu0 0.0
    %3779 = vmatprep.subr.mxu0 0.0
    %3780 = vmatpush1.msra.mxu0 0.0
    %3781 = vmatprep.subr.mxu0 0.0
    %3782 = vmatpush1.msra.mxu0 0.0
    %3783 = vmatprep.subr.mxu0 0.0
    %3784 = vmatpush1.msra.mxu0 0.0
    %3785 = vmatprep.subr.mxu0 0.0
    %3786 = vmatpush1.msra.mxu0 0.0
    %3787 = vmatprep.subr.mxu0 0.0
    %3788 = vmatpush1.msra.mxu0 0.0
    %3789 = vmatprep.subr.mxu0 0.0
    %3790 = vmatpush1.msra.mxu0 0.0
    %3791 = vmatprep.subr.mxu0 0.0
    %3792 = vmatpush1.msra.mxu0 0.0
    %3793 = vmatprep.subr.mxu0 0.0
    %3794 = vmatpush1.msra.mxu0 0.0
    %3795 = vmatprep.subr.mxu0 0.0
    %3796 = vmatpush1.msra.mxu0 0.0
    %3797 = vmatprep.subr.mxu0 0.0
    %3798 = vmatpush1.msra.mxu0 0.0
    %3799 = vmatprep.subr.mxu0 0.0
    %3800 = vmatpush1.msra.mxu0 0.0
    %3801 = vmatprep.subr.mxu0 0.0
    %3802 = vmatpush1.msra.mxu0 0.0
    %3803 = vmatprep.subr.mxu0 0.0
    %3804 = vmatpush1.msra.mxu0 0.0
    %3805 = vmatprep.subr.mxu0 0.0
    %3806 = vmatpush1.msra.mxu0 0.0
    %3807 = vmatprep.subr.mxu0 0.0
    %3808 = vmatpush1.msra.mxu0 0.0
    %3809 = vmatprep.subr.mxu0 0.0
    %3810 = vmatpush1.msra.mxu0 0.0
    %3811 = vmatprep.subr.mxu0 0.0
    %3812 = vmatpush1.msra.mxu0 0.0
    %3813 = vmatprep.subr.mxu0 0.0
    %3814 = vmatpush1.msra.mxu0 0.0
    %3815 = vmatprep.mubr.f32.mxu0 0.0
    %3816 = vmatmul.mubr.f32.gmra.mrb[0].mxu0 %v3749
    %v3817 = vpop.f32.mrb[0].mxu0
    %v3818 = vadd.f32 0.0, %v3817
    %v3819 = vpop.f32.mrb[0].mxu0
    %3820 = vdwg.mxu0
    %s3821 = scalar_lea.vmem %s12, 160
    %v3822 = vld [vmem:[%s3821] sm:$0xff]
    %v3823 = vld [vmem:[%s3821 + $0x8] sm:$0xff]
    %v3824 = vld [vmem:[%s3821 + $0x10] sm:$0xff]
    %v3825 = vld [vmem:[%s3821 + $0x18] sm:$0xff]
    %v3826 = vld [vmem:[%s3821 + $0x20] sm:$0xff]
    %v3827 = vld [vmem:[%s3821 + $0x28] sm:$0xff]
    %v3828 = vld [vmem:[%s3821 + $0x30] sm:$0xff]
    %v3829 = vld [vmem:[%s3821 + $0x38] sm:$0xff]
    %v3830 = vld [vmem:[%s3821 + $0x40] sm:$0xff]
    %v3831 = vld [vmem:[%s3821 + $0x48] sm:$0xff]
    %v3833 = vsel %vm3599, %v3818, 0
    %3835 = vmatprep.subr.mxu0 0.0
    %3836 = vmatpush1.msra.mxu0 %v3822
    %3837 = vmatprep.subr.mxu0 0.0
    %3838 = vmatpush1.msra.mxu0 %v3823
    %3839 = vmatprep.subr.mxu0 0.0
    %3840 = vmatpush1.msra.mxu0 %v3824
    %3841 = vmatprep.subr.mxu0 0.0
    %3842 = vmatpush1.msra.mxu0 %v3825
    %3843 = vmatprep.subr.mxu0 0.0
    %3844 = vmatpush1.msra.mxu0 %v3826
    %3845 = vmatprep.subr.mxu0 0.0
    %3846 = vmatpush1.msra.mxu0 %v3827
    %3847 = vmatprep.subr.mxu0 0.0
    %3848 = vmatpush1.msra.mxu0 %v3828
    %3849 = vmatprep.subr.mxu0 0.0
    %3850 = vmatpush1.msra.mxu0 %v3829
    %3851 = vmatprep.subr.mxu0 0.0
    %3852 = vmatpush1.msra.mxu0 %v3830
    %3853 = vmatprep.subr.mxu0 0.0
    %3854 = vmatpush1.msra.mxu0 %v3831
    %3855 = vmatprep.subr.mxu0 0.0
    %3856 = vmatpush1.msra.mxu0 0.0
    %3857 = vmatprep.subr.mxu0 0.0
    %3858 = vmatpush1.msra.mxu0 0.0
    %3859 = vmatprep.subr.mxu0 0.0
    %3860 = vmatpush1.msra.mxu0 0.0
    %3861 = vmatprep.subr.mxu0 0.0
    %3862 = vmatpush1.msra.mxu0 0.0
    %3863 = vmatprep.subr.mxu0 0.0
    %3864 = vmatpush1.msra.mxu0 0.0
    %3865 = vmatprep.subr.mxu0 0.0
    %3866 = vmatpush1.msra.mxu0 0.0
    %3867 = vmatprep.subr.mxu0 0.0
    %3868 = vmatpush1.msra.mxu0 0.0
    %3869 = vmatprep.subr.mxu0 0.0
    %3870 = vmatpush1.msra.mxu0 0.0
    %3871 = vmatprep.subr.mxu0 0.0
    %3872 = vmatpush1.msra.mxu0 0.0
    %3873 = vmatprep.subr.mxu0 0.0
    %3874 = vmatpush1.msra.mxu0 0.0
    %3875 = vmatprep.subr.mxu0 0.0
    %3876 = vmatpush1.msra.mxu0 0.0
    %3877 = vmatprep.subr.mxu0 0.0
    %3878 = vmatpush1.msra.mxu0 0.0
    %3879 = vmatprep.subr.mxu0 0.0
    %3880 = vmatpush1.msra.mxu0 0.0
    %3881 = vmatprep.subr.mxu0 0.0
    %3882 = vmatpush1.msra.mxu0 0.0
    %3883 = vmatprep.subr.mxu0 0.0
    %3884 = vmatpush1.msra.mxu0 0.0
    %3885 = vmatprep.subr.mxu0 0.0
    %3886 = vmatpush1.msra.mxu0 0.0
    %3887 = vmatprep.subr.mxu0 0.0
    %3888 = vmatpush1.msra.mxu0 0.0
    %3889 = vmatprep.subr.mxu0 0.0
    %3890 = vmatpush1.msra.mxu0 0.0
    %3891 = vmatprep.subr.mxu0 0.0
    %3892 = vmatpush1.msra.mxu0 0.0
    %3893 = vmatprep.subr.mxu0 0.0
    %3894 = vmatpush1.msra.mxu0 0.0
    %3895 = vmatprep.subr.mxu0 0.0
    %3896 = vmatpush1.msra.mxu0 0.0
    %3897 = vmatprep.subr.mxu0 0.0
    %3898 = vmatpush1.msra.mxu0 0.0
    %3899 = vmatprep.mubr.f32.mxu0 0.0
    %3900 = vmatmul.mubr.f32.gmra.mrb[0].mxu0 %v3833
    %v3901 = vpop.f32.mrb[0].mxu0
    %v3902 = vadd.f32 0.0, %v3901
    %v3903 = vpop.f32.mrb[0].mxu0
    %3904 = vdwg.mxu0
    %v3905 = vadd.f32 %v3743, %v3902
    %s3906 = scalar_lea.vmem %s11, 6
    %v3907 = vld [vmem:[%s3906] sm:$0x3]
    %v3909 = vsel %vm3425, %v3907, 0
    %3911 = vmatprep.subr.mxu0 0.0
    %3912 = vmatpush1.msra.mxu0 %v3422
    %3913 = vmatprep.subr.mxu0 0.0
    %3914 = vmatpush1.msra.mxu0 %v3431
    %3915 = vmatprep.subr.mxu0 0.0
    %3916 = vmatpush1.msra.mxu0 0.0
    %3917 = vmatprep.subr.mxu0 0.0
    %3918 = vmatpush1.msra.mxu0 0.0
    %3919 = vmatprep.subr.mxu0 0.0
    %3920 = vmatpush1.msra.mxu0 0.0
    %3921 = vmatprep.subr.mxu0 0.0
    %3922 = vmatpush1.msra.mxu0 0.0
    %3923 = vmatprep.subr.mxu0 0.0
    %3924 = vmatpush1.msra.mxu0 0.0
    %3925 = vmatprep.subr.mxu0 0.0
    %3926 = vmatpush1.msra.mxu0 0.0
    %3927 = vmatprep.subr.mxu0 0.0
    %3928 = vmatpush1.msra.mxu0 0.0
    %3929 = vmatprep.subr.mxu0 0.0
    %3930 = vmatpush1.msra.mxu0 0.0
    %3931 = vmatprep.subr.mxu0 0.0
    %3932 = vmatpush1.msra.mxu0 0.0
    %3933 = vmatprep.subr.mxu0 0.0
    %3934 = vmatpush1.msra.mxu0 0.0
    %3935 = vmatprep.subr.mxu0 0.0
    %3936 = vmatpush1.msra.mxu0 0.0
    %3937 = vmatprep.subr.mxu0 0.0
    %3938 = vmatpush1.msra.mxu0 0.0
    %3939 = vmatprep.subr.mxu0 0.0
    %3940 = vmatpush1.msra.mxu0 0.0
    %3941 = vmatprep.subr.mxu0 0.0
    %3942 = vmatpush1.msra.mxu0 0.0
    %3943 = vmatprep.subr.mxu0 0.0
    %3944 = vmatpush1.msra.mxu0 0.0
    %3945 = vmatprep.subr.mxu0 0.0
    %3946 = vmatpush1.msra.mxu0 0.0
    %3947 = vmatprep.subr.mxu0 0.0
    %3948 = vmatpush1.msra.mxu0 0.0
    %3949 = vmatprep.subr.mxu0 0.0
    %3950 = vmatpush1.msra.mxu0 0.0
    %3951 = vmatprep.subr.mxu0 0.0
    %3952 = vmatpush1.msra.mxu0 0.0
    %3953 = vmatprep.subr.mxu0 0.0
    %3954 = vmatpush1.msra.mxu0 0.0
    %3955 = vmatprep.subr.mxu0 0.0
    %3956 = vmatpush1.msra.mxu0 0.0
    %3957 = vmatprep.subr.mxu0 0.0
    %3958 = vmatpush1.msra.mxu0 0.0
    %3959 = vmatprep.subr.mxu0 0.0
    %3960 = vmatpush1.msra.mxu0 0.0
    %3961 = vmatprep.subr.mxu0 0.0
    %3962 = vmatpush1.msra.mxu0 0.0
    %3963 = vmatprep.subr.mxu0 0.0
    %3964 = vmatpush1.msra.mxu0 0.0
    %3965 = vmatprep.subr.mxu0 0.0
    %3966 = vmatpush1.msra.mxu0 0.0
    %3967 = vmatprep.subr.mxu0 0.0
    %3968 = vmatpush1.msra.mxu0 0.0
    %3969 = vmatprep.subr.mxu0 0.0
    %3970 = vmatpush1.msra.mxu0 0.0
    %3971 = vmatprep.subr.mxu0 0.0
    %3972 = vmatpush1.msra.mxu0 0.0
    %3973 = vmatprep.subr.mxu0 0.0
    %3974 = vmatpush1.msra.mxu0 0.0
    %3975 = vmatprep.mubr.f32.mxu0 0.0
    %3976 = vmatmul.mubr.f32.gmra.mrb[0].mxu0 %v3909
    %v3977 = vpop.f32.mrb[0].mxu0
    %v3978 = vadd.f32 0.0, %v3977
    %v3979 = vpop.f32.mrb[0].mxu0
    %3980 = vdwg.mxu0
    %s3981 = scalar_lea.vmem %s12, 240
    %v3982 = vld [vmem:[%s3981] sm:$0xff]
    %v3983 = vld [vmem:[%s3981 + $0x8] sm:$0xff]
    %v3984 = vld [vmem:[%s3981 + $0x10] sm:$0xff]
    %v3985 = vld [vmem:[%s3981 + $0x18] sm:$0xff]
    %v3986 = vld [vmem:[%s3981 + $0x20] sm:$0xff]
    %v3987 = vld [vmem:[%s3981 + $0x28] sm:$0xff]
    %v3988 = vld [vmem:[%s3981 + $0x30] sm:$0xff]
    %v3989 = vld [vmem:[%s3981 + $0x38] sm:$0xff]
    %v3990 = vld [vmem:[%s3981 + $0x40] sm:$0xff]
    %v3991 = vld [vmem:[%s3981 + $0x48] sm:$0xff]
    %v3993 = vsel %vm3599, %v3978, 0
    %3995 = vmatprep.subr.mxu0 0.0
    %3996 = vmatpush1.msra.mxu0 %v3982
    %3997 = vmatprep.subr.mxu0 0.0
    %3998 = vmatpush1.msra.mxu0 %v3983
    %3999 = vmatprep.subr.mxu0 0.0
    %4000 = vmatpush1.msra.mxu0 %v3984
    %4001 = vmatprep.subr.mxu0 0.0
    %4002 = vmatpush1.msra.mxu0 %v3985
    %4003 = vmatprep.subr.mxu0 0.0
    %4004 = vmatpush1.msra.mxu0 %v3986
    %4005 = vmatprep.subr.mxu0 0.0
    %4006 = vmatpush1.msra.mxu0 %v3987
    %4007 = vmatprep.subr.mxu0 0.0
    %4008 = vmatpush1.msra.mxu0 %v3988
    %4009 = vmatprep.subr.mxu0 0.0
    %4010 = vmatpush1.msra.mxu0 %v3989
    %4011 = vmatprep.subr.mxu0 0.0
    %4012 = vmatpush1.msra.mxu0 %v3990
    %4013 = vmatprep.subr.mxu0 0.0
    %4014 = vmatpush1.msra.mxu0 %v3991
    %4015 = vmatprep.subr.mxu0 0.0
    %4016 = vmatpush1.msra.mxu0 0.0
    %4017 = vmatprep.subr.mxu0 0.0
    %4018 = vmatpush1.msra.mxu0 0.0
    %4019 = vmatprep.subr.mxu0 0.0
    %4020 = vmatpush1.msra.mxu0 0.0
    %4021 = vmatprep.subr.mxu0 0.0
    %4022 = vmatpush1.msra.mxu0 0.0
    %4023 = vmatprep.subr.mxu0 0.0
    %4024 = vmatpush1.msra.mxu0 0.0
    %4025 = vmatprep.subr.mxu0 0.0
    %4026 = vmatpush1.msra.mxu0 0.0
    %4027 = vmatprep.subr.mxu0 0.0
    %4028 = vmatpush1.msra.mxu0 0.0
    %4029 = vmatprep.subr.mxu0 0.0
    %4030 = vmatpush1.msra.mxu0 0.0
    %4031 = vmatprep.subr.mxu0 0.0
    %4032 = vmatpush1.msra.mxu0 0.0
    %4033 = vmatprep.subr.mxu0 0.0
    %4034 = vmatpush1.msra.mxu0 0.0
    %4035 = vmatprep.subr.mxu0 0.0
    %4036 = vmatpush1.msra.mxu0 0.0
    %4037 = vmatprep.subr.mxu0 0.0
    %4038 = vmatpush1.msra.mxu0 0.0
    %4039 = vmatprep.subr.mxu0 0.0
    %4040 = vmatpush1.msra.mxu0 0.0
    %4041 = vmatprep.subr.mxu0 0.0
    %4042 = vmatpush1.msra.mxu0 0.0
    %4043 = vmatprep.subr.mxu0 0.0
    %4044 = vmatpush1.msra.mxu0 0.0
    %4045 = vmatprep.subr.mxu0 0.0
    %4046 = vmatpush1.msra.mxu0 0.0
    %4047 = vmatprep.subr.mxu0 0.0
    %4048 = vmatpush1.msra.mxu0 0.0
    %4049 = vmatprep.subr.mxu0 0.0
    %4050 = vmatpush1.msra.mxu0 0.0
    %4051 = vmatprep.subr.mxu0 0.0
    %4052 = vmatpush1.msra.mxu0 0.0
    %4053 = vmatprep.subr.mxu0 0.0
    %4054 = vmatpush1.msra.mxu0 0.0
    %4055 = vmatprep.subr.mxu0 0.0
    %4056 = vmatpush1.msra.mxu0 0.0
    %4057 = vmatprep.subr.mxu0 0.0
    %4058 = vmatpush1.msra.mxu0 0.0
    %4059 = vmatprep.mubr.f32.mxu0 0.0
    %4060 = vmatmul.mubr.f32.gmra.mrb[0].mxu0 %v3993
    %v4061 = vpop.f32.mrb[0].mxu0
    %v4062 = vadd.f32 0.0, %v4061
    %v4063 = vpop.f32.mrb[0].mxu0
    %4064 = vdwg.mxu0
    %v4065 = vadd.f32 %v3905, %v4062
    %s4066 = scalar_lea.vmem %s11, 8
    %v4067 = vld [vmem:[%s4066] sm:$0x3]
    %v4069 = vsel %vm3425, %v4067, 0
    %4071 = vmatprep.subr.mxu0 0.0
    %4072 = vmatpush1.msra.mxu0 %v3422
    %4073 = vmatprep.subr.mxu0 0.0
    %4074 = vmatpush1.msra.mxu0 %v3431
    %4075 = vmatprep.subr.mxu0 0.0
    %4076 = vmatpush1.msra.mxu0 0.0
    %4077 = vmatprep.subr.mxu0 0.0
    %4078 = vmatpush1.msra.mxu0 0.0
    %4079 = vmatprep.subr.mxu0 0.0
    %4080 = vmatpush1.msra.mxu0 0.0
    %4081 = vmatprep.subr.mxu0 0.0
    %4082 = vmatpush1.msra.mxu0 0.0
    %4083 = vmatprep.subr.mxu0 0.0
    %4084 = vmatpush1.msra.mxu0 0.0
    %4085 = vmatprep.subr.mxu0 0.0
    %4086 = vmatpush1.msra.mxu0 0.0
    %4087 = vmatprep.subr.mxu0 0.0
    %4088 = vmatpush1.msra.mxu0 0.0
    %4089 = vmatprep.subr.mxu0 0.0
    %4090 = vmatpush1.msra.mxu0 0.0
    %4091 = vmatprep.subr.mxu0 0.0
    %4092 = vmatpush1.msra.mxu0 0.0
    %4093 = vmatprep.subr.mxu0 0.0
    %4094 = vmatpush1.msra.mxu0 0.0
    %4095 = vmatprep.subr.mxu0 0.0
    %4096 = vmatpush1.msra.mxu0 0.0
    %4097 = vmatprep.subr.mxu0 0.0
    %4098 = vmatpush1.msra.mxu0 0.0
    %4099 = vmatprep.subr.mxu0 0.0
    %4100 = vmatpush1.msra.mxu0 0.0
    %4101 = vmatprep.subr.mxu0 0.0
    %4102 = vmatpush1.msra.mxu0 0.0
    %4103 = vmatprep.subr.mxu0 0.0
    %4104 = vmatpush1.msra.mxu0 0.0
    %4105 = vmatprep.subr.mxu0 0.0
    %4106 = vmatpush1.msra.mxu0 0.0
    %4107 = vmatprep.subr.mxu0 0.0
    %4108 = vmatpush1.msra.mxu0 0.0
    %4109 = vmatprep.subr.mxu0 0.0
    %4110 = vmatpush1.msra.mxu0 0.0
    %4111 = vmatprep.subr.mxu0 0.0
    %4112 = vmatpush1.msra.mxu0 0.0
    %4113 = vmatprep.subr.mxu0 0.0
    %4114 = vmatpush1.msra.mxu0 0.0
    %4115 = vmatprep.subr.mxu0 0.0
    %4116 = vmatpush1.msra.mxu0 0.0
    %4117 = vmatprep.subr.mxu0 0.0
    %4118 = vmatpush1.msra.mxu0 0.0
    %4119 = vmatprep.subr.mxu0 0.0
    %4120 = vmatpush1.msra.mxu0 0.0
    %4121 = vmatprep.subr.mxu0 0.0
    %4122 = vmatpush1.msra.mxu0 0.0
    %4123 = vmatprep.subr.mxu0 0.0
    %4124 = vmatpush1.msra.mxu0 0.0
    %4125 = vmatprep.subr.mxu0 0.0
    %4126 = vmatpush1.msra.mxu0 0.0
    %4127 = vmatprep.subr.mxu0 0.0
    %4128 = vmatpush1.msra.mxu0 0.0
    %4129 = vmatprep.subr.mxu0 0.0
    %4130 = vmatpush1.msra.mxu0 0.0
    %4131 = vmatprep.subr.mxu0 0.0
    %4132 = vmatpush1.msra.mxu0 0.0
    %4133 = vmatprep.subr.mxu0 0.0
    %4134 = vmatpush1.msra.mxu0 0.0
    %4135 = vmatprep.mubr.f32.mxu0 0.0
    %4136 = vmatmul.mubr.f32.gmra.mrb[0].mxu0 %v4069
    %v4137 = vpop.f32.mrb[0].mxu0
    %v4138 = vadd.f32 0.0, %v4137
    %v4139 = vpop.f32.mrb[0].mxu0
    %4140 = vdwg.mxu0
    %s4141 = scalar_lea.vmem %s12, 320
    %v4142 = vld [vmem:[%s4141] sm:$0xff]
    %v4143 = vld [vmem:[%s4141 + $0x8] sm:$0xff]
    %v4144 = vld [vmem:[%s4141 + $0x10] sm:$0xff]
    %v4145 = vld [vmem:[%s4141 + $0x18] sm:$0xff]
    %v4146 = vld [vmem:[%s4141 + $0x20] sm:$0xff]
    %v4147 = vld [vmem:[%s4141 + $0x28] sm:$0xff]
    %v4148 = vld [vmem:[%s4141 + $0x30] sm:$0xff]
    %v4149 = vld [vmem:[%s4141 + $0x38] sm:$0xff]
    %v4150 = vld [vmem:[%s4141 + $0x40] sm:$0xff]
    %v4151 = vld [vmem:[%s4141 + $0x48] sm:$0xff]
    %v4153 = vsel %vm3599, %v4138, 0
    %4155 = vmatprep.subr.mxu0 0.0
    %4156 = vmatpush1.msra.mxu0 %v4142
    %4157 = vmatprep.subr.mxu0 0.0
    %4158 = vmatpush1.msra.mxu0 %v4143
    %4159 = vmatprep.subr.mxu0 0.0
    %4160 = vmatpush1.msra.mxu0 %v4144
    %4161 = vmatprep.subr.mxu0 0.0
    %4162 = vmatpush1.msra.mxu0 %v4145
    %4163 = vmatprep.subr.mxu0 0.0
    %4164 = vmatpush1.msra.mxu0 %v4146
    %4165 = vmatprep.subr.mxu0 0.0
    %4166 = vmatpush1.msra.mxu0 %v4147
    %4167 = vmatprep.subr.mxu0 0.0
    %4168 = vmatpush1.msra.mxu0 %v4148
    %4169 = vmatprep.subr.mxu0 0.0
    %4170 = vmatpush1.msra.mxu0 %v4149
    %4171 = vmatprep.subr.mxu0 0.0
    %4172 = vmatpush1.msra.mxu0 %v4150
    %4173 = vmatprep.subr.mxu0 0.0
    %4174 = vmatpush1.msra.mxu0 %v4151
    %4175 = vmatprep.subr.mxu0 0.0
    %4176 = vmatpush1.msra.mxu0 0.0
    %4177 = vmatprep.subr.mxu0 0.0
    %4178 = vmatpush1.msra.mxu0 0.0
    %4179 = vmatprep.subr.mxu0 0.0
    %4180 = vmatpush1.msra.mxu0 0.0
    %4181 = vmatprep.subr.mxu0 0.0
    %4182 = vmatpush1.msra.mxu0 0.0
    %4183 = vmatprep.subr.mxu0 0.0
    %4184 = vmatpush1.msra.mxu0 0.0
    %4185 = vmatprep.subr.mxu0 0.0
    %4186 = vmatpush1.msra.mxu0 0.0
    %4187 = vmatprep.subr.mxu0 0.0
    %4188 = vmatpush1.msra.mxu0 0.0
    %4189 = vmatprep.subr.mxu0 0.0
    %4190 = vmatpush1.msra.mxu0 0.0
    %4191 = vmatprep.subr.mxu0 0.0
    %4192 = vmatpush1.msra.mxu0 0.0
    %4193 = vmatprep.subr.mxu0 0.0
    %4194 = vmatpush1.msra.mxu0 0.0
    %4195 = vmatprep.subr.mxu0 0.0
    %4196 = vmatpush1.msra.mxu0 0.0
    %4197 = vmatprep.subr.mxu0 0.0
    %4198 = vmatpush1.msra.mxu0 0.0
    %4199 = vmatprep.subr.mxu0 0.0
    %4200 = vmatpush1.msra.mxu0 0.0
    %4201 = vmatprep.subr.mxu0 0.0
    %4202 = vmatpush1.msra.mxu0 0.0
    %4203 = vmatprep.subr.mxu0 0.0
    %4204 = vmatpush1.msra.mxu0 0.0
    %4205 = vmatprep.subr.mxu0 0.0
    %4206 = vmatpush1.msra.mxu0 0.0
    %4207 = vmatprep.subr.mxu0 0.0
    %4208 = vmatpush1.msra.mxu0 0.0
    %4209 = vmatprep.subr.mxu0 0.0
    %4210 = vmatpush1.msra.mxu0 0.0
    %4211 = vmatprep.subr.mxu0 0.0
    %4212 = vmatpush1.msra.mxu0 0.0
    %4213 = vmatprep.subr.mxu0 0.0
    %4214 = vmatpush1.msra.mxu0 0.0
    %4215 = vmatprep.subr.mxu0 0.0
    %4216 = vmatpush1.msra.mxu0 0.0
    %4217 = vmatprep.subr.mxu0 0.0
    %4218 = vmatpush1.msra.mxu0 0.0
    %4219 = vmatprep.mubr.f32.mxu0 0.0
    %4220 = vmatmul.mubr.f32.gmra.mrb[0].mxu0 %v4153
    %v4221 = vpop.f32.mrb[0].mxu0
    %v4222 = vadd.f32 0.0, %v4221
    %v4223 = vpop.f32.mrb[0].mxu0
    %4224 = vdwg.mxu0
    %v4225 = vadd.f32 %v4065, %v4222
    %v4226 = vld [vmem:[#allocation2] sm:$0x1]
    %v4228 = vlaneseq
    %v4229 = vshrl.u32 %v4228, 7
    %v4230 = vsub.s32 0, %v4229
    %v4231 = vrot.slane %v4226, %v4230
    %v4233 = vadd.f32 %v4225, %v4231
    %v4234 = vmax.f32 %v4233, 0.0
    %v4235 = vld [vmem:[%s14] sm:$0xff]
    %v4236 = vld [vmem:[%s14 + $0x8] sm:$0xff]
    %v4237 = vld [vmem:[%s14 + $0x10] sm:$0xff]
    %v4238 = vld [vmem:[%s14 + $0x18] sm:$0xff]
    %v4239 = vld [vmem:[%s14 + $0x20] sm:$0xff]
    %v4240 = vld [vmem:[%s14 + $0x28] sm:$0xff]
    %v4241 = vld [vmem:[%s14 + $0x30] sm:$0xff]
    %v4242 = vld [vmem:[%s14 + $0x38] sm:$0xff]
    %v4243 = vld [vmem:[%s14 + $0x40] sm:$0xff]
    %v4244 = vld [vmem:[%s14 + $0x48] sm:$0xff]
    %v4245 = vld [vmem:[%s14 + $0x50] sm:$0xff]
    %v4246 = vld [vmem:[%s14 + $0x58] sm:$0xff]
    %v4247 = vld [vmem:[%s14 + $0x60] sm:$0xff]
    %v4248 = vld [vmem:[%s14 + $0x68] sm:$0xff]
    %v4249 = vld [vmem:[%s14 + $0x70] sm:$0xff]
    %v4250 = vld [vmem:[#allocation5] sm:$0x1]
    %v4252 = vlaneseq
    %v4253 = vshrl.u32 %v4252, 7
    %v4254 = vsub.s32 0, %v4253
    %v4255 = vrot.slane %v4250, %v4254
    %vm4257 = vcmask 982016
    %v4259 = vsel %vm4257, %v4234, 0
    %4261 = vmatprep.subr.mxu0 0.0
    %4262 = vmatpush1.msra.mxu0 %v4235
    %4263 = vmatprep.subr.mxu0 0.0
    %4264 = vmatpush1.msra.mxu0 %v4236
    %4265 = vmatprep.subr.mxu0 0.0
    %4266 = vmatpush1.msra.mxu0 %v4237
    %4267 = vmatprep.subr.mxu0 0.0
    %4268 = vmatpush1.msra.mxu0 %v4238
    %4269 = vmatprep.subr.mxu0 0.0
    %4270 = vmatpush1.msra.mxu0 %v4239
    %4271 = vmatprep.subr.mxu0 0.0
    %4272 = vmatpush1.msra.mxu0 %v4240
    %4273 = vmatprep.subr.mxu0 0.0
    %4274 = vmatpush1.msra.mxu0 %v4241
    %4275 = vmatprep.subr.mxu0 0.0
    %4276 = vmatpush1.msra.mxu0 %v4242
    %4277 = vmatprep.subr.mxu0 0.0
    %4278 = vmatpush1.msra.mxu0 %v4243
    %4279 = vmatprep.subr.mxu0 0.0
    %4280 = vmatpush1.msra.mxu0 %v4244
    %4281 = vmatprep.subr.mxu0 0.0
    %4282 = vmatpush1.msra.mxu0 %v4245
    %4283 = vmatprep.subr.mxu0 0.0
    %4284 = vmatpush1.msra.mxu0 %v4246
    %4285 = vmatprep.subr.mxu0 0.0
    %4286 = vmatpush1.msra.mxu0 %v4247
    %4287 = vmatprep.subr.mxu0 0.0
    %4288 = vmatpush1.msra.mxu0 %v4248
    %4289 = vmatprep.subr.mxu0 0.0
    %4290 = vmatpush1.msra.mxu0 %v4249
    %4291 = vmatprep.subr.mxu0 0.0
    %4292 = vmatpush1.msra.mxu0 0.0
    %4293 = vmatprep.subr.mxu0 0.0
    %4294 = vmatpush1.msra.mxu0 0.0
    %4295 = vmatprep.subr.mxu0 0.0
    %4296 = vmatpush1.msra.mxu0 0.0
    %4297 = vmatprep.subr.mxu0 0.0
    %4298 = vmatpush1.msra.mxu0 0.0
    %4299 = vmatprep.subr.mxu0 0.0
    %4300 = vmatpush1.msra.mxu0 0.0
    %4301 = vmatprep.subr.mxu0 0.0
    %4302 = vmatpush1.msra.mxu0 0.0
    %4303 = vmatprep.subr.mxu0 0.0
    %4304 = vmatpush1.msra.mxu0 0.0
    %4305 = vmatprep.subr.mxu0 0.0
    %4306 = vmatpush1.msra.mxu0 0.0
    %4307 = vmatprep.subr.mxu0 0.0
    %4308 = vmatpush1.msra.mxu0 0.0
    %4309 = vmatprep.subr.mxu0 0.0
    %4310 = vmatpush1.msra.mxu0 0.0
    %4311 = vmatprep.subr.mxu0 0.0
    %4312 = vmatpush1.msra.mxu0 0.0
    %4313 = vmatprep.subr.mxu0 0.0
    %4314 = vmatpush1.msra.mxu0 0.0
    %4315 = vmatprep.subr.mxu0 0.0
    %4316 = vmatpush1.msra.mxu0 0.0
    %4317 = vmatprep.subr.mxu0 0.0
    %4318 = vmatpush1.msra.mxu0 0.0
    %4319 = vmatprep.subr.mxu0 0.0
    %4320 = vmatpush1.msra.mxu0 0.0
    %4321 = vmatprep.subr.mxu0 0.0
    %4322 = vmatpush1.msra.mxu0 0.0
    %4323 = vmatprep.subr.mxu0 0.0
    %4324 = vmatpush1.msra.mxu0 0.0
    %4325 = vmatprep.mubr.f32.mxu0 0.0
    %4326 = vmatmul.mubr.f32.gmra.mrb[0].mxu0 %v4259
    %v4327 = vpop.f32.mrb[0].mxu0
    %v4328 = vadd.f32 %v4255, %v4327
    %v4329 = vpop.f32.mrb[0].mxu0
    %4330 = vdwg.mxu0
    %v4331 = vmax.f32 %v4328, 0.0
    %v4332 = vld [vmem:[%s16] sm:$0xff]
    %v4333 = vld [vmem:[%s16 + $0x8] sm:$0xff]
    %v4334 = vld [vmem:[%s16 + $0x10] sm:$0xff]
    %v4335 = vld [vmem:[%s16 + $0x18] sm:$0xff]
    %v4336 = vld [vmem:[%s16 + $0x20] sm:$0xff]
    %v4337 = vld [vmem:[%s16 + $0x28] sm:$0xff]
    %v4338 = vld [vmem:[%s16 + $0x30] sm:$0xff]
    %v4339 = vld [vmem:[%s16 + $0x38] sm:$0xff]
    %v4340 = vld [vmem:[%s16 + $0x40] sm:$0xff]
    %v4341 = vld [vmem:[%s16 + $0x48] sm:$0xff]
    %v4342 = vld [vmem:[%s16 + $0x50] sm:$0xf]
    %v4343 = vld [vmem:[#allocation7] sm:$0x1]
    %v4345 = vlaneseq
    %v4346 = vshrl.u32 %v4345, 7
    %v4347 = vsub.s32 0, %v4346
    %v4348 = vrot.slane %v4343, %v4347
    %v4351 = vsel %vm2175, %v4331, 0
    %v4354 = vsel %vm1953, %v4342, 0
    %4356 = vmatprep.subr.mxu0 0.0
    %4357 = vmatpush1.msra.mxu0 %v4332
    %4358 = vmatprep.subr.mxu0 0.0
    %4359 = vmatpush1.msra.mxu0 %v4333
    %4360 = vmatprep.subr.mxu0 0.0
    %4361 = vmatpush1.msra.mxu0 %v4334
    %4362 = vmatprep.subr.mxu0 0.0
    %4363 = vmatpush1.msra.mxu0 %v4335
    %4364 = vmatprep.subr.mxu0 0.0
    %4365 = vmatpush1.msra.mxu0 %v4336
    %4366 = vmatprep.subr.mxu0 0.0
    %4367 = vmatpush1.msra.mxu0 %v4337
    %4368 = vmatprep.subr.mxu0 0.0
    %4369 = vmatpush1.msra.mxu0 %v4338
    %4370 = vmatprep.subr.mxu0 0.0
    %4371 = vmatpush1.msra.mxu0 %v4339
    %4372 = vmatprep.subr.mxu0 0.0
    %4373 = vmatpush1.msra.mxu0 %v4340
    %4374 = vmatprep.subr.mxu0 0.0
    %4375 = vmatpush1.msra.mxu0 %v4341
    %4376 = vmatprep.subr.mxu0 0.0
    %4377 = vmatpush1.msra.mxu0 %v4354
    %4378 = vmatprep.subr.mxu0 0.0
    %4379 = vmatpush1.msra.mxu0 0.0
    %4380 = vmatprep.subr.mxu0 0.0
    %4381 = vmatpush1.msra.mxu0 0.0
    %4382 = vmatprep.subr.mxu0 0.0
    %4383 = vmatpush1.msra.mxu0 0.0
    %4384 = vmatprep.subr.mxu0 0.0
    %4385 = vmatpush1.msra.mxu0 0.0
    %4386 = vmatprep.subr.mxu0 0.0
    %4387 = vmatpush1.msra.mxu0 0.0
    %4388 = vmatprep.subr.mxu0 0.0
    %4389 = vmatpush1.msra.mxu0 0.0
    %4390 = vmatprep.subr.mxu0 0.0
    %4391 = vmatpush1.msra.mxu0 0.0
    %4392 = vmatprep.subr.mxu0 0.0
    %4393 = vmatpush1.msra.mxu0 0.0
    %4394 = vmatprep.subr.mxu0 0.0
    %4395 = vmatpush1.msra.mxu0 0.0
    %4396 = vmatprep.subr.mxu0 0.0
    %4397 = vmatpush1.msra.mxu0 0.0
    %4398 = vmatprep.subr.mxu0 0.0
    %4399 = vmatpush1.msra.mxu0 0.0
    %4400 = vmatprep.subr.mxu0 0.0
    %4401 = vmatpush1.msra.mxu0 0.0
    %4402 = vmatprep.subr.mxu0 0.0
    %4403 = vmatpush1.msra.mxu0 0.0
    %4404 = vmatprep.subr.mxu0 0.0
    %4405 = vmatpush1.msra.mxu0 0.0
    %4406 = vmatprep.subr.mxu0 0.0
    %4407 = vmatpush1.msra.mxu0 0.0
    %4408 = vmatprep.subr.mxu0 0.0
    %4409 = vmatpush1.msra.mxu0 0.0
    %4410 = vmatprep.subr.mxu0 0.0
    %4411 = vmatpush1.msra.mxu0 0.0
    %4412 = vmatprep.subr.mxu0 0.0
    %4413 = vmatpush1.msra.mxu0 0.0
    %4414 = vmatprep.subr.mxu0 0.0
    %4415 = vmatpush1.msra.mxu0 0.0
    %4416 = vmatprep.subr.mxu0 0.0
    %4417 = vmatpush1.msra.mxu0 0.0
    %4418 = vmatprep.subr.mxu0 0.0
    %4419 = vmatpush1.msra.mxu0 0.0
    %4420 = vmatprep.mubr.f32.mxu0 0.0
    %4421 = vmatmul.mubr.f32.gmra.mrb[0].mxu0 %v4351
    %v4422 = vpop.f32.mrb[0].mxu0
    %v4423 = vadd.f32 %v4348, %v4422
    %v4424 = vpop.f32.mrb[0].mxu0
    %4425 = vdwg.mxu0
    %vm4426 = vcmask 74752
    %4427 = vst.msk [vmem:[#allocation8] sm:$0x3] %vm4426, %v4423
    // Predicated region
    $region86: #{net_forward.1} parent=1 // pred_check
      _
    $region87: #{net_forward.1} parent=1 // pred_check_branch
      %4429 = sbr.rel (0) target = $region89
    $region88: #{net_forward.1} parent=1 // pred_region
      %s4431 = ssub.s32 32, 32
      %4432 = vsyncadd [#allocation4], %s4431
      %s4434 = sshll.u32 [#allocation8], 4
      %s4435 = int_to_ptr.vmem [resolvable:$true] %s4434
      %4437 = dma.vmem_to_hbm [thread:$0]  %s4435, 32, %s18, [#allocation4]
    $region89: #{net_forward.1} parent=1 // pred_fallthru
      _
    // Predicated region
    $region90: #{net_forward.1} parent=1 // pred_check
      _
    $region91: #{net_forward.1} parent=1 // pred_check_branch
      %4439 = sbr.rel (0) target = $region93
    $region92: #{net_forward.1} parent=1 // pred_region
      %4440 = dma.done [#allocation4], 32
    $region93: #{net_forward.1} parent=1 // pred_fallthru
      _
    %4441 = vsyncpa [#allocation3], 1
    %4442 = vsyncpa [#allocation6], 1
    %4443 = vsyncpa [#allocation4], 1

</llo_original>
